<compile_context>
chip_gen: v7x
topology: tpu7x:2x2x1
jax: 0.10.0
libtpu: 0.0.40
codegen_flags: <defaults>
</compile_context>

<pallas_src>
import jax
import jax.numpy as jnp
from jax.experimental import pallas as pl
from jax.experimental.pallas import tpu as pltpu

# ----------------------------- model dims (small) -----------------------------
BATCH = 2
SEQ = 8
HIDDEN = 32
NUM_HEADS = 4
HEAD_DIM = HIDDEN // NUM_HEADS
INTERMEDIATE = 64
NUM_LAYERS = 2
VOCAB = 50
MAX_POS = 16
NUM_CLASSES = 7
CLS_PAD = 128                      # lane-dense padded classifier width (sliced to 7 outside)
SCALE = 1.0 / (HEAD_DIM ** 0.5)


# ----------------------------- fused Pallas kernel -----------------------------
def _layernorm(x, g, b):
    mu = jnp.mean(x, axis=-1, keepdims=True)
    var = jnp.mean(jnp.square(x - mu), axis=-1, keepdims=True)
    return (x - mu) * jax.lax.rsqrt(var + 1e-12) * g + b


def _fused_bert_kernel(x_ref, amask_ref, eg_ref, eb_ref,
                       wqkv_ref, bqkv_ref, wo_ref, bo_ref,
                       ln1g_ref, ln1b_ref,
                       w1_ref, b1_ref, w2_ref, b2_ref,
                       ln2g_ref, ln2b_ref,
                       pw_ref, pb_ref, cw_ref, cb_ref,
                       o_ref):
    """Whole encoder + pooler + classifier in one kernel.

    x_ref:     (B*S, HIDDEN)      summed embeddings (pre-LN)
    amask_ref: (B, S)             additive key mask: 0.0 valid / -1e9 padding
    per-layer weights stacked on a leading NUM_LAYERS axis
    o_ref:     (B*S, CLS_PAD)     padded per-token logits (CLS rows used outside)
    """
    x = _layernorm(x_ref[...], eg_ref[...], eb_ref[...])          # (B*S, H)
    amask = amask_ref[...]                                        # (B, S)

    for l in range(NUM_LAYERS):
        # --- fused QKV projection: single (B*S, 3H) matmul ---
        qkv = jnp.dot(x, wqkv_ref[l], preferred_element_type=jnp.float32) + bqkv_ref[l]
        q = qkv[:, 0 * HIDDEN:1 * HIDDEN]
        k = qkv[:, 1 * HIDDEN:2 * HIDDEN]
        v = qkv[:, 2 * HIDDEN:3 * HIDDEN]

        # --- attention: all (batch, head) pairs unrolled inside the kernel ---
        batch_rows = []
        for b in range(BATCH):
            r0 = b * SEQ
            amb = amask[b:b + 1, :]                               # (1, S), broadcast over queries
            head_outs = []
            for h in range(NUM_HEADS):
                c0 = h * HEAD_DIM
                qb = q[r0:r0 + SEQ, c0:c0 + HEAD_DIM]             # (S, D)
                kb = k[r0:r0 + SEQ, c0:c0 + HEAD_DIM]
                vb = v[r0:r0 + SEQ, c0:c0 + HEAD_DIM]
                s = jnp.dot(qb, kb.T, preferred_element_type=jnp.float32) * SCALE + amb
                s = s - jnp.max(s, axis=-1, keepdims=True)
                p = jnp.exp(s)
                p = p * pl.reciprocal(jnp.sum(p, axis=-1, keepdims=True), approx=True)
                head_outs.append(jnp.dot(p, vb, preferred_element_type=jnp.float32))
            batch_rows.append(jnp.concatenate(head_outs, axis=-1))   # (S, H)
        ctx = jnp.concatenate(batch_rows, axis=0)                    # (B*S, H)

        # --- output projection + residual + LN (fused epilogue) ---
        attn_out = jnp.dot(ctx, wo_ref[l], preferred_element_type=jnp.float32) + bo_ref[l]
        x = _layernorm(x + attn_out, ln1g_ref[l], ln1b_ref[l])

        # --- FFN (bias+gelu fused) + residual + LN ---
        h1 = jax.nn.gelu(jnp.dot(x, w1_ref[l], preferred_element_type=jnp.float32) + b1_ref[l])
        h2 = jnp.dot(h1, w2_ref[l], preferred_element_type=jnp.float32) + b2_ref[l]
        x = _layernorm(x + h2, ln2g_ref[l], ln2b_ref[l])

    # --- pooler (tanh) + padded classifier, computed for every token row so the
    #     store is lane/sublane dense; CLS rows are selected outside the kernel.
    pooled = jnp.tanh(jnp.dot(x, pw_ref[...], preferred_element_type=jnp.float32) + pb_ref[...])
    # dr_rate is None -> no dropout (eval-mode dropout is identity anyway)
    # TODO(synk): if dr_rate were set and training, dropout would need a PRNG-masked elementwise step here.
    o_ref[...] = jnp.dot(pooled, cw_ref[...], preferred_element_type=jnp.float32) + cb_ref[...]


# ----------------------------- parameters -----------------------------
def init_params(seed=0):
    key = jax.random.PRNGKey(seed)

    def nxt():
        nonlocal key
        key, sub = jax.random.split(key)
        return sub

    def normal(shape):
        return 0.02 * jax.random.normal(nxt(), shape, jnp.float32)

    # classifier padded to 128 output columns (zeros beyond NUM_CLASSES)
    cls_w = normal((HIDDEN, NUM_CLASSES))
    cls_w_pad = jnp.zeros((HIDDEN, CLS_PAD), jnp.float32).at[:, :NUM_CLASSES].set(cls_w)
    cls_b_pad = jnp.zeros((1, CLS_PAD), jnp.float32)

    p = {
        "tok_emb": normal((VOCAB, HIDDEN)),
        "pos_emb": normal((MAX_POS, HIDDEN)),
        "typ_emb": normal((2, HIDDEN)),
        "emb_ln_g": jnp.ones((1, HIDDEN), jnp.float32),
        "emb_ln_b": jnp.zeros((1, HIDDEN), jnp.float32),
        # per-layer weights stacked along a leading NUM_LAYERS axis; QKV fused on output axis
        "wqkv": normal((NUM_LAYERS, HIDDEN, 3 * HIDDEN)),
        "bqkv": jnp.zeros((NUM_LAYERS, 1, 3 * HIDDEN), jnp.float32),
        "wo": normal((NUM_LAYERS, HIDDEN, HIDDEN)),
        "bo": jnp.zeros((NUM_LAYERS, 1, HIDDEN), jnp.float32),
        "ln1_g": jnp.ones((NUM_LAYERS, 1, HIDDEN), jnp.float32),
        "ln1_b": jnp.zeros((NUM_LAYERS, 1, HIDDEN), jnp.float32),
        "w1": normal((NUM_LAYERS, HIDDEN, INTERMEDIATE)),
        "b1": jnp.zeros((NUM_LAYERS, 1, INTERMEDIATE), jnp.float32),
        "w2": normal((NUM_LAYERS, INTERMEDIATE, HIDDEN)),
        "b2": jnp.zeros((NUM_LAYERS, 1, HIDDEN), jnp.float32),
        "ln2_g": jnp.ones((NUM_LAYERS, 1, HIDDEN), jnp.float32),
        "ln2_b": jnp.zeros((NUM_LAYERS, 1, HIDDEN), jnp.float32),
        "pool_w": normal((HIDDEN, HIDDEN)),
        "pool_b": jnp.zeros((1, HIDDEN), jnp.float32),
        "cls_w_pad": cls_w_pad,
        "cls_b_pad": cls_b_pad,
    }
    return p


# ----------------------------- forward pass -----------------------------
def bert_classifier_forward(params, token_ids, valid_length, segment_ids):
    b, s = token_ids.shape

    # gen_attention_mask: attention_mask[i][:valid_length[i]] = 1  -> additive mask, built once
    attention_mask = (jnp.arange(s)[None, :] < valid_length[:, None]).astype(jnp.float32)
    add_mask = (1.0 - attention_mask) * (-1e9)                       # (B, S)

    # forward() passes token_type_ids = zeros_like(segment_ids)
    token_type_ids = jnp.zeros_like(segment_ids)

    # embedding gathers are data-dependent lookups -> XLA glue; everything dense runs in Pallas
    x = (params["tok_emb"][token_ids]
         + params["pos_emb"][jnp.arange(s)][None, :, :]
         + params["typ_emb"][token_type_ids]).reshape(b * s, HIDDEN)  # (B*S, H)

    logits_pad = pl.pallas_call(
        _fused_bert_kernel,
        out_shape=jax.ShapeDtypeStruct((b * s, CLS_PAD), jnp.float32),
        compiler_params=pltpu.CompilerParams(vmem_limit_bytes=32 * 1024 * 1024),
    )(x, add_mask,
      params["emb_ln_g"], params["emb_ln_b"],
      params["wqkv"], params["bqkv"], params["wo"], params["bo"],
      params["ln1_g"], params["ln1_b"],
      params["w1"], params["b1"], params["w2"], params["b2"],
      params["ln2_g"], params["ln2_b"],
      params["pool_w"], params["pool_b"],
      params["cls_w_pad"], params["cls_b_pad"])

    # keep only the [CLS] row per batch and the real NUM_CLASSES columns
    logits = logits_pad.reshape(b, s, CLS_PAD)[:, 0, :NUM_CLASSES]
    return logits


# ----------------------------- driver -----------------------------
if __name__ == "__main__":
    key = jax.random.PRNGKey(0)
    k1, k2 = jax.random.split(key)

    token_ids = jax.random.randint(k1, (BATCH, SEQ), 0, VOCAB, dtype=jnp.int32)
    valid_length = jnp.array([SEQ, SEQ // 2], dtype=jnp.int32)
    segment_ids = jnp.zeros((BATCH, SEQ), dtype=jnp.int32)

    params = init_params(seed=0)

    fwd = jax.jit(bert_classifier_forward)
    logits = fwd(params, token_ids, valid_length, segment_ids)
    jax.block_until_ready(logits)

    assert logits.shape == (BATCH, NUM_CLASSES)
    assert logits.dtype == jnp.float32
    print("KERNEL_OK")
</pallas_src>

<mosaic_0001>
module attributes {stable_mosaic.version = 11 : i64} {
  func.func @_fused_bert_kernel(%arg0: memref<16x32xf32, #tpu.memory_space<vmem>>, %arg1: memref<2x8xf32, #tpu.memory_space<vmem>>, %arg2: memref<1x32xf32, #tpu.memory_space<vmem>>, %arg3: memref<1x32xf32, #tpu.memory_space<vmem>>, %arg4: memref<2x32x96xf32, #tpu.memory_space<vmem>>, %arg5: memref<2x1x96xf32, #tpu.memory_space<vmem>>, %arg6: memref<2x32x32xf32, #tpu.memory_space<vmem>>, %arg7: memref<2x1x32xf32, #tpu.memory_space<vmem>>, %arg8: memref<2x1x32xf32, #tpu.memory_space<vmem>>, %arg9: memref<2x1x32xf32, #tpu.memory_space<vmem>>, %arg10: memref<2x32x64xf32, #tpu.memory_space<vmem>>, %arg11: memref<2x1x64xf32, #tpu.memory_space<vmem>>, %arg12: memref<2x64x32xf32, #tpu.memory_space<vmem>>, %arg13: memref<2x1x32xf32, #tpu.memory_space<vmem>>, %arg14: memref<2x1x32xf32, #tpu.memory_space<vmem>>, %arg15: memref<2x1x32xf32, #tpu.memory_space<vmem>>, %arg16: memref<32x32xf32, #tpu.memory_space<vmem>>, %arg17: memref<1x32xf32, #tpu.memory_space<vmem>>, %arg18: memref<32x128xf32, #tpu.memory_space<vmem>>, %arg19: memref<1x128xf32, #tpu.memory_space<vmem>>, %arg20: memref<16x128xf32, #tpu.memory_space<vmem>>) attributes {dimension_semantics = [], scalar_prefetch = 0 : i64, scratch_operands = 0 : i64, tpu.core_type = #tpu.core_type<tc>} {
    %c0 = arith.constant 0 : index
    %c0_0 = arith.constant 0 : index
    %0 = vector.load %arg0[%c0, %c0_0] : memref<16x32xf32, #tpu.memory_space<vmem>>, vector<16x32xf32>
    %c0_1 = arith.constant 0 : index
    %c0_2 = arith.constant 0 : index
    %1 = vector.load %arg2[%c0_1, %c0_2] : memref<1x32xf32, #tpu.memory_space<vmem>>, vector<1x32xf32>
    %c0_3 = arith.constant 0 : index
    %c0_4 = arith.constant 0 : index
    %2 = vector.load %arg3[%c0_3, %c0_4] : memref<1x32xf32, #tpu.memory_space<vmem>>, vector<1x32xf32>
    %cst = arith.constant dense<0.000000e+00> : vector<16xf32>
    %3 = vector.multi_reduction <add>, %0, %cst [1] : vector<16x32xf32> to vector<16xf32>
    %4 = vector.shape_cast %3 : vector<16xf32> to vector<16x1xf32>
    %cst_5 = arith.constant 3.200000e+01 : f32
    %5 = vector.broadcast %cst_5 : f32 to vector<16x1xf32>
    %6 = arith.divf %4, %5 : vector<16x1xf32>
    %7 = vector.broadcast %6 : vector<16x1xf32> to vector<16x32xf32>
    %8 = arith.subf %0, %7 : vector<16x32xf32>
    %9 = arith.mulf %8, %8 : vector<16x32xf32>
    %cst_6 = arith.constant dense<0.000000e+00> : vector<16xf32>
    %10 = vector.multi_reduction <add>, %9, %cst_6 [1] : vector<16x32xf32> to vector<16xf32>
    %11 = vector.shape_cast %10 : vector<16xf32> to vector<16x1xf32>
    %cst_7 = arith.constant 3.200000e+01 : f32
    %12 = vector.broadcast %cst_7 : f32 to vector<16x1xf32>
    %13 = arith.divf %11, %12 : vector<16x1xf32>
    %14 = vector.broadcast %6 : vector<16x1xf32> to vector<16x32xf32>
    %15 = arith.subf %0, %14 : vector<16x32xf32>
    %cst_8 = arith.constant 9.99999996E-13 : f32
    %16 = vector.broadcast %cst_8 : f32 to vector<16x1xf32>
    %17 = arith.addf %13, %16 : vector<16x1xf32>
    %18 = math.rsqrt %17 : vector<16x1xf32>
    %19 = vector.broadcast %18 : vector<16x1xf32> to vector<16x32xf32>
    %20 = arith.mulf %15, %19 : vector<16x32xf32>
    %21 = vector.broadcast %1 : vector<1x32xf32> to vector<16x32xf32>
    %22 = arith.mulf %20, %21 : vector<16x32xf32>
    %23 = vector.broadcast %2 : vector<1x32xf32> to vector<16x32xf32>
    %24 = arith.addf %22, %23 : vector<16x32xf32>
    %c0_9 = arith.constant 0 : index
    %c0_10 = arith.constant 0 : index
    %25 = vector.load %arg1[%c0_9, %c0_10] : memref<2x8xf32, #tpu.memory_space<vmem>>, vector<2x8xf32>
    %c0_11 = arith.constant 0 : index
    %c0_12 = arith.constant 0 : index
    %c0_13 = arith.constant 0 : index
    %26 = vector.load %arg4[%c0_11, %c0_12, %c0_13] : memref<2x32x96xf32, #tpu.memory_space<vmem>>, vector<1x32x96xf32>
    %27 = vector.shape_cast %26 : vector<1x32x96xf32> to vector<32x96xf32>
    %cst_14 = arith.constant dense<0.000000e+00> : vector<16x96xf32>
    %28 = tpu.matmul %24, %27, %cst_14 {dimension_numbers = #tpu.dot_dimension_numbers<[1], [0], [0], [1], [0, 0, 1, 1], [], []>} : vector<16x32xf32>, vector<32x96xf32>, vector<16x96xf32> -> vector<16x96xf32>
    %c0_15 = arith.constant 0 : index
    %c0_16 = arith.constant 0 : index
    %c0_17 = arith.constant 0 : index
    %29 = vector.load %arg5[%c0_15, %c0_16, %c0_17] : memref<2x1x96xf32, #tpu.memory_space<vmem>>, vector<1x1x96xf32>
    %30 = vector.shape_cast %29 : vector<1x1x96xf32> to vector<1x96xf32>
    %31 = vector.broadcast %30 : vector<1x96xf32> to vector<16x96xf32>
    %32 = arith.addf %28, %31 : vector<16x96xf32>
    %33 = vector.extract_strided_slice %32 {offsets = [0, 0], sizes = [16, 32], strides = [1, 1]} : vector<16x96xf32> to vector<16x32xf32>
    %34 = vector.extract_strided_slice %32 {offsets = [0, 32], sizes = [16, 32], strides = [1, 1]} : vector<16x96xf32> to vector<16x32xf32>
    %35 = vector.extract_strided_slice %32 {offsets = [0, 64], sizes = [16, 32], strides = [1, 1]} : vector<16x96xf32> to vector<16x32xf32>
    %36 = vector.extract_strided_slice %25 {offsets = [0, 0], sizes = [1, 8], strides = [1, 1]} : vector<2x8xf32> to vector<1x8xf32>
    %37 = vector.extract_strided_slice %33 {offsets = [0, 0], sizes = [8, 8], strides = [1, 1]} : vector<16x32xf32> to vector<8x8xf32>
    %38 = vector.extract_strided_slice %34 {offsets = [0, 0], sizes = [8, 8], strides = [1, 1]} : vector<16x32xf32> to vector<8x8xf32>
    %39 = vector.extract_strided_slice %35 {offsets = [0, 0], sizes = [8, 8], strides = [1, 1]} : vector<16x32xf32> to vector<8x8xf32>
    %40 = tpu.transpose %38, [1, 0] : vector<8x8xf32> -> vector<8x8xf32>
    %cst_18 = arith.constant dense<0.000000e+00> : vector<8x8xf32>
    %41 = tpu.matmul %37, %40, %cst_18 {dimension_numbers = #tpu.dot_dimension_numbers<[1], [0], [0], [1], [0, 0, 1, 1], [], []>} : vector<8x8xf32>, vector<8x8xf32>, vector<8x8xf32> -> vector<8x8xf32>
    %cst_19 = arith.constant 0.353553385 : f32
    %42 = vector.broadcast %cst_19 : f32 to vector<8x8xf32>
    %43 = arith.mulf %41, %42 : vector<8x8xf32>
    %44 = vector.broadcast %36 : vector<1x8xf32> to vector<8x8xf32>
    %45 = arith.addf %43, %44 : vector<8x8xf32>
    %cst_20 = arith.constant dense<0xFF800000> : vector<8xf32>
    %46 = vector.multi_reduction <maximumf>, %45, %cst_20 [1] : vector<8x8xf32> to vector<8xf32>
    %47 = vector.shape_cast %46 : vector<8xf32> to vector<8x1xf32>
    %48 = vector.broadcast %47 : vector<8x1xf32> to vector<8x8xf32>
    %49 = arith.subf %45, %48 : vector<8x8xf32>
    %50 = math.exp %49 : vector<8x8xf32>
    %cst_21 = arith.constant dense<0.000000e+00> : vector<8xf32>
    %51 = vector.multi_reduction <add>, %50, %cst_21 [1] : vector<8x8xf32> to vector<8xf32>
    %52 = vector.shape_cast %51 : vector<8xf32> to vector<8x1xf32>
    %53 = tpu.reciprocal %52 {approx = true} : vector<8x1xf32> -> vector<8x1xf32>
    %54 = vector.broadcast %53 : vector<8x1xf32> to vector<8x8xf32>
    %55 = arith.mulf %50, %54 : vector<8x8xf32>
    %cst_22 = arith.constant dense<0.000000e+00> : vector<8x8xf32>
    %56 = tpu.matmul %55, %39, %cst_22 {dimension_numbers = #tpu.dot_dimension_numbers<[1], [0], [0], [1], [0, 0, 1, 1], [], []>} : vector<8x8xf32>, vector<8x8xf32>, vector<8x8xf32> -> vector<8x8xf32>
    %57 = vector.extract_strided_slice %33 {offsets = [0, 8], sizes = [8, 8], strides = [1, 1]} : vector<16x32xf32> to vector<8x8xf32>
    %58 = vector.extract_strided_slice %34 {offsets = [0, 8], sizes = [8, 8], strides = [1, 1]} : vector<16x32xf32> to vector<8x8xf32>
    %59 = vector.extract_strided_slice %35 {offsets = [0, 8], sizes = [8, 8], strides = [1, 1]} : vector<16x32xf32> to vector<8x8xf32>
    %60 = tpu.transpose %58, [1, 0] : vector<8x8xf32> -> vector<8x8xf32>
    %cst_23 = arith.constant dense<0.000000e+00> : vector<8x8xf32>
    %61 = tpu.matmul %57, %60, %cst_23 {dimension_numbers = #tpu.dot_dimension_numbers<[1], [0], [0], [1], [0, 0, 1, 1], [], []>} : vector<8x8xf32>, vector<8x8xf32>, vector<8x8xf32> -> vector<8x8xf32>
    %cst_24 = arith.constant 0.353553385 : f32
    %62 = vector.broadcast %cst_24 : f32 to vector<8x8xf32>
    %63 = arith.mulf %61, %62 : vector<8x8xf32>
    %64 = vector.broadcast %36 : vector<1x8xf32> to vector<8x8xf32>
    %65 = arith.addf %63, %64 : vector<8x8xf32>
    %cst_25 = arith.constant dense<0xFF800000> : vector<8xf32>
    %66 = vector.multi_reduction <maximumf>, %65, %cst_25 [1] : vector<8x8xf32> to vector<8xf32>
    %67 = vector.shape_cast %66 : vector<8xf32> to vector<8x1xf32>
    %68 = vector.broadcast %67 : vector<8x1xf32> to vector<8x8xf32>
    %69 = arith.subf %65, %68 : vector<8x8xf32>
    %70 = math.exp %69 : vector<8x8xf32>
    %cst_26 = arith.constant dense<0.000000e+00> : vector<8xf32>
    %71 = vector.multi_reduction <add>, %70, %cst_26 [1] : vector<8x8xf32> to vector<8xf32>
    %72 = vector.shape_cast %71 : vector<8xf32> to vector<8x1xf32>
    %73 = tpu.reciprocal %72 {approx = true} : vector<8x1xf32> -> vector<8x1xf32>
    %74 = vector.broadcast %73 : vector<8x1xf32> to vector<8x8xf32>
    %75 = arith.mulf %70, %74 : vector<8x8xf32>
    %cst_27 = arith.constant dense<0.000000e+00> : vector<8x8xf32>
    %76 = tpu.matmul %75, %59, %cst_27 {dimension_numbers = #tpu.dot_dimension_numbers<[1], [0], [0], [1], [0, 0, 1, 1], [], []>} : vector<8x8xf32>, vector<8x8xf32>, vector<8x8xf32> -> vector<8x8xf32>
    %77 = vector.extract_strided_slice %33 {offsets = [0, 16], sizes = [8, 8], strides = [1, 1]} : vector<16x32xf32> to vector<8x8xf32>
    %78 = vector.extract_strided_slice %34 {offsets = [0, 16], sizes = [8, 8], strides = [1, 1]} : vector<16x32xf32> to vector<8x8xf32>
    %79 = vector.extract_strided_slice %35 {offsets = [0, 16], sizes = [8, 8], strides = [1, 1]} : vector<16x32xf32> to vector<8x8xf32>
    %80 = tpu.transpose %78, [1, 0] : vector<8x8xf32> -> vector<8x8xf32>
    %cst_28 = arith.constant dense<0.000000e+00> : vector<8x8xf32>
    %81 = tpu.matmul %77, %80, %cst_28 {dimension_numbers = #tpu.dot_dimension_numbers<[1], [0], [0], [1], [0, 0, 1, 1], [], []>} : vector<8x8xf32>, vector<8x8xf32>, vector<8x8xf32> -> vector<8x8xf32>
    %cst_29 = arith.constant 0.353553385 : f32
    %82 = vector.broadcast %cst_29 : f32 to vector<8x8xf32>
    %83 = arith.mulf %81, %82 : vector<8x8xf32>
    %84 = vector.broadcast %36 : vector<1x8xf32> to vector<8x8xf32>
    %85 = arith.addf %83, %84 : vector<8x8xf32>
    %cst_30 = arith.constant dense<0xFF800000> : vector<8xf32>
    %86 = vector.multi_reduction <maximumf>, %85, %cst_30 [1] : vector<8x8xf32> to vector<8xf32>
    %87 = vector.shape_cast %86 : vector<8xf32> to vector<8x1xf32>
    %88 = vector.broadcast %87 : vector<8x1xf32> to vector<8x8xf32>
    %89 = arith.subf %85, %88 : vector<8x8xf32>
    %90 = math.exp %89 : vector<8x8xf32>
    %cst_31 = arith.constant dense<0.000000e+00> : vector<8xf32>
    %91 = vector.multi_reduction <add>, %90, %cst_31 [1] : vector<8x8xf32> to vector<8xf32>
    %92 = vector.shape_cast %91 : vector<8xf32> to vector<8x1xf32>
    %93 = tpu.reciprocal %92 {approx = true} : vector<8x1xf32> -> vector<8x1xf32>
    %94 = vector.broadcast %93 : vector<8x1xf32> to vector<8x8xf32>
    %95 = arith.mulf %90, %94 : vector<8x8xf32>
    %cst_32 = arith.constant dense<0.000000e+00> : vector<8x8xf32>
    %96 = tpu.matmul %95, %79, %cst_32 {dimension_numbers = #tpu.dot_dimension_numbers<[1], [0], [0], [1], [0, 0, 1, 1], [], []>} : vector<8x8xf32>, vector<8x8xf32>, vector<8x8xf32> -> vector<8x8xf32>
    %97 = vector.extract_strided_slice %33 {offsets = [0, 24], sizes = [8, 8], strides = [1, 1]} : vector<16x32xf32> to vector<8x8xf32>
    %98 = vector.extract_strided_slice %34 {offsets = [0, 24], sizes = [8, 8], strides = [1, 1]} : vector<16x32xf32> to vector<8x8xf32>
    %99 = vector.extract_strided_slice %35 {offsets = [0, 24], sizes = [8, 8], strides = [1, 1]} : vector<16x32xf32> to vector<8x8xf32>
    %100 = tpu.transpose %98, [1, 0] : vector<8x8xf32> -> vector<8x8xf32>
    %cst_33 = arith.constant dense<0.000000e+00> : vector<8x8xf32>
    %101 = tpu.matmul %97, %100, %cst_33 {dimension_numbers = #tpu.dot_dimension_numbers<[1], [0], [0], [1], [0, 0, 1, 1], [], []>} : vector<8x8xf32>, vector<8x8xf32>, vector<8x8xf32> -> vector<8x8xf32>
    %cst_34 = arith.constant 0.353553385 : f32
    %102 = vector.broadcast %cst_34 : f32 to vector<8x8xf32>
    %103 = arith.mulf %101, %102 : vector<8x8xf32>
    %104 = vector.broadcast %36 : vector<1x8xf32> to vector<8x8xf32>
    %105 = arith.addf %103, %104 : vector<8x8xf32>
    %cst_35 = arith.constant dense<0xFF800000> : vector<8xf32>
    %106 = vector.multi_reduction <maximumf>, %105, %cst_35 [1] : vector<8x8xf32> to vector<8xf32>
    %107 = vector.shape_cast %106 : vector<8xf32> to vector<8x1xf32>
    %108 = vector.broadcast %107 : vector<8x1xf32> to vector<8x8xf32>
    %109 = arith.subf %105, %108 : vector<8x8xf32>
    %110 = math.exp %109 : vector<8x8xf32>
    %cst_36 = arith.constant dense<0.000000e+00> : vector<8xf32>
    %111 = vector.multi_reduction <add>, %110, %cst_36 [1] : vector<8x8xf32> to vector<8xf32>
    %112 = vector.shape_cast %111 : vector<8xf32> to vector<8x1xf32>
    %113 = tpu.reciprocal %112 {approx = true} : vector<8x1xf32> -> vector<8x1xf32>
    %114 = vector.broadcast %113 : vector<8x1xf32> to vector<8x8xf32>
    %115 = arith.mulf %110, %114 : vector<8x8xf32>
    %cst_37 = arith.constant dense<0.000000e+00> : vector<8x8xf32>
    %116 = tpu.matmul %115, %99, %cst_37 {dimension_numbers = #tpu.dot_dimension_numbers<[1], [0], [0], [1], [0, 0, 1, 1], [], []>} : vector<8x8xf32>, vector<8x8xf32>, vector<8x8xf32> -> vector<8x8xf32>
    %117 = tpu.concatenate %56, %76, %96, %116 in 1 : vector<8x8xf32>, vector<8x8xf32>, vector<8x8xf32>, vector<8x8xf32> -> vector<8x32xf32>
    %118 = vector.extract_strided_slice %25 {offsets = [1, 0], sizes = [1, 8], strides = [1, 1]} : vector<2x8xf32> to vector<1x8xf32>
    %119 = vector.extract_strided_slice %33 {offsets = [8, 0], sizes = [8, 8], strides = [1, 1]} : vector<16x32xf32> to vector<8x8xf32>
    %120 = vector.extract_strided_slice %34 {offsets = [8, 0], sizes = [8, 8], strides = [1, 1]} : vector<16x32xf32> to vector<8x8xf32>
    %121 = vector.extract_strided_slice %35 {offsets = [8, 0], sizes = [8, 8], strides = [1, 1]} : vector<16x32xf32> to vector<8x8xf32>
    %122 = tpu.transpose %120, [1, 0] : vector<8x8xf32> -> vector<8x8xf32>
    %cst_38 = arith.constant dense<0.000000e+00> : vector<8x8xf32>
    %123 = tpu.matmul %119, %122, %cst_38 {dimension_numbers = #tpu.dot_dimension_numbers<[1], [0], [0], [1], [0, 0, 1, 1], [], []>} : vector<8x8xf32>, vector<8x8xf32>, vector<8x8xf32> -> vector<8x8xf32>
    %cst_39 = arith.constant 0.353553385 : f32
    %124 = vector.broadcast %cst_39 : f32 to vector<8x8xf32>
    %125 = arith.mulf %123, %124 : vector<8x8xf32>
    %126 = vector.broadcast %118 : vector<1x8xf32> to vector<8x8xf32>
    %127 = arith.addf %125, %126 : vector<8x8xf32>
    %cst_40 = arith.constant dense<0xFF800000> : vector<8xf32>
    %128 = vector.multi_reduction <maximumf>, %127, %cst_40 [1] : vector<8x8xf32> to vector<8xf32>
    %129 = vector.shape_cast %128 : vector<8xf32> to vector<8x1xf32>
    %130 = vector.broadcast %129 : vector<8x1xf32> to vector<8x8xf32>
    %131 = arith.subf %127, %130 : vector<8x8xf32>
    %132 = math.exp %131 : vector<8x8xf32>
    %cst_41 = arith.constant dense<0.000000e+00> : vector<8xf32>
    %133 = vector.multi_reduction <add>, %132, %cst_41 [1] : vector<8x8xf32> to vector<8xf32>
    %134 = vector.shape_cast %133 : vector<8xf32> to vector<8x1xf32>
    %135 = tpu.reciprocal %134 {approx = true} : vector<8x1xf32> -> vector<8x1xf32>
    %136 = vector.broadcast %135 : vector<8x1xf32> to vector<8x8xf32>
    %137 = arith.mulf %132, %136 : vector<8x8xf32>
    %cst_42 = arith.constant dense<0.000000e+00> : vector<8x8xf32>
    %138 = tpu.matmul %137, %121, %cst_42 {dimension_numbers = #tpu.dot_dimension_numbers<[1], [0], [0], [1], [0, 0, 1, 1], [], []>} : vector<8x8xf32>, vector<8x8xf32>, vector<8x8xf32> -> vector<8x8xf32>
    %139 = vector.extract_strided_slice %33 {offsets = [8, 8], sizes = [8, 8], strides = [1, 1]} : vector<16x32xf32> to vector<8x8xf32>
    %140 = vector.extract_strided_slice %34 {offsets = [8, 8], sizes = [8, 8], strides = [1, 1]} : vector<16x32xf32> to vector<8x8xf32>
    %141 = vector.extract_strided_slice %35 {offsets = [8, 8], sizes = [8, 8], strides = [1, 1]} : vector<16x32xf32> to vector<8x8xf32>
    %142 = tpu.transpose %140, [1, 0] : vector<8x8xf32> -> vector<8x8xf32>
    %cst_43 = arith.constant dense<0.000000e+00> : vector<8x8xf32>
    %143 = tpu.matmul %139, %142, %cst_43 {dimension_numbers = #tpu.dot_dimension_numbers<[1], [0], [0], [1], [0, 0, 1, 1], [], []>} : vector<8x8xf32>, vector<8x8xf32>, vector<8x8xf32> -> vector<8x8xf32>
    %cst_44 = arith.constant 0.353553385 : f32
    %144 = vector.broadcast %cst_44 : f32 to vector<8x8xf32>
    %145 = arith.mulf %143, %144 : vector<8x8xf32>
    %146 = vector.broadcast %118 : vector<1x8xf32> to vector<8x8xf32>
    %147 = arith.addf %145, %146 : vector<8x8xf32>
    %cst_45 = arith.constant dense<0xFF800000> : vector<8xf32>
    %148 = vector.multi_reduction <maximumf>, %147, %cst_45 [1] : vector<8x8xf32> to vector<8xf32>
    %149 = vector.shape_cast %148 : vector<8xf32> to vector<8x1xf32>
    %150 = vector.broadcast %149 : vector<8x1xf32> to vector<8x8xf32>
    %151 = arith.subf %147, %150 : vector<8x8xf32>
    %152 = math.exp %151 : vector<8x8xf32>
    %cst_46 = arith.constant dense<0.000000e+00> : vector<8xf32>
    %153 = vector.multi_reduction <add>, %152, %cst_46 [1] : vector<8x8xf32> to vector<8xf32>
    %154 = vector.shape_cast %153 : vector<8xf32> to vector<8x1xf32>
    %155 = tpu.reciprocal %154 {approx = true} : vector<8x1xf32> -> vector<8x1xf32>
    %156 = vector.broadcast %155 : vector<8x1xf32> to vector<8x8xf32>
    %157 = arith.mulf %152, %156 : vector<8x8xf32>
    %cst_47 = arith.constant dense<0.000000e+00> : vector<8x8xf32>
    %158 = tpu.matmul %157, %141, %cst_47 {dimension_numbers = #tpu.dot_dimension_numbers<[1], [0], [0], [1], [0, 0, 1, 1], [], []>} : vector<8x8xf32>, vector<8x8xf32>, vector<8x8xf32> -> vector<8x8xf32>
    %159 = vector.extract_strided_slice %33 {offsets = [8, 16], sizes = [8, 8], strides = [1, 1]} : vector<16x32xf32> to vector<8x8xf32>
    %160 = vector.extract_strided_slice %34 {offsets = [8, 16], sizes = [8, 8], strides = [1, 1]} : vector<16x32xf32> to vector<8x8xf32>
    %161 = vector.extract_strided_slice %35 {offsets = [8, 16], sizes = [8, 8], strides = [1, 1]} : vector<16x32xf32> to vector<8x8xf32>
    %162 = tpu.transpose %160, [1, 0] : vector<8x8xf32> -> vector<8x8xf32>
    %cst_48 = arith.constant dense<0.000000e+00> : vector<8x8xf32>
    %163 = tpu.matmul %159, %162, %cst_48 {dimension_numbers = #tpu.dot_dimension_numbers<[1], [0], [0], [1], [0, 0, 1, 1], [], []>} : vector<8x8xf32>, vector<8x8xf32>, vector<8x8xf32> -> vector<8x8xf32>
    %cst_49 = arith.constant 0.353553385 : f32
    %164 = vector.broadcast %cst_49 : f32 to vector<8x8xf32>
    %165 = arith.mulf %163, %164 : vector<8x8xf32>
    %166 = vector.broadcast %118 : vector<1x8xf32> to vector<8x8xf32>
    %167 = arith.addf %165, %166 : vector<8x8xf32>
    %cst_50 = arith.constant dense<0xFF800000> : vector<8xf32>
    %168 = vector.multi_reduction <maximumf>, %167, %cst_50 [1] : vector<8x8xf32> to vector<8xf32>
    %169 = vector.shape_cast %168 : vector<8xf32> to vector<8x1xf32>
    %170 = vector.broadcast %169 : vector<8x1xf32> to vector<8x8xf32>
    %171 = arith.subf %167, %170 : vector<8x8xf32>
    %172 = math.exp %171 : vector<8x8xf32>
    %cst_51 = arith.constant dense<0.000000e+00> : vector<8xf32>
    %173 = vector.multi_reduction <add>, %172, %cst_51 [1] : vector<8x8xf32> to vector<8xf32>
    %174 = vector.shape_cast %173 : vector<8xf32> to vector<8x1xf32>
    %175 = tpu.reciprocal %174 {approx = true} : vector<8x1xf32> -> vector<8x1xf32>
    %176 = vector.broadcast %175 : vector<8x1xf32> to vector<8x8xf32>
    %177 = arith.mulf %172, %176 : vector<8x8xf32>
    %cst_52 = arith.constant dense<0.000000e+00> : vector<8x8xf32>
    %178 = tpu.matmul %177, %161, %cst_52 {dimension_numbers = #tpu.dot_dimension_numbers<[1], [0], [0], [1], [0, 0, 1, 1], [], []>} : vector<8x8xf32>, vector<8x8xf32>, vector<8x8xf32> -> vector<8x8xf32>
    %179 = vector.extract_strided_slice %33 {offsets = [8, 24], sizes = [8, 8], strides = [1, 1]} : vector<16x32xf32> to vector<8x8xf32>
    %180 = vector.extract_strided_slice %34 {offsets = [8, 24], sizes = [8, 8], strides = [1, 1]} : vector<16x32xf32> to vector<8x8xf32>
    %181 = vector.extract_strided_slice %35 {offsets = [8, 24], sizes = [8, 8], strides = [1, 1]} : vector<16x32xf32> to vector<8x8xf32>
    %182 = tpu.transpose %180, [1, 0] : vector<8x8xf32> -> vector<8x8xf32>
    %cst_53 = arith.constant dense<0.000000e+00> : vector<8x8xf32>
    %183 = tpu.matmul %179, %182, %cst_53 {dimension_numbers = #tpu.dot_dimension_numbers<[1], [0], [0], [1], [0, 0, 1, 1], [], []>} : vector<8x8xf32>, vector<8x8xf32>, vector<8x8xf32> -> vector<8x8xf32>
    %cst_54 = arith.constant 0.353553385 : f32
    %184 = vector.broadcast %cst_54 : f32 to vector<8x8xf32>
    %185 = arith.mulf %183, %184 : vector<8x8xf32>
    %186 = vector.broadcast %118 : vector<1x8xf32> to vector<8x8xf32>
    %187 = arith.addf %185, %186 : vector<8x8xf32>
    %cst_55 = arith.constant dense<0xFF800000> : vector<8xf32>
    %188 = vector.multi_reduction <maximumf>, %187, %cst_55 [1] : vector<8x8xf32> to vector<8xf32>
    %189 = vector.shape_cast %188 : vector<8xf32> to vector<8x1xf32>
    %190 = vector.broadcast %189 : vector<8x1xf32> to vector<8x8xf32>
    %191 = arith.subf %187, %190 : vector<8x8xf32>
    %192 = math.exp %191 : vector<8x8xf32>
    %cst_56 = arith.constant dense<0.000000e+00> : vector<8xf32>
    %193 = vector.multi_reduction <add>, %192, %cst_56 [1] : vector<8x8xf32> to vector<8xf32>
    %194 = vector.shape_cast %193 : vector<8xf32> to vector<8x1xf32>
    %195 = tpu.reciprocal %194 {approx = true} : vector<8x1xf32> -> vector<8x1xf32>
    %196 = vector.broadcast %195 : vector<8x1xf32> to vector<8x8xf32>
    %197 = arith.mulf %192, %196 : vector<8x8xf32>
    %cst_57 = arith.constant dense<0.000000e+00> : vector<8x8xf32>
    %198 = tpu.matmul %197, %181, %cst_57 {dimension_numbers = #tpu.dot_dimension_numbers<[1], [0], [0], [1], [0, 0, 1, 1], [], []>} : vector<8x8xf32>, vector<8x8xf32>, vector<8x8xf32> -> vector<8x8xf32>
    %199 = tpu.concatenate %138, %158, %178, %198 in 1 : vector<8x8xf32>, vector<8x8xf32>, vector<8x8xf32>, vector<8x8xf32> -> vector<8x32xf32>
    %200 = tpu.concatenate %117, %199 in 0 : vector<8x32xf32>, vector<8x32xf32> -> vector<16x32xf32>
    %c0_58 = arith.constant 0 : index
    %c0_59 = arith.constant 0 : index
    %c0_60 = arith.constant 0 : index
    %201 = vector.load %arg6[%c0_58, %c0_59, %c0_60] : memref<2x32x32xf32, #tpu.memory_space<vmem>>, vector<1x32x32xf32>
    %202 = vector.shape_cast %201 : vector<1x32x32xf32> to vector<32x32xf32>
    %cst_61 = arith.constant dense<0.000000e+00> : vector<16x32xf32>
    %203 = tpu.matmul %200, %202, %cst_61 {dimension_numbers = #tpu.dot_dimension_numbers<[1], [0], [0], [1], [0, 0, 1, 1], [], []>} : vector<16x32xf32>, vector<32x32xf32>, vector<16x32xf32> -> vector<16x32xf32>
    %c0_62 = arith.constant 0 : index
    %c0_63 = arith.constant 0 : index
    %c0_64 = arith.constant 0 : index
    %204 = vector.load %arg7[%c0_62, %c0_63, %c0_64] : memref<2x1x32xf32, #tpu.memory_space<vmem>>, vector<1x1x32xf32>
    %205 = vector.shape_cast %204 : vector<1x1x32xf32> to vector<1x32xf32>
    %206 = vector.broadcast %205 : vector<1x32xf32> to vector<16x32xf32>
    %207 = arith.addf %203, %206 : vector<16x32xf32>
    %208 = arith.addf %24, %207 : vector<16x32xf32>
    %c0_65 = arith.constant 0 : index
    %c0_66 = arith.constant 0 : index
    %c0_67 = arith.constant 0 : index
    %209 = vector.load %arg8[%c0_65, %c0_66, %c0_67] : memref<2x1x32xf32, #tpu.memory_space<vmem>>, vector<1x1x32xf32>
    %210 = vector.shape_cast %209 : vector<1x1x32xf32> to vector<1x32xf32>
    %c0_68 = arith.constant 0 : index
    %c0_69 = arith.constant 0 : index
    %c0_70 = arith.constant 0 : index
    %211 = vector.load %arg9[%c0_68, %c0_69, %c0_70] : memref<2x1x32xf32, #tpu.memory_space<vmem>>, vector<1x1x32xf32>
    %212 = vector.shape_cast %211 : vector<1x1x32xf32> to vector<1x32xf32>
    %cst_71 = arith.constant dense<0.000000e+00> : vector<16xf32>
    %213 = vector.multi_reduction <add>, %208, %cst_71 [1] : vector<16x32xf32> to vector<16xf32>
    %214 = vector.shape_cast %213 : vector<16xf32> to vector<16x1xf32>
    %cst_72 = arith.constant 3.200000e+01 : f32
    %215 = vector.broadcast %cst_72 : f32 to vector<16x1xf32>
    %216 = arith.divf %214, %215 : vector<16x1xf32>
    %217 = vector.broadcast %216 : vector<16x1xf32> to vector<16x32xf32>
    %218 = arith.subf %208, %217 : vector<16x32xf32>
    %219 = arith.mulf %218, %218 : vector<16x32xf32>
    %cst_73 = arith.constant dense<0.000000e+00> : vector<16xf32>
    %220 = vector.multi_reduction <add>, %219, %cst_73 [1] : vector<16x32xf32> to vector<16xf32>
    %221 = vector.shape_cast %220 : vector<16xf32> to vector<16x1xf32>
    %cst_74 = arith.constant 3.200000e+01 : f32
    %222 = vector.broadcast %cst_74 : f32 to vector<16x1xf32>
    %223 = arith.divf %221, %222 : vector<16x1xf32>
    %224 = vector.broadcast %216 : vector<16x1xf32> to vector<16x32xf32>
    %225 = arith.subf %208, %224 : vector<16x32xf32>
    %cst_75 = arith.constant 9.99999996E-13 : f32
    %226 = vector.broadcast %cst_75 : f32 to vector<16x1xf32>
    %227 = arith.addf %223, %226 : vector<16x1xf32>
    %228 = math.rsqrt %227 : vector<16x1xf32>
    %229 = vector.broadcast %228 : vector<16x1xf32> to vector<16x32xf32>
    %230 = arith.mulf %225, %229 : vector<16x32xf32>
    %231 = vector.broadcast %210 : vector<1x32xf32> to vector<16x32xf32>
    %232 = arith.mulf %230, %231 : vector<16x32xf32>
    %233 = vector.broadcast %212 : vector<1x32xf32> to vector<16x32xf32>
    %234 = arith.addf %232, %233 : vector<16x32xf32>
    %c0_76 = arith.constant 0 : index
    %c0_77 = arith.constant 0 : index
    %c0_78 = arith.constant 0 : index
    %235 = vector.load %arg10[%c0_76, %c0_77, %c0_78] : memref<2x32x64xf32, #tpu.memory_space<vmem>>, vector<1x32x64xf32>
    %236 = vector.shape_cast %235 : vector<1x32x64xf32> to vector<32x64xf32>
    %cst_79 = arith.constant dense<0.000000e+00> : vector<16x64xf32>
    %237 = tpu.matmul %234, %236, %cst_79 {dimension_numbers = #tpu.dot_dimension_numbers<[1], [0], [0], [1], [0, 0, 1, 1], [], []>} : vector<16x32xf32>, vector<32x64xf32>, vector<16x64xf32> -> vector<16x64xf32>
    %c0_80 = arith.constant 0 : index
    %c0_81 = arith.constant 0 : index
    %c0_82 = arith.constant 0 : index
    %238 = vector.load %arg11[%c0_80, %c0_81, %c0_82] : memref<2x1x64xf32, #tpu.memory_space<vmem>>, vector<1x1x64xf32>
    %239 = vector.shape_cast %238 : vector<1x1x64xf32> to vector<1x64xf32>
    %240 = vector.broadcast %239 : vector<1x64xf32> to vector<16x64xf32>
    %241 = arith.addf %237, %240 : vector<16x64xf32>
    %242 = arith.mulf %241, %241 : vector<16x64xf32>
    %243 = arith.mulf %241, %242 : vector<16x64xf32>
    %cst_83 = arith.constant 4.471500e-02 : f32
    %244 = vector.broadcast %cst_83 : f32 to vector<16x64xf32>
    %245 = arith.mulf %244, %243 : vector<16x64xf32>
    %246 = arith.addf %241, %245 : vector<16x64xf32>
    %cst_84 = arith.constant 0.797884583 : f32
    %247 = vector.broadcast %cst_84 : f32 to vector<16x64xf32>
    %248 = arith.mulf %247, %246 : vector<16x64xf32>
    %249 = math.tanh %248 : vector<16x64xf32>
    %cst_85 = arith.constant 1.000000e+00 : f32
    %250 = vector.broadcast %cst_85 : f32 to vector<16x64xf32>
    %251 = arith.addf %250, %249 : vector<16x64xf32>
    %cst_86 = arith.constant 5.000000e-01 : f32
    %252 = vector.broadcast %cst_86 : f32 to vector<16x64xf32>
    %253 = arith.mulf %252, %251 : vector<16x64xf32>
    %254 = arith.mulf %241, %253 : vector<16x64xf32>
    %c0_87 = arith.constant 0 : index
    %c0_88 = arith.constant 0 : index
    %c0_89 = arith.constant 0 : index
    %255 = vector.load %arg12[%c0_87, %c0_88, %c0_89] : memref<2x64x32xf32, #tpu.memory_space<vmem>>, vector<1x64x32xf32>
    %256 = vector.shape_cast %255 : vector<1x64x32xf32> to vector<64x32xf32>
    %cst_90 = arith.constant dense<0.000000e+00> : vector<16x32xf32>
    %257 = tpu.matmul %254, %256, %cst_90 {dimension_numbers = #tpu.dot_dimension_numbers<[1], [0], [0], [1], [0, 0, 1, 1], [], []>} : vector<16x64xf32>, vector<64x32xf32>, vector<16x32xf32> -> vector<16x32xf32>
    %c0_91 = arith.constant 0 : index
    %c0_92 = arith.constant 0 : index
    %c0_93 = arith.constant 0 : index
    %258 = vector.load %arg13[%c0_91, %c0_92, %c0_93] : memref<2x1x32xf32, #tpu.memory_space<vmem>>, vector<1x1x32xf32>
    %259 = vector.shape_cast %258 : vector<1x1x32xf32> to vector<1x32xf32>
    %260 = vector.broadcast %259 : vector<1x32xf32> to vector<16x32xf32>
    %261 = arith.addf %257, %260 : vector<16x32xf32>
    %262 = arith.addf %234, %261 : vector<16x32xf32>
    %c0_94 = arith.constant 0 : index
    %c0_95 = arith.constant 0 : index
    %c0_96 = arith.constant 0 : index
    %263 = vector.load %arg14[%c0_94, %c0_95, %c0_96] : memref<2x1x32xf32, #tpu.memory_space<vmem>>, vector<1x1x32xf32>
    %264 = vector.shape_cast %263 : vector<1x1x32xf32> to vector<1x32xf32>
    %c0_97 = arith.constant 0 : index
    %c0_98 = arith.constant 0 : index
    %c0_99 = arith.constant 0 : index
    %265 = vector.load %arg15[%c0_97, %c0_98, %c0_99] : memref<2x1x32xf32, #tpu.memory_space<vmem>>, vector<1x1x32xf32>
    %266 = vector.shape_cast %265 : vector<1x1x32xf32> to vector<1x32xf32>
    %cst_100 = arith.constant dense<0.000000e+00> : vector<16xf32>
    %267 = vector.multi_reduction <add>, %262, %cst_100 [1] : vector<16x32xf32> to vector<16xf32>
    %268 = vector.shape_cast %267 : vector<16xf32> to vector<16x1xf32>
    %cst_101 = arith.constant 3.200000e+01 : f32
    %269 = vector.broadcast %cst_101 : f32 to vector<16x1xf32>
    %270 = arith.divf %268, %269 : vector<16x1xf32>
    %271 = vector.broadcast %270 : vector<16x1xf32> to vector<16x32xf32>
    %272 = arith.subf %262, %271 : vector<16x32xf32>
    %273 = arith.mulf %272, %272 : vector<16x32xf32>
    %cst_102 = arith.constant dense<0.000000e+00> : vector<16xf32>
    %274 = vector.multi_reduction <add>, %273, %cst_102 [1] : vector<16x32xf32> to vector<16xf32>
    %275 = vector.shape_cast %274 : vector<16xf32> to vector<16x1xf32>
    %cst_103 = arith.constant 3.200000e+01 : f32
    %276 = vector.broadcast %cst_103 : f32 to vector<16x1xf32>
    %277 = arith.divf %275, %276 : vector<16x1xf32>
    %278 = vector.broadcast %270 : vector<16x1xf32> to vector<16x32xf32>
    %279 = arith.subf %262, %278 : vector<16x32xf32>
    %cst_104 = arith.constant 9.99999996E-13 : f32
    %280 = vector.broadcast %cst_104 : f32 to vector<16x1xf32>
    %281 = arith.addf %277, %280 : vector<16x1xf32>
    %282 = math.rsqrt %281 : vector<16x1xf32>
    %283 = vector.broadcast %282 : vector<16x1xf32> to vector<16x32xf32>
    %284 = arith.mulf %279, %283 : vector<16x32xf32>
    %285 = vector.broadcast %264 : vector<1x32xf32> to vector<16x32xf32>
    %286 = arith.mulf %284, %285 : vector<16x32xf32>
    %287 = vector.broadcast %266 : vector<1x32xf32> to vector<16x32xf32>
    %288 = arith.addf %286, %287 : vector<16x32xf32>
    %c1 = arith.constant 1 : index
    %c0_105 = arith.constant 0 : index
    %c0_106 = arith.constant 0 : index
    %289 = vector.load %arg4[%c1, %c0_105, %c0_106] : memref<2x32x96xf32, #tpu.memory_space<vmem>>, vector<1x32x96xf32>
    %290 = vector.shape_cast %289 : vector<1x32x96xf32> to vector<32x96xf32>
    %cst_107 = arith.constant dense<0.000000e+00> : vector<16x96xf32>
    %291 = tpu.matmul %288, %290, %cst_107 {dimension_numbers = #tpu.dot_dimension_numbers<[1], [0], [0], [1], [0, 0, 1, 1], [], []>} : vector<16x32xf32>, vector<32x96xf32>, vector<16x96xf32> -> vector<16x96xf32>
    %c1_108 = arith.constant 1 : index
    %c0_109 = arith.constant 0 : index
    %c0_110 = arith.constant 0 : index
    %292 = vector.load %arg5[%c1_108, %c0_109, %c0_110] : memref<2x1x96xf32, #tpu.memory_space<vmem>>, vector<1x1x96xf32>
    %293 = vector.shape_cast %292 : vector<1x1x96xf32> to vector<1x96xf32>
    %294 = vector.broadcast %293 : vector<1x96xf32> to vector<16x96xf32>
    %295 = arith.addf %291, %294 : vector<16x96xf32>
    %296 = vector.extract_strided_slice %295 {offsets = [0, 0], sizes = [16, 32], strides = [1, 1]} : vector<16x96xf32> to vector<16x32xf32>
    %297 = vector.extract_strided_slice %295 {offsets = [0, 32], sizes = [16, 32], strides = [1, 1]} : vector<16x96xf32> to vector<16x32xf32>
    %298 = vector.extract_strided_slice %295 {offsets = [0, 64], sizes = [16, 32], strides = [1, 1]} : vector<16x96xf32> to vector<16x32xf32>
    %299 = vector.extract_strided_slice %25 {offsets = [0, 0], sizes = [1, 8], strides = [1, 1]} : vector<2x8xf32> to vector<1x8xf32>
    %300 = vector.extract_strided_slice %296 {offsets = [0, 0], sizes = [8, 8], strides = [1, 1]} : vector<16x32xf32> to vector<8x8xf32>
    %301 = vector.extract_strided_slice %297 {offsets = [0, 0], sizes = [8, 8], strides = [1, 1]} : vector<16x32xf32> to vector<8x8xf32>
    %302 = vector.extract_strided_slice %298 {offsets = [0, 0], sizes = [8, 8], strides = [1, 1]} : vector<16x32xf32> to vector<8x8xf32>
    %303 = tpu.transpose %301, [1, 0] : vector<8x8xf32> -> vector<8x8xf32>
    %cst_111 = arith.constant dense<0.000000e+00> : vector<8x8xf32>
    %304 = tpu.matmul %300, %303, %cst_111 {dimension_numbers = #tpu.dot_dimension_numbers<[1], [0], [0], [1], [0, 0, 1, 1], [], []>} : vector<8x8xf32>, vector<8x8xf32>, vector<8x8xf32> -> vector<8x8xf32>
    %cst_112 = arith.constant 0.353553385 : f32
    %305 = vector.broadcast %cst_112 : f32 to vector<8x8xf32>
    %306 = arith.mulf %304, %305 : vector<8x8xf32>
    %307 = vector.broadcast %299 : vector<1x8xf32> to vector<8x8xf32>
    %308 = arith.addf %306, %307 : vector<8x8xf32>
    %cst_113 = arith.constant dense<0xFF800000> : vector<8xf32>
    %309 = vector.multi_reduction <maximumf>, %308, %cst_113 [1] : vector<8x8xf32> to vector<8xf32>
    %310 = vector.shape_cast %309 : vector<8xf32> to vector<8x1xf32>
    %311 = vector.broadcast %310 : vector<8x1xf32> to vector<8x8xf32>
    %312 = arith.subf %308, %311 : vector<8x8xf32>
    %313 = math.exp %312 : vector<8x8xf32>
    %cst_114 = arith.constant dense<0.000000e+00> : vector<8xf32>
    %314 = vector.multi_reduction <add>, %313, %cst_114 [1] : vector<8x8xf32> to vector<8xf32>
    %315 = vector.shape_cast %314 : vector<8xf32> to vector<8x1xf32>
    %316 = tpu.reciprocal %315 {approx = true} : vector<8x1xf32> -> vector<8x1xf32>
    %317 = vector.broadcast %316 : vector<8x1xf32> to vector<8x8xf32>
    %318 = arith.mulf %313, %317 : vector<8x8xf32>
    %cst_115 = arith.constant dense<0.000000e+00> : vector<8x8xf32>
    %319 = tpu.matmul %318, %302, %cst_115 {dimension_numbers = #tpu.dot_dimension_numbers<[1], [0], [0], [1], [0, 0, 1, 1], [], []>} : vector<8x8xf32>, vector<8x8xf32>, vector<8x8xf32> -> vector<8x8xf32>
    %320 = vector.extract_strided_slice %296 {offsets = [0, 8], sizes = [8, 8], strides = [1, 1]} : vector<16x32xf32> to vector<8x8xf32>
    %321 = vector.extract_strided_slice %297 {offsets = [0, 8], sizes = [8, 8], strides = [1, 1]} : vector<16x32xf32> to vector<8x8xf32>
    %322 = vector.extract_strided_slice %298 {offsets = [0, 8], sizes = [8, 8], strides = [1, 1]} : vector<16x32xf32> to vector<8x8xf32>
    %323 = tpu.transpose %321, [1, 0] : vector<8x8xf32> -> vector<8x8xf32>
    %cst_116 = arith.constant dense<0.000000e+00> : vector<8x8xf32>
    %324 = tpu.matmul %320, %323, %cst_116 {dimension_numbers = #tpu.dot_dimension_numbers<[1], [0], [0], [1], [0, 0, 1, 1], [], []>} : vector<8x8xf32>, vector<8x8xf32>, vector<8x8xf32> -> vector<8x8xf32>
    %cst_117 = arith.constant 0.353553385 : f32
    %325 = vector.broadcast %cst_117 : f32 to vector<8x8xf32>
    %326 = arith.mulf %324, %325 : vector<8x8xf32>
    %327 = vector.broadcast %299 : vector<1x8xf32> to vector<8x8xf32>
    %328 = arith.addf %326, %327 : vector<8x8xf32>
    %cst_118 = arith.constant dense<0xFF800000> : vector<8xf32>
    %329 = vector.multi_reduction <maximumf>, %328, %cst_118 [1] : vector<8x8xf32> to vector<8xf32>
    %330 = vector.shape_cast %329 : vector<8xf32> to vector<8x1xf32>
    %331 = vector.broadcast %330 : vector<8x1xf32> to vector<8x8xf32>
    %332 = arith.subf %328, %331 : vector<8x8xf32>
    %333 = math.exp %332 : vector<8x8xf32>
    %cst_119 = arith.constant dense<0.000000e+00> : vector<8xf32>
    %334 = vector.multi_reduction <add>, %333, %cst_119 [1] : vector<8x8xf32> to vector<8xf32>
    %335 = vector.shape_cast %334 : vector<8xf32> to vector<8x1xf32>
    %336 = tpu.reciprocal %335 {approx = true} : vector<8x1xf32> -> vector<8x1xf32>
    %337 = vector.broadcast %336 : vector<8x1xf32> to vector<8x8xf32>
    %338 = arith.mulf %333, %337 : vector<8x8xf32>
    %cst_120 = arith.constant dense<0.000000e+00> : vector<8x8xf32>
    %339 = tpu.matmul %338, %322, %cst_120 {dimension_numbers = #tpu.dot_dimension_numbers<[1], [0], [0], [1], [0, 0, 1, 1], [], []>} : vector<8x8xf32>, vector<8x8xf32>, vector<8x8xf32> -> vector<8x8xf32>
    %340 = vector.extract_strided_slice %296 {offsets = [0, 16], sizes = [8, 8], strides = [1, 1]} : vector<16x32xf32> to vector<8x8xf32>
    %341 = vector.extract_strided_slice %297 {offsets = [0, 16], sizes = [8, 8], strides = [1, 1]} : vector<16x32xf32> to vector<8x8xf32>
    %342 = vector.extract_strided_slice %298 {offsets = [0, 16], sizes = [8, 8], strides = [1, 1]} : vector<16x32xf32> to vector<8x8xf32>
    %343 = tpu.transpose %341, [1, 0] : vector<8x8xf32> -> vector<8x8xf32>
    %cst_121 = arith.constant dense<0.000000e+00> : vector<8x8xf32>
    %344 = tpu.matmul %340, %343, %cst_121 {dimension_numbers = #tpu.dot_dimension_numbers<[1], [0], [0], [1], [0, 0, 1, 1], [], []>} : vector<8x8xf32>, vector<8x8xf32>, vector<8x8xf32> -> vector<8x8xf32>
    %cst_122 = arith.constant 0.353553385 : f32
    %345 = vector.broadcast %cst_122 : f32 to vector<8x8xf32>
    %346 = arith.mulf %344, %345 : vector<8x8xf32>
    %347 = vector.broadcast %299 : vector<1x8xf32> to vector<8x8xf32>
    %348 = arith.addf %346, %347 : vector<8x8xf32>
    %cst_123 = arith.constant dense<0xFF800000> : vector<8xf32>
    %349 = vector.multi_reduction <maximumf>, %348, %cst_123 [1] : vector<8x8xf32> to vector<8xf32>
    %350 = vector.shape_cast %349 : vector<8xf32> to vector<8x1xf32>
    %351 = vector.broadcast %350 : vector<8x1xf32> to vector<8x8xf32>
    %352 = arith.subf %348, %351 : vector<8x8xf32>
    %353 = math.exp %352 : vector<8x8xf32>
    %cst_124 = arith.constant dense<0.000000e+00> : vector<8xf32>
    %354 = vector.multi_reduction <add>, %353, %cst_124 [1] : vector<8x8xf32> to vector<8xf32>
    %355 = vector.shape_cast %354 : vector<8xf32> to vector<8x1xf32>
    %356 = tpu.reciprocal %355 {approx = true} : vector<8x1xf32> -> vector<8x1xf32>
    %357 = vector.broadcast %356 : vector<8x1xf32> to vector<8x8xf32>
    %358 = arith.mulf %353, %357 : vector<8x8xf32>
    %cst_125 = arith.constant dense<0.000000e+00> : vector<8x8xf32>
    %359 = tpu.matmul %358, %342, %cst_125 {dimension_numbers = #tpu.dot_dimension_numbers<[1], [0], [0], [1], [0, 0, 1, 1], [], []>} : vector<8x8xf32>, vector<8x8xf32>, vector<8x8xf32> -> vector<8x8xf32>
    %360 = vector.extract_strided_slice %296 {offsets = [0, 24], sizes = [8, 8], strides = [1, 1]} : vector<16x32xf32> to vector<8x8xf32>
    %361 = vector.extract_strided_slice %297 {offsets = [0, 24], sizes = [8, 8], strides = [1, 1]} : vector<16x32xf32> to vector<8x8xf32>
    %362 = vector.extract_strided_slice %298 {offsets = [0, 24], sizes = [8, 8], strides = [1, 1]} : vector<16x32xf32> to vector<8x8xf32>
    %363 = tpu.transpose %361, [1, 0] : vector<8x8xf32> -> vector<8x8xf32>
    %cst_126 = arith.constant dense<0.000000e+00> : vector<8x8xf32>
    %364 = tpu.matmul %360, %363, %cst_126 {dimension_numbers = #tpu.dot_dimension_numbers<[1], [0], [0], [1], [0, 0, 1, 1], [], []>} : vector<8x8xf32>, vector<8x8xf32>, vector<8x8xf32> -> vector<8x8xf32>
    %cst_127 = arith.constant 0.353553385 : f32
    %365 = vector.broadcast %cst_127 : f32 to vector<8x8xf32>
    %366 = arith.mulf %364, %365 : vector<8x8xf32>
    %367 = vector.broadcast %299 : vector<1x8xf32> to vector<8x8xf32>
    %368 = arith.addf %366, %367 : vector<8x8xf32>
    %cst_128 = arith.constant dense<0xFF800000> : vector<8xf32>
    %369 = vector.multi_reduction <maximumf>, %368, %cst_128 [1] : vector<8x8xf32> to vector<8xf32>
    %370 = vector.shape_cast %369 : vector<8xf32> to vector<8x1xf32>
    %371 = vector.broadcast %370 : vector<8x1xf32> to vector<8x8xf32>
    %372 = arith.subf %368, %371 : vector<8x8xf32>
    %373 = math.exp %372 : vector<8x8xf32>
    %cst_129 = arith.constant dense<0.000000e+00> : vector<8xf32>
    %374 = vector.multi_reduction <add>, %373, %cst_129 [1] : vector<8x8xf32> to vector<8xf32>
    %375 = vector.shape_cast %374 : vector<8xf32> to vector<8x1xf32>
    %376 = tpu.reciprocal %375 {approx = true} : vector<8x1xf32> -> vector<8x1xf32>
    %377 = vector.broadcast %376 : vector<8x1xf32> to vector<8x8xf32>
    %378 = arith.mulf %373, %377 : vector<8x8xf32>
    %cst_130 = arith.constant dense<0.000000e+00> : vector<8x8xf32>
    %379 = tpu.matmul %378, %362, %cst_130 {dimension_numbers = #tpu.dot_dimension_numbers<[1], [0], [0], [1], [0, 0, 1, 1], [], []>} : vector<8x8xf32>, vector<8x8xf32>, vector<8x8xf32> -> vector<8x8xf32>
    %380 = tpu.concatenate %319, %339, %359, %379 in 1 : vector<8x8xf32>, vector<8x8xf32>, vector<8x8xf32>, vector<8x8xf32> -> vector<8x32xf32>
    %381 = vector.extract_strided_slice %25 {offsets = [1, 0], sizes = [1, 8], strides = [1, 1]} : vector<2x8xf32> to vector<1x8xf32>
    %382 = vector.extract_strided_slice %296 {offsets = [8, 0], sizes = [8, 8], strides = [1, 1]} : vector<16x32xf32> to vector<8x8xf32>
    %383 = vector.extract_strided_slice %297 {offsets = [8, 0], sizes = [8, 8], strides = [1, 1]} : vector<16x32xf32> to vector<8x8xf32>
    %384 = vector.extract_strided_slice %298 {offsets = [8, 0], sizes = [8, 8], strides = [1, 1]} : vector<16x32xf32> to vector<8x8xf32>
    %385 = tpu.transpose %383, [1, 0] : vector<8x8xf32> -> vector<8x8xf32>
    %cst_131 = arith.constant dense<0.000000e+00> : vector<8x8xf32>
    %386 = tpu.matmul %382, %385, %cst_131 {dimension_numbers = #tpu.dot_dimension_numbers<[1], [0], [0], [1], [0, 0, 1, 1], [], []>} : vector<8x8xf32>, vector<8x8xf32>, vector<8x8xf32> -> vector<8x8xf32>
    %cst_132 = arith.constant 0.353553385 : f32
    %387 = vector.broadcast %cst_132 : f32 to vector<8x8xf32>
    %388 = arith.mulf %386, %387 : vector<8x8xf32>
    %389 = vector.broadcast %381 : vector<1x8xf32> to vector<8x8xf32>
    %390 = arith.addf %388, %389 : vector<8x8xf32>
    %cst_133 = arith.constant dense<0xFF800000> : vector<8xf32>
    %391 = vector.multi_reduction <maximumf>, %390, %cst_133 [1] : vector<8x8xf32> to vector<8xf32>
    %392 = vector.shape_cast %391 : vector<8xf32> to vector<8x1xf32>
    %393 = vector.broadcast %392 : vector<8x1xf32> to vector<8x8xf32>
    %394 = arith.subf %390, %393 : vector<8x8xf32>
    %395 = math.exp %394 : vector<8x8xf32>
    %cst_134 = arith.constant dense<0.000000e+00> : vector<8xf32>
    %396 = vector.multi_reduction <add>, %395, %cst_134 [1] : vector<8x8xf32> to vector<8xf32>
    %397 = vector.shape_cast %396 : vector<8xf32> to vector<8x1xf32>
    %398 = tpu.reciprocal %397 {approx = true} : vector<8x1xf32> -> vector<8x1xf32>
    %399 = vector.broadcast %398 : vector<8x1xf32> to vector<8x8xf32>
    %400 = arith.mulf %395, %399 : vector<8x8xf32>
    %cst_135 = arith.constant dense<0.000000e+00> : vector<8x8xf32>
    %401 = tpu.matmul %400, %384, %cst_135 {dimension_numbers = #tpu.dot_dimension_numbers<[1], [0], [0], [1], [0, 0, 1, 1], [], []>} : vector<8x8xf32>, vector<8x8xf32>, vector<8x8xf32> -> vector<8x8xf32>
    %402 = vector.extract_strided_slice %296 {offsets = [8, 8], sizes = [8, 8], strides = [1, 1]} : vector<16x32xf32> to vector<8x8xf32>
    %403 = vector.extract_strided_slice %297 {offsets = [8, 8], sizes = [8, 8], strides = [1, 1]} : vector<16x32xf32> to vector<8x8xf32>
    %404 = vector.extract_strided_slice %298 {offsets = [8, 8], sizes = [8, 8], strides = [1, 1]} : vector<16x32xf32> to vector<8x8xf32>
    %405 = tpu.transpose %403, [1, 0] : vector<8x8xf32> -> vector<8x8xf32>
    %cst_136 = arith.constant dense<0.000000e+00> : vector<8x8xf32>
    %406 = tpu.matmul %402, %405, %cst_136 {dimension_numbers = #tpu.dot_dimension_numbers<[1], [0], [0], [1], [0, 0, 1, 1], [], []>} : vector<8x8xf32>, vector<8x8xf32>, vector<8x8xf32> -> vector<8x8xf32>
    %cst_137 = arith.constant 0.353553385 : f32
    %407 = vector.broadcast %cst_137 : f32 to vector<8x8xf32>
    %408 = arith.mulf %406, %407 : vector<8x8xf32>
    %409 = vector.broadcast %381 : vector<1x8xf32> to vector<8x8xf32>
    %410 = arith.addf %408, %409 : vector<8x8xf32>
    %cst_138 = arith.constant dense<0xFF800000> : vector<8xf32>
    %411 = vector.multi_reduction <maximumf>, %410, %cst_138 [1] : vector<8x8xf32> to vector<8xf32>
    %412 = vector.shape_cast %411 : vector<8xf32> to vector<8x1xf32>
    %413 = vector.broadcast %412 : vector<8x1xf32> to vector<8x8xf32>
    %414 = arith.subf %410, %413 : vector<8x8xf32>
    %415 = math.exp %414 : vector<8x8xf32>
    %cst_139 = arith.constant dense<0.000000e+00> : vector<8xf32>
    %416 = vector.multi_reduction <add>, %415, %cst_139 [1] : vector<8x8xf32> to vector<8xf32>
    %417 = vector.shape_cast %416 : vector<8xf32> to vector<8x1xf32>
    %418 = tpu.reciprocal %417 {approx = true} : vector<8x1xf32> -> vector<8x1xf32>
    %419 = vector.broadcast %418 : vector<8x1xf32> to vector<8x8xf32>
    %420 = arith.mulf %415, %419 : vector<8x8xf32>
    %cst_140 = arith.constant dense<0.000000e+00> : vector<8x8xf32>
    %421 = tpu.matmul %420, %404, %cst_140 {dimension_numbers = #tpu.dot_dimension_numbers<[1], [0], [0], [1], [0, 0, 1, 1], [], []>} : vector<8x8xf32>, vector<8x8xf32>, vector<8x8xf32> -> vector<8x8xf32>
    %422 = vector.extract_strided_slice %296 {offsets = [8, 16], sizes = [8, 8], strides = [1, 1]} : vector<16x32xf32> to vector<8x8xf32>
    %423 = vector.extract_strided_slice %297 {offsets = [8, 16], sizes = [8, 8], strides = [1, 1]} : vector<16x32xf32> to vector<8x8xf32>
    %424 = vector.extract_strided_slice %298 {offsets = [8, 16], sizes = [8, 8], strides = [1, 1]} : vector<16x32xf32> to vector<8x8xf32>
    %425 = tpu.transpose %423, [1, 0] : vector<8x8xf32> -> vector<8x8xf32>
    %cst_141 = arith.constant dense<0.000000e+00> : vector<8x8xf32>
    %426 = tpu.matmul %422, %425, %cst_141 {dimension_numbers = #tpu.dot_dimension_numbers<[1], [0], [0], [1], [0, 0, 1, 1], [], []>} : vector<8x8xf32>, vector<8x8xf32>, vector<8x8xf32> -> vector<8x8xf32>
    %cst_142 = arith.constant 0.353553385 : f32
    %427 = vector.broadcast %cst_142 : f32 to vector<8x8xf32>
    %428 = arith.mulf %426, %427 : vector<8x8xf32>
    %429 = vector.broadcast %381 : vector<1x8xf32> to vector<8x8xf32>
    %430 = arith.addf %428, %429 : vector<8x8xf32>
    %cst_143 = arith.constant dense<0xFF800000> : vector<8xf32>
    %431 = vector.multi_reduction <maximumf>, %430, %cst_143 [1] : vector<8x8xf32> to vector<8xf32>
    %432 = vector.shape_cast %431 : vector<8xf32> to vector<8x1xf32>
    %433 = vector.broadcast %432 : vector<8x1xf32> to vector<8x8xf32>
    %434 = arith.subf %430, %433 : vector<8x8xf32>
    %435 = math.exp %434 : vector<8x8xf32>
    %cst_144 = arith.constant dense<0.000000e+00> : vector<8xf32>
    %436 = vector.multi_reduction <add>, %435, %cst_144 [1] : vector<8x8xf32> to vector<8xf32>
    %437 = vector.shape_cast %436 : vector<8xf32> to vector<8x1xf32>
    %438 = tpu.reciprocal %437 {approx = true} : vector<8x1xf32> -> vector<8x1xf32>
    %439 = vector.broadcast %438 : vector<8x1xf32> to vector<8x8xf32>
    %440 = arith.mulf %435, %439 : vector<8x8xf32>
    %cst_145 = arith.constant dense<0.000000e+00> : vector<8x8xf32>
    %441 = tpu.matmul %440, %424, %cst_145 {dimension_numbers = #tpu.dot_dimension_numbers<[1], [0], [0], [1], [0, 0, 1, 1], [], []>} : vector<8x8xf32>, vector<8x8xf32>, vector<8x8xf32> -> vector<8x8xf32>
    %442 = vector.extract_strided_slice %296 {offsets = [8, 24], sizes = [8, 8], strides = [1, 1]} : vector<16x32xf32> to vector<8x8xf32>
    %443 = vector.extract_strided_slice %297 {offsets = [8, 24], sizes = [8, 8], strides = [1, 1]} : vector<16x32xf32> to vector<8x8xf32>
    %444 = vector.extract_strided_slice %298 {offsets = [8, 24], sizes = [8, 8], strides = [1, 1]} : vector<16x32xf32> to vector<8x8xf32>
    %445 = tpu.transpose %443, [1, 0] : vector<8x8xf32> -> vector<8x8xf32>
    %cst_146 = arith.constant dense<0.000000e+00> : vector<8x8xf32>
    %446 = tpu.matmul %442, %445, %cst_146 {dimension_numbers = #tpu.dot_dimension_numbers<[1], [0], [0], [1], [0, 0, 1, 1], [], []>} : vector<8x8xf32>, vector<8x8xf32>, vector<8x8xf32> -> vector<8x8xf32>
    %cst_147 = arith.constant 0.353553385 : f32
    %447 = vector.broadcast %cst_147 : f32 to vector<8x8xf32>
    %448 = arith.mulf %446, %447 : vector<8x8xf32>
    %449 = vector.broadcast %381 : vector<1x8xf32> to vector<8x8xf32>
    %450 = arith.addf %448, %449 : vector<8x8xf32>
    %cst_148 = arith.constant dense<0xFF800000> : vector<8xf32>
    %451 = vector.multi_reduction <maximumf>, %450, %cst_148 [1] : vector<8x8xf32> to vector<8xf32>
    %452 = vector.shape_cast %451 : vector<8xf32> to vector<8x1xf32>
    %453 = vector.broadcast %452 : vector<8x1xf32> to vector<8x8xf32>
    %454 = arith.subf %450, %453 : vector<8x8xf32>
    %455 = math.exp %454 : vector<8x8xf32>
    %cst_149 = arith.constant dense<0.000000e+00> : vector<8xf32>
    %456 = vector.multi_reduction <add>, %455, %cst_149 [1] : vector<8x8xf32> to vector<8xf32>
    %457 = vector.shape_cast %456 : vector<8xf32> to vector<8x1xf32>
    %458 = tpu.reciprocal %457 {approx = true} : vector<8x1xf32> -> vector<8x1xf32>
    %459 = vector.broadcast %458 : vector<8x1xf32> to vector<8x8xf32>
    %460 = arith.mulf %455, %459 : vector<8x8xf32>
    %cst_150 = arith.constant dense<0.000000e+00> : vector<8x8xf32>
    %461 = tpu.matmul %460, %444, %cst_150 {dimension_numbers = #tpu.dot_dimension_numbers<[1], [0], [0], [1], [0, 0, 1, 1], [], []>} : vector<8x8xf32>, vector<8x8xf32>, vector<8x8xf32> -> vector<8x8xf32>
    %462 = tpu.concatenate %401, %421, %441, %461 in 1 : vector<8x8xf32>, vector<8x8xf32>, vector<8x8xf32>, vector<8x8xf32> -> vector<8x32xf32>
    %463 = tpu.concatenate %380, %462 in 0 : vector<8x32xf32>, vector<8x32xf32> -> vector<16x32xf32>
    %c1_151 = arith.constant 1 : index
    %c0_152 = arith.constant 0 : index
    %c0_153 = arith.constant 0 : index
    %464 = vector.load %arg6[%c1_151, %c0_152, %c0_153] : memref<2x32x32xf32, #tpu.memory_space<vmem>>, vector<1x32x32xf32>
    %465 = vector.shape_cast %464 : vector<1x32x32xf32> to vector<32x32xf32>
    %cst_154 = arith.constant dense<0.000000e+00> : vector<16x32xf32>
    %466 = tpu.matmul %463, %465, %cst_154 {dimension_numbers = #tpu.dot_dimension_numbers<[1], [0], [0], [1], [0, 0, 1, 1], [], []>} : vector<16x32xf32>, vector<32x32xf32>, vector<16x32xf32> -> vector<16x32xf32>
    %c1_155 = arith.constant 1 : index
    %c0_156 = arith.constant 0 : index
    %c0_157 = arith.constant 0 : index
    %467 = vector.load %arg7[%c1_155, %c0_156, %c0_157] : memref<2x1x32xf32, #tpu.memory_space<vmem>>, vector<1x1x32xf32>
    %468 = vector.shape_cast %467 : vector<1x1x32xf32> to vector<1x32xf32>
    %469 = vector.broadcast %468 : vector<1x32xf32> to vector<16x32xf32>
    %470 = arith.addf %466, %469 : vector<16x32xf32>
    %471 = arith.addf %288, %470 : vector<16x32xf32>
    %c1_158 = arith.constant 1 : index
    %c0_159 = arith.constant 0 : index
    %c0_160 = arith.constant 0 : index
    %472 = vector.load %arg8[%c1_158, %c0_159, %c0_160] : memref<2x1x32xf32, #tpu.memory_space<vmem>>, vector<1x1x32xf32>
    %473 = vector.shape_cast %472 : vector<1x1x32xf32> to vector<1x32xf32>
    %c1_161 = arith.constant 1 : index
    %c0_162 = arith.constant 0 : index
    %c0_163 = arith.constant 0 : index
    %474 = vector.load %arg9[%c1_161, %c0_162, %c0_163] : memref<2x1x32xf32, #tpu.memory_space<vmem>>, vector<1x1x32xf32>
    %475 = vector.shape_cast %474 : vector<1x1x32xf32> to vector<1x32xf32>
    %cst_164 = arith.constant dense<0.000000e+00> : vector<16xf32>
    %476 = vector.multi_reduction <add>, %471, %cst_164 [1] : vector<16x32xf32> to vector<16xf32>
    %477 = vector.shape_cast %476 : vector<16xf32> to vector<16x1xf32>
    %cst_165 = arith.constant 3.200000e+01 : f32
    %478 = vector.broadcast %cst_165 : f32 to vector<16x1xf32>
    %479 = arith.divf %477, %478 : vector<16x1xf32>
    %480 = vector.broadcast %479 : vector<16x1xf32> to vector<16x32xf32>
    %481 = arith.subf %471, %480 : vector<16x32xf32>
    %482 = arith.mulf %481, %481 : vector<16x32xf32>
    %cst_166 = arith.constant dense<0.000000e+00> : vector<16xf32>
    %483 = vector.multi_reduction <add>, %482, %cst_166 [1] : vector<16x32xf32> to vector<16xf32>
    %484 = vector.shape_cast %483 : vector<16xf32> to vector<16x1xf32>
    %cst_167 = arith.constant 3.200000e+01 : f32
    %485 = vector.broadcast %cst_167 : f32 to vector<16x1xf32>
    %486 = arith.divf %484, %485 : vector<16x1xf32>
    %487 = vector.broadcast %479 : vector<16x1xf32> to vector<16x32xf32>
    %488 = arith.subf %471, %487 : vector<16x32xf32>
    %cst_168 = arith.constant 9.99999996E-13 : f32
    %489 = vector.broadcast %cst_168 : f32 to vector<16x1xf32>
    %490 = arith.addf %486, %489 : vector<16x1xf32>
    %491 = math.rsqrt %490 : vector<16x1xf32>
    %492 = vector.broadcast %491 : vector<16x1xf32> to vector<16x32xf32>
    %493 = arith.mulf %488, %492 : vector<16x32xf32>
    %494 = vector.broadcast %473 : vector<1x32xf32> to vector<16x32xf32>
    %495 = arith.mulf %493, %494 : vector<16x32xf32>
    %496 = vector.broadcast %475 : vector<1x32xf32> to vector<16x32xf32>
    %497 = arith.addf %495, %496 : vector<16x32xf32>
    %c1_169 = arith.constant 1 : index
    %c0_170 = arith.constant 0 : index
    %c0_171 = arith.constant 0 : index
    %498 = vector.load %arg10[%c1_169, %c0_170, %c0_171] : memref<2x32x64xf32, #tpu.memory_space<vmem>>, vector<1x32x64xf32>
    %499 = vector.shape_cast %498 : vector<1x32x64xf32> to vector<32x64xf32>
    %cst_172 = arith.constant dense<0.000000e+00> : vector<16x64xf32>
    %500 = tpu.matmul %497, %499, %cst_172 {dimension_numbers = #tpu.dot_dimension_numbers<[1], [0], [0], [1], [0, 0, 1, 1], [], []>} : vector<16x32xf32>, vector<32x64xf32>, vector<16x64xf32> -> vector<16x64xf32>
    %c1_173 = arith.constant 1 : index
    %c0_174 = arith.constant 0 : index
    %c0_175 = arith.constant 0 : index
    %501 = vector.load %arg11[%c1_173, %c0_174, %c0_175] : memref<2x1x64xf32, #tpu.memory_space<vmem>>, vector<1x1x64xf32>
    %502 = vector.shape_cast %501 : vector<1x1x64xf32> to vector<1x64xf32>
    %503 = vector.broadcast %502 : vector<1x64xf32> to vector<16x64xf32>
    %504 = arith.addf %500, %503 : vector<16x64xf32>
    %505 = arith.mulf %504, %504 : vector<16x64xf32>
    %506 = arith.mulf %504, %505 : vector<16x64xf32>
    %cst_176 = arith.constant 4.471500e-02 : f32
    %507 = vector.broadcast %cst_176 : f32 to vector<16x64xf32>
    %508 = arith.mulf %507, %506 : vector<16x64xf32>
    %509 = arith.addf %504, %508 : vector<16x64xf32>
    %cst_177 = arith.constant 0.797884583 : f32
    %510 = vector.broadcast %cst_177 : f32 to vector<16x64xf32>
    %511 = arith.mulf %510, %509 : vector<16x64xf32>
    %512 = math.tanh %511 : vector<16x64xf32>
    %cst_178 = arith.constant 1.000000e+00 : f32
    %513 = vector.broadcast %cst_178 : f32 to vector<16x64xf32>
    %514 = arith.addf %513, %512 : vector<16x64xf32>
    %cst_179 = arith.constant 5.000000e-01 : f32
    %515 = vector.broadcast %cst_179 : f32 to vector<16x64xf32>
    %516 = arith.mulf %515, %514 : vector<16x64xf32>
    %517 = arith.mulf %504, %516 : vector<16x64xf32>
    %c1_180 = arith.constant 1 : index
    %c0_181 = arith.constant 0 : index
    %c0_182 = arith.constant 0 : index
    %518 = vector.load %arg12[%c1_180, %c0_181, %c0_182] : memref<2x64x32xf32, #tpu.memory_space<vmem>>, vector<1x64x32xf32>
    %519 = vector.shape_cast %518 : vector<1x64x32xf32> to vector<64x32xf32>
    %cst_183 = arith.constant dense<0.000000e+00> : vector<16x32xf32>
    %520 = tpu.matmul %517, %519, %cst_183 {dimension_numbers = #tpu.dot_dimension_numbers<[1], [0], [0], [1], [0, 0, 1, 1], [], []>} : vector<16x64xf32>, vector<64x32xf32>, vector<16x32xf32> -> vector<16x32xf32>
    %c1_184 = arith.constant 1 : index
    %c0_185 = arith.constant 0 : index
    %c0_186 = arith.constant 0 : index
    %521 = vector.load %arg13[%c1_184, %c0_185, %c0_186] : memref<2x1x32xf32, #tpu.memory_space<vmem>>, vector<1x1x32xf32>
    %522 = vector.shape_cast %521 : vector<1x1x32xf32> to vector<1x32xf32>
    %523 = vector.broadcast %522 : vector<1x32xf32> to vector<16x32xf32>
    %524 = arith.addf %520, %523 : vector<16x32xf32>
    %525 = arith.addf %497, %524 : vector<16x32xf32>
    %c1_187 = arith.constant 1 : index
    %c0_188 = arith.constant 0 : index
    %c0_189 = arith.constant 0 : index
    %526 = vector.load %arg14[%c1_187, %c0_188, %c0_189] : memref<2x1x32xf32, #tpu.memory_space<vmem>>, vector<1x1x32xf32>
    %527 = vector.shape_cast %526 : vector<1x1x32xf32> to vector<1x32xf32>
    %c1_190 = arith.constant 1 : index
    %c0_191 = arith.constant 0 : index
    %c0_192 = arith.constant 0 : index
    %528 = vector.load %arg15[%c1_190, %c0_191, %c0_192] : memref<2x1x32xf32, #tpu.memory_space<vmem>>, vector<1x1x32xf32>
    %529 = vector.shape_cast %528 : vector<1x1x32xf32> to vector<1x32xf32>
    %cst_193 = arith.constant dense<0.000000e+00> : vector<16xf32>
    %530 = vector.multi_reduction <add>, %525, %cst_193 [1] : vector<16x32xf32> to vector<16xf32>
    %531 = vector.shape_cast %530 : vector<16xf32> to vector<16x1xf32>
    %cst_194 = arith.constant 3.200000e+01 : f32
    %532 = vector.broadcast %cst_194 : f32 to vector<16x1xf32>
    %533 = arith.divf %531, %532 : vector<16x1xf32>
    %534 = vector.broadcast %533 : vector<16x1xf32> to vector<16x32xf32>
    %535 = arith.subf %525, %534 : vector<16x32xf32>
    %536 = arith.mulf %535, %535 : vector<16x32xf32>
    %cst_195 = arith.constant dense<0.000000e+00> : vector<16xf32>
    %537 = vector.multi_reduction <add>, %536, %cst_195 [1] : vector<16x32xf32> to vector<16xf32>
    %538 = vector.shape_cast %537 : vector<16xf32> to vector<16x1xf32>
    %cst_196 = arith.constant 3.200000e+01 : f32
    %539 = vector.broadcast %cst_196 : f32 to vector<16x1xf32>
    %540 = arith.divf %538, %539 : vector<16x1xf32>
    %541 = vector.broadcast %533 : vector<16x1xf32> to vector<16x32xf32>
    %542 = arith.subf %525, %541 : vector<16x32xf32>
    %cst_197 = arith.constant 9.99999996E-13 : f32
    %543 = vector.broadcast %cst_197 : f32 to vector<16x1xf32>
    %544 = arith.addf %540, %543 : vector<16x1xf32>
    %545 = math.rsqrt %544 : vector<16x1xf32>
    %546 = vector.broadcast %545 : vector<16x1xf32> to vector<16x32xf32>
    %547 = arith.mulf %542, %546 : vector<16x32xf32>
    %548 = vector.broadcast %527 : vector<1x32xf32> to vector<16x32xf32>
    %549 = arith.mulf %547, %548 : vector<16x32xf32>
    %550 = vector.broadcast %529 : vector<1x32xf32> to vector<16x32xf32>
    %551 = arith.addf %549, %550 : vector<16x32xf32>
    %c0_198 = arith.constant 0 : index
    %c0_199 = arith.constant 0 : index
    %552 = vector.load %arg16[%c0_198, %c0_199] : memref<32x32xf32, #tpu.memory_space<vmem>>, vector<32x32xf32>
    %cst_200 = arith.constant dense<0.000000e+00> : vector<16x32xf32>
    %553 = tpu.matmul %551, %552, %cst_200 {dimension_numbers = #tpu.dot_dimension_numbers<[1], [0], [0], [1], [0, 0, 1, 1], [], []>} : vector<16x32xf32>, vector<32x32xf32>, vector<16x32xf32> -> vector<16x32xf32>
    %c0_201 = arith.constant 0 : index
    %c0_202 = arith.constant 0 : index
    %554 = vector.load %arg17[%c0_201, %c0_202] : memref<1x32xf32, #tpu.memory_space<vmem>>, vector<1x32xf32>
    %555 = vector.broadcast %554 : vector<1x32xf32> to vector<16x32xf32>
    %556 = arith.addf %553, %555 : vector<16x32xf32>
    %557 = math.tanh %556 : vector<16x32xf32>
    %c0_203 = arith.constant 0 : index
    %c0_204 = arith.constant 0 : index
    %558 = vector.load %arg18[%c0_203, %c0_204] : memref<32x128xf32, #tpu.memory_space<vmem>>, vector<32x128xf32>
    %cst_205 = arith.constant dense<0.000000e+00> : vector<16x128xf32>
    %559 = tpu.matmul %557, %558, %cst_205 {dimension_numbers = #tpu.dot_dimension_numbers<[1], [0], [0], [1], [0, 0, 1, 1], [], []>} : vector<16x32xf32>, vector<32x128xf32>, vector<16x128xf32> -> vector<16x128xf32>
    %c0_206 = arith.constant 0 : index
    %c0_207 = arith.constant 0 : index
    %560 = vector.load %arg19[%c0_206, %c0_207] : memref<1x128xf32, #tpu.memory_space<vmem>>, vector<1x128xf32>
    %561 = vector.broadcast %560 : vector<1x128xf32> to vector<16x128xf32>
    %562 = arith.addf %559, %561 : vector<16x128xf32>
    %c0_208 = arith.constant 0 : index
    %c0_209 = arith.constant 0 : index
    %563 = vector.load %arg20[%c0_208, %c0_209] : memref<16x128xf32, #tpu.memory_space<vmem>>, vector<16x128xf32>
    tpu.vector_store %arg20[%c0_208, %c0_209], %562 {strides = array<i32>} : memref<16x128xf32, #tpu.memory_space<vmem>>, vector<16x128xf32>,
    return
  }
}

</mosaic_0001>

<llo_original>
// kernel: bert_classifier_forward.1
$region0: #{bert_classifier_forward.1}
  #allocation0 [shape = 'u32[]', space=smem, size = 0x4, offset = 0x4, fixed_abs, tag = 'smem constant byte address 0x4 - core index']
  #allocation1 [shape = 'u32[144,128]{1,0:T(1,128)}', space=vmem, size = 0x12000, scoped, tag = 'internal scratch']
  %s0 = inlined_call_operand.vmem [shape: f32[16,32], index: 0, kind: input, shape index: {}]
  %s1 = inlined_call_operand.vmem [shape: f32[2,8], index: 1, kind: input, shape index: {}]
  %s2 = inlined_call_operand.vmem [shape: f32[1,32], index: 2, kind: input, shape index: {}]
  %s3 = inlined_call_operand.vmem [shape: f32[1,32], index: 3, kind: input, shape index: {}]
  %s4 = inlined_call_operand.vmem [shape: f32[2,32,96], index: 4, kind: input, shape index: {}]
  %s5 = inlined_call_operand.vmem [shape: f32[2,1,96], index: 5, kind: input, shape index: {}]
  %s6 = inlined_call_operand.vmem [shape: f32[2,32,32], index: 6, kind: input, shape index: {}]
  %s7 = inlined_call_operand.vmem [shape: f32[2,1,32], index: 7, kind: input, shape index: {}]
  %s8 = inlined_call_operand.vmem [shape: f32[2,1,32], index: 8, kind: input, shape index: {}]
  %s9 = inlined_call_operand.vmem [shape: f32[2,1,32], index: 9, kind: input, shape index: {}]
  %s10 = inlined_call_operand.vmem [shape: f32[2,32,64], index: 10, kind: input, shape index: {}]
  %s11 = inlined_call_operand.vmem [shape: f32[2,1,64], index: 11, kind: input, shape index: {}]
  %s12 = inlined_call_operand.vmem [shape: f32[2,64,32], index: 12, kind: input, shape index: {}]
  %s13 = inlined_call_operand.vmem [shape: f32[2,1,32], index: 13, kind: input, shape index: {}]
  %s14 = inlined_call_operand.vmem [shape: f32[2,1,32], index: 14, kind: input, shape index: {}]
  %s15 = inlined_call_operand.vmem [shape: f32[2,1,32], index: 15, kind: input, shape index: {}]
  %s16 = inlined_call_operand.vmem [shape: f32[32,32], index: 16, kind: input, shape index: {}]
  %s17 = inlined_call_operand.vmem [shape: f32[1,32], index: 17, kind: input, shape index: {}]
  %s18 = inlined_call_operand.vmem [shape: f32[32,128], index: 18, kind: input, shape index: {}]
  %s19 = inlined_call_operand.vmem [shape: f32[1,128], index: 19, kind: input, shape index: {}]
  %s20 = inlined_call_operand.vmem [shape: f32[16,128], index: 20, kind: output, shape index: {}]
  %s21 = sld [smem:[#allocation0]]
  $region90: #{bert_classifier_forward.1} parent=0
    _
  %s23 = ssub.s32 1, %s21
  %s24 = scalar_select 0, %s23, %s21
  // Predicated region
  $region2: #{bert_classifier_forward.1} parent=0 // pred_check
    _
  $region3: #{bert_classifier_forward.1} parent=0 // pred_check_branch
    %26 = sbr.rel (0) target = $region5
  $region4: #{bert_classifier_forward.1} parent=0 // pred_region
    _
  $region5: #{bert_classifier_forward.1} parent=0 // pred_fallthru
    _
  // Predicated region
  $region6: #{bert_classifier_forward.1} parent=0 // pred_check
    _
  $region7: #{bert_classifier_forward.1} parent=0 // pred_check_branch
    %28 = sbr.rel (0) target = $region9
  $region8: #{bert_classifier_forward.1} parent=0 // pred_region
    _
  $region9: #{bert_classifier_forward.1} parent=0 // pred_fallthru
    _
  // Predicated region
  $region10: #{bert_classifier_forward.1} parent=0 // pred_check
    _
  $region11: #{bert_classifier_forward.1} parent=0 // pred_check_branch
    %30 = sbr.rel (0) target = $region13
  $region12: #{bert_classifier_forward.1} parent=0 // pred_region
    _
  $region13: #{bert_classifier_forward.1} parent=0 // pred_fallthru
    _
  // Predicated region
  $region14: #{bert_classifier_forward.1} parent=0 // pred_check
    _
  $region15: #{bert_classifier_forward.1} parent=0 // pred_check_branch
    %32 = sbr.rel (0) target = $region17
  $region16: #{bert_classifier_forward.1} parent=0 // pred_region
    _
  $region17: #{bert_classifier_forward.1} parent=0 // pred_fallthru
    _
  // Predicated region
  $region18: #{bert_classifier_forward.1} parent=0 // pred_check
    _
  $region19: #{bert_classifier_forward.1} parent=0 // pred_check_branch
    %34 = sbr.rel (0) target = $region21
  $region20: #{bert_classifier_forward.1} parent=0 // pred_region
    _
  $region21: #{bert_classifier_forward.1} parent=0 // pred_fallthru
    _
  // Predicated region
  $region22: #{bert_classifier_forward.1} parent=0 // pred_check
    _
  $region23: #{bert_classifier_forward.1} parent=0 // pred_check_branch
    %36 = sbr.rel (0) target = $region25
  $region24: #{bert_classifier_forward.1} parent=0 // pred_region
    _
  $region25: #{bert_classifier_forward.1} parent=0 // pred_fallthru
    _
  // Predicated region
  $region26: #{bert_classifier_forward.1} parent=0 // pred_check
    _
  $region27: #{bert_classifier_forward.1} parent=0 // pred_check_branch
    %38 = sbr.rel (0) target = $region29
  $region28: #{bert_classifier_forward.1} parent=0 // pred_region
    _
  $region29: #{bert_classifier_forward.1} parent=0 // pred_fallthru
    _
  // Predicated region
  $region30: #{bert_classifier_forward.1} parent=0 // pred_check
    _
  $region31: #{bert_classifier_forward.1} parent=0 // pred_check_branch
    %40 = sbr.rel (0) target = $region33
  $region32: #{bert_classifier_forward.1} parent=0 // pred_region
    _
  $region33: #{bert_classifier_forward.1} parent=0 // pred_fallthru
    _
  // Predicated region
  $region34: #{bert_classifier_forward.1} parent=0 // pred_check
    _
  $region35: #{bert_classifier_forward.1} parent=0 // pred_check_branch
    %42 = sbr.rel (0) target = $region37
  $region36: #{bert_classifier_forward.1} parent=0 // pred_region
    _
  $region37: #{bert_classifier_forward.1} parent=0 // pred_fallthru
    _
  // Predicated region
  $region38: #{bert_classifier_forward.1} parent=0 // pred_check
    _
  $region39: #{bert_classifier_forward.1} parent=0 // pred_check_branch
    %44 = sbr.rel (0) target = $region41
  $region40: #{bert_classifier_forward.1} parent=0 // pred_region
    _
  $region41: #{bert_classifier_forward.1} parent=0 // pred_fallthru
    _
  // Predicated region
  $region42: #{bert_classifier_forward.1} parent=0 // pred_check
    _
  $region43: #{bert_classifier_forward.1} parent=0 // pred_check_branch
    %46 = sbr.rel (0) target = $region45
  $region44: #{bert_classifier_forward.1} parent=0 // pred_region
    _
  $region45: #{bert_classifier_forward.1} parent=0 // pred_fallthru
    _
  // Predicated region
  $region46: #{bert_classifier_forward.1} parent=0 // pred_check
    _
  $region47: #{bert_classifier_forward.1} parent=0 // pred_check_branch
    %48 = sbr.rel (0) target = $region49
  $region48: #{bert_classifier_forward.1} parent=0 // pred_region
    _
  $region49: #{bert_classifier_forward.1} parent=0 // pred_fallthru
    _
  // Predicated region
  $region50: #{bert_classifier_forward.1} parent=0 // pred_check
    _
  $region51: #{bert_classifier_forward.1} parent=0 // pred_check_branch
    %50 = sbr.rel (0) target = $region53
  $region52: #{bert_classifier_forward.1} parent=0 // pred_region
    _
  $region53: #{bert_classifier_forward.1} parent=0 // pred_fallthru
    _
  // Predicated region
  $region54: #{bert_classifier_forward.1} parent=0 // pred_check
    _
  $region55: #{bert_classifier_forward.1} parent=0 // pred_check_branch
    %52 = sbr.rel (0) target = $region57
  $region56: #{bert_classifier_forward.1} parent=0 // pred_region
    _
  $region57: #{bert_classifier_forward.1} parent=0 // pred_fallthru
    _
  // Predicated region
  $region58: #{bert_classifier_forward.1} parent=0 // pred_check
    _
  $region59: #{bert_classifier_forward.1} parent=0 // pred_check_branch
    %54 = sbr.rel (0) target = $region61
  $region60: #{bert_classifier_forward.1} parent=0 // pred_region
    _
  $region61: #{bert_classifier_forward.1} parent=0 // pred_fallthru
    _
  // Predicated region
  $region62: #{bert_classifier_forward.1} parent=0 // pred_check
    _
  $region63: #{bert_classifier_forward.1} parent=0 // pred_check_branch
    %56 = sbr.rel (0) target = $region65
  $region64: #{bert_classifier_forward.1} parent=0 // pred_region
    _
  $region65: #{bert_classifier_forward.1} parent=0 // pred_fallthru
    _
  // Predicated region
  $region66: #{bert_classifier_forward.1} parent=0 // pred_check
    _
  $region67: #{bert_classifier_forward.1} parent=0 // pred_check_branch
    %58 = sbr.rel (0) target = $region69
  $region68: #{bert_classifier_forward.1} parent=0 // pred_region
    _
  $region69: #{bert_classifier_forward.1} parent=0 // pred_fallthru
    _
  // Predicated region
  $region70: #{bert_classifier_forward.1} parent=0 // pred_check
    _
  $region71: #{bert_classifier_forward.1} parent=0 // pred_check_branch
    %60 = sbr.rel (0) target = $region73
  $region72: #{bert_classifier_forward.1} parent=0 // pred_region
    _
  $region73: #{bert_classifier_forward.1} parent=0 // pred_fallthru
    _
  // Predicated region
  $region74: #{bert_classifier_forward.1} parent=0 // pred_check
    _
  $region75: #{bert_classifier_forward.1} parent=0 // pred_check_branch
    %62 = sbr.rel (0) target = $region77
  $region76: #{bert_classifier_forward.1} parent=0 // pred_region
    _
  $region77: #{bert_classifier_forward.1} parent=0 // pred_fallthru
    _
  // Predicated region
  $region78: #{bert_classifier_forward.1} parent=0 // pred_check
    _
  $region79: #{bert_classifier_forward.1} parent=0 // pred_check_branch
    %64 = sbr.rel (0) target = $region81
  $region80: #{bert_classifier_forward.1} parent=0 // pred_region
    _
  $region81: #{bert_classifier_forward.1} parent=0 // pred_fallthru
    _
  %v65 = vld [vmem:[%s0] sm:$0xff]
  %v66 = vld [vmem:[%s0 + $0x8] sm:$0xff]
  %v67 = vld [vmem:[%s2] sm:$0x1]
  %v68 = vld [vmem:[%s3] sm:$0x1]
  %vm69 = vcmask 261120
  %v70 = vsel %vm69, %v65, 0.0
  %71 = vadd.xlane.f32.xlu0 %v70
  %v72 = vpop.xlane.xlu0 %71
  %v73 = vsel %vm69, %v66, 0.0
  %74 = vadd.xlane.f32.xlu0 %v73
  %v75 = vpop.xlane.xlu0 %74
  %v76 = vrcp.pop 32.0
  %v77 = vmul.f32 %v72, %v76
  %v78 = vmul.f32 %v75, %v76
  %v79 = vsub.f32 %v65, %v77
  %v80 = vsub.f32 %v66, %v78
  %v81 = vmul.f32 %v79, %v79
  %v82 = vmul.f32 %v80, %v80
  %v83 = vsel %vm69, %v81, 0.0
  %84 = vadd.xlane.f32.xlu0 %v83
  %v85 = vpop.xlane.xlu0 %84
  %v86 = vsel %vm69, %v82, 0.0
  %87 = vadd.xlane.f32.xlu0 %v86
  %v88 = vpop.xlane.xlu0 %87
  %v89 = vmul.f32 %v85, %v76
  %v90 = vmul.f32 %v88, %v76
  %v91 = vadd.f32 %v89, 1e-12
  %v92 = vadd.f32 %v90, 1e-12
  %v93 = vrsqrt.pop %v91
  %v94 = vrsqrt.pop %v92
  %v95 = vmul.f32 %v79, %v93
  %v96 = vmul.f32 %v80, %v94
  %v98 = vlaneseq
  %v99 = vshrl.u32 %v98, 7
  %v100 = vsub.s32 0, %v99
  %v101 = vrot.slane %v67, %v100
  %v103 = vmul.f32 %v95, %v101
  %v104 = vmul.f32 %v96, %v101
  %v106 = vlaneseq
  %v107 = vshrl.u32 %v106, 7
  %v108 = vsub.s32 0, %v107
  %v109 = vrot.slane %v68, %v108
  %v111 = vadd.f32 %v103, %v109
  %v112 = vadd.f32 %v104, %v109
  %v113 = vld [vmem:[%s1] sm:$0x3]
  %v114 = vld [vmem:[%s4] sm:$0xff]
  %v115 = vld [vmem:[%s4 + $0x8] sm:$0xff]
  %v116 = vld [vmem:[%s4 + $0x10] sm:$0xff]
  %v117 = vld [vmem:[%s4 + $0x18] sm:$0xff]
  %v118 = vld [vmem:[%s5] sm:$0x1]
  %v120 = vlaneseq
  %v121 = vshrl.u32 %v120, 7
  %v122 = vsub.s32 0, %v121
  %v123 = vrot.slane %v118, %v122
  %v126 = vsel %vm69, %v111, 0
  %v129 = vsel %vm69, %v112, 0
  %131 = vmatprep.subr.mxu0 0.0
  %132 = vmatpush1.msra.mxu0 %v114
  %133 = vmatprep.subr.mxu0 0.0
  %134 = vmatpush1.msra.mxu0 %v115
  %135 = vmatprep.subr.mxu0 0.0
  %136 = vmatpush1.msra.mxu0 %v116
  %137 = vmatprep.subr.mxu0 0.0
  %138 = vmatpush1.msra.mxu0 %v117
  %139 = vmatprep.subr.mxu0 0.0
  %140 = vmatpush1.msra.mxu0 0.0
  %141 = vmatprep.subr.mxu0 0.0
  %142 = vmatpush1.msra.mxu0 0.0
  %143 = vmatprep.subr.mxu0 0.0
  %144 = vmatpush1.msra.mxu0 0.0
  %145 = vmatprep.subr.mxu0 0.0
  %146 = vmatpush1.msra.mxu0 0.0
  %147 = vmatprep.subr.mxu0 0.0
  %148 = vmatpush1.msra.mxu0 0.0
  %149 = vmatprep.subr.mxu0 0.0
  %150 = vmatpush1.msra.mxu0 0.0
  %151 = vmatprep.subr.mxu0 0.0
  %152 = vmatpush1.msra.mxu0 0.0
  %153 = vmatprep.subr.mxu0 0.0
  %154 = vmatpush1.msra.mxu0 0.0
  %155 = vmatprep.subr.mxu0 0.0
  %156 = vmatpush1.msra.mxu0 0.0
  %157 = vmatprep.subr.mxu0 0.0
  %158 = vmatpush1.msra.mxu0 0.0
  %159 = vmatprep.subr.mxu0 0.0
  %160 = vmatpush1.msra.mxu0 0.0
  %161 = vmatprep.subr.mxu0 0.0
  %162 = vmatpush1.msra.mxu0 0.0
  %163 = vmatprep.subr.mxu0 0.0
  %164 = vmatpush1.msra.mxu0 0.0
  %165 = vmatprep.subr.mxu0 0.0
  %166 = vmatpush1.msra.mxu0 0.0
  %167 = vmatprep.subr.mxu0 0.0
  %168 = vmatpush1.msra.mxu0 0.0
  %169 = vmatprep.subr.mxu0 0.0
  %170 = vmatpush1.msra.mxu0 0.0
  %171 = vmatprep.subr.mxu0 0.0
  %172 = vmatpush1.msra.mxu0 0.0
  %173 = vmatprep.subr.mxu0 0.0
  %174 = vmatpush1.msra.mxu0 0.0
  %175 = vmatprep.subr.mxu0 0.0
  %176 = vmatpush1.msra.mxu0 0.0
  %177 = vmatprep.subr.mxu0 0.0
  %178 = vmatpush1.msra.mxu0 0.0
  %179 = vmatprep.subr.mxu0 0.0
  %180 = vmatpush1.msra.mxu0 0.0
  %181 = vmatprep.subr.mxu0 0.0
  %182 = vmatpush1.msra.mxu0 0.0
  %183 = vmatprep.subr.mxu0 0.0
  %184 = vmatpush1.msra.mxu0 0.0
  %185 = vmatprep.subr.mxu0 0.0
  %186 = vmatpush1.msra.mxu0 0.0
  %187 = vmatprep.subr.mxu0 0.0
  %188 = vmatpush1.msra.mxu0 0.0
  %189 = vmatprep.subr.mxu0 0.0
  %190 = vmatpush1.msra.mxu0 0.0
  %191 = vmatprep.subr.mxu0 0.0
  %192 = vmatpush1.msra.mxu0 0.0
  %193 = vmatprep.subr.mxu0 0.0
  %194 = vmatpush1.msra.mxu0 0.0
  %195 = vmatprep.mubr.f32.mxu0 0.0
  %196 = vmatmul.mubr.f32.gmra.mrb[0].mxu0 %v126
  %v197 = vpop.f32.mrb[0].mxu0
  %v198 = vadd.f32 %v123, %v197
  %v199 = vpop.f32.mrb[0].mxu0
  %200 = vmatprep.mubr.f32.mxu0 0.0
  %201 = vmatmul.mubr.f32.gmra.mrb[0].mxu0 %v129
  %v202 = vpop.f32.mrb[0].mxu0
  %v203 = vadd.f32 %v123, %v202
  %v204 = vpop.f32.mrb[0].mxu0
  %205 = vdwg.mxu0
  %207 = vrot.lane.b32.xlu0 %v198, 96
  %v208 = vpop.permute.xlu0 %207
  %vm209 = vcmask 64512
  %v210 = vsel %vm209, %v198, 0
  %v212 = vsel %vm209, %v208, 0
  %214 = vmatprep.subr.mxu0 0.0
  %215 = vmatpush1.xpose.msra.mxu0 %v212
  %216 = vmatprep.subr.mxu0 0.0
  %217 = vmatpush1.xpose.msra.mxu0 0.0
  %218 = vmatprep.subr.mxu0 0.0
  %219 = vmatpush1.xpose.msra.mxu0 0.0
  %220 = vmatprep.subr.mxu0 0.0
  %221 = vmatpush1.xpose.msra.mxu0 0.0
  %222 = vmatprep.subr.mxu0 0.0
  %223 = vmatpush1.xpose.msra.mxu0 0.0
  %224 = vmatprep.subr.mxu0 0.0
  %225 = vmatpush1.xpose.msra.mxu0 0.0
  %226 = vmatprep.subr.mxu0 0.0
  %227 = vmatpush1.xpose.msra.mxu0 0.0
  %228 = vmatprep.subr.mxu0 0.0
  %229 = vmatpush1.xpose.msra.mxu0 0.0
  %230 = vmatprep.subr.mxu0 0.0
  %231 = vmatpush1.xpose.msra.mxu0 0.0
  %232 = vmatprep.subr.mxu0 0.0
  %233 = vmatpush1.xpose.msra.mxu0 0.0
  %234 = vmatprep.subr.mxu0 0.0
  %235 = vmatpush1.xpose.msra.mxu0 0.0
  %236 = vmatprep.subr.mxu0 0.0
  %237 = vmatpush1.xpose.msra.mxu0 0.0
  %238 = vmatprep.subr.mxu0 0.0
  %239 = vmatpush1.xpose.msra.mxu0 0.0
  %240 = vmatprep.subr.mxu0 0.0
  %241 = vmatpush1.xpose.msra.mxu0 0.0
  %242 = vmatprep.subr.mxu0 0.0
  %243 = vmatpush1.xpose.msra.mxu0 0.0
  %244 = vmatprep.subr.mxu0 0.0
  %245 = vmatpush1.xpose.msra.mxu0 0.0
  %246 = vmatprep.subr.mxu0 0.0
  %247 = vmatpush1.xpose.msra.mxu0 0.0
  %248 = vmatprep.subr.mxu0 0.0
  %249 = vmatpush1.xpose.msra.mxu0 0.0
  %250 = vmatprep.subr.mxu0 0.0
  %251 = vmatpush1.xpose.msra.mxu0 0.0
  %252 = vmatprep.subr.mxu0 0.0
  %253 = vmatpush1.xpose.msra.mxu0 0.0
  %254 = vmatprep.subr.mxu0 0.0
  %255 = vmatpush1.xpose.msra.mxu0 0.0
  %256 = vmatprep.subr.mxu0 0.0
  %257 = vmatpush1.xpose.msra.mxu0 0.0
  %258 = vmatprep.subr.mxu0 0.0
  %259 = vmatpush1.xpose.msra.mxu0 0.0
  %260 = vmatprep.subr.mxu0 0.0
  %261 = vmatpush1.xpose.msra.mxu0 0.0
  %262 = vmatprep.subr.mxu0 0.0
  %263 = vmatpush1.xpose.msra.mxu0 0.0
  %264 = vmatprep.subr.mxu0 0.0
  %265 = vmatpush1.xpose.msra.mxu0 0.0
  %266 = vmatprep.subr.mxu0 0.0
  %267 = vmatpush1.xpose.msra.mxu0 0.0
  %268 = vmatprep.subr.mxu0 0.0
  %269 = vmatpush1.xpose.msra.mxu0 0.0
  %270 = vmatprep.subr.mxu0 0.0
  %271 = vmatpush1.xpose.msra.mxu0 0.0
  %272 = vmatprep.subr.mxu0 0.0
  %273 = vmatpush1.xpose.msra.mxu0 0.0
  %274 = vmatprep.subr.mxu0 0.0
  %275 = vmatpush1.xpose.msra.mxu0 0.0
  %276 = vmatprep.subr.mxu0 0.0
  %277 = vmatpush1.xpose.msra.mxu0 0.0
  %278 = vmatprep.mubr.f32.mxu0 0.0
  %279 = vmatmul.mubr.f32.gmra.mrb[0].mxu0 %v210
  %v280 = vpop.f32.mrb[0].mxu0
  %v281 = vadd.f32 0.0, %v280
  %v282 = vpop.f32.mrb[0].mxu0
  %283 = vdwg.mxu0
  %v284 = vmul.f32 %v281, 0.35355338
  %v285 = vlaneseq
  %v286 = vshrl.u32 %v285, 7
  %v287 = vsub.s32 0, %v286
  %v288 = vrot.slane %v113, %v287
  %v289 = vadd.f32 %v284, %v288
  %v290 = vsel %vm209, %v289, -inf
  %291 = vmax.xlane.f32.xlu0 %v290
  %v292 = vpop.xlane.xlu0 %291
  %v293 = vsub.f32 %v289, %v292
  %v294 = vmul.f32 %v293, 1.442695
  %v295 = vpow.pop %v294
  %v296 = vsel %vm209, %v295, 0.0
  %297 = vadd.xlane.f32.xlu0 %v296
  %v298 = vpop.xlane.xlu0 %297
  %v299 = vrcp.pop %v298
  %v300 = vmul.f32 %v295, %v299
  %301 = vrot.lane.b32.xlu0 %v198, 64
  %v302 = vpop.permute.xlu0 %301
  %v305 = vsel %vm209, %v300, 0
  %307 = vmatprep.subr.mxu0 0.0
  %308 = vmatpush1.msra.mxu0 %v302
  %309 = vmatprep.subr.mxu0 0.0
  %310 = vmatpush1.msra.mxu0 0.0
  %311 = vmatprep.subr.mxu0 0.0
  %312 = vmatpush1.msra.mxu0 0.0
  %313 = vmatprep.subr.mxu0 0.0
  %314 = vmatpush1.msra.mxu0 0.0
  %315 = vmatprep.subr.mxu0 0.0
  %316 = vmatpush1.msra.mxu0 0.0
  %317 = vmatprep.subr.mxu0 0.0
  %318 = vmatpush1.msra.mxu0 0.0
  %319 = vmatprep.subr.mxu0 0.0
  %320 = vmatpush1.msra.mxu0 0.0
  %321 = vmatprep.subr.mxu0 0.0
  %322 = vmatpush1.msra.mxu0 0.0
  %323 = vmatprep.subr.mxu0 0.0
  %324 = vmatpush1.msra.mxu0 0.0
  %325 = vmatprep.subr.mxu0 0.0
  %326 = vmatpush1.msra.mxu0 0.0
  %327 = vmatprep.subr.mxu0 0.0
  %328 = vmatpush1.msra.mxu0 0.0
  %329 = vmatprep.subr.mxu0 0.0
  %330 = vmatpush1.msra.mxu0 0.0
  %331 = vmatprep.subr.mxu0 0.0
  %332 = vmatpush1.msra.mxu0 0.0
  %333 = vmatprep.subr.mxu0 0.0
  %334 = vmatpush1.msra.mxu0 0.0
  %335 = vmatprep.subr.mxu0 0.0
  %336 = vmatpush1.msra.mxu0 0.0
  %337 = vmatprep.subr.mxu0 0.0
  %338 = vmatpush1.msra.mxu0 0.0
  %339 = vmatprep.subr.mxu0 0.0
  %340 = vmatpush1.msra.mxu0 0.0
  %341 = vmatprep.subr.mxu0 0.0
  %342 = vmatpush1.msra.mxu0 0.0
  %343 = vmatprep.subr.mxu0 0.0
  %344 = vmatpush1.msra.mxu0 0.0
  %345 = vmatprep.subr.mxu0 0.0
  %346 = vmatpush1.msra.mxu0 0.0
  %347 = vmatprep.subr.mxu0 0.0
  %348 = vmatpush1.msra.mxu0 0.0
  %349 = vmatprep.subr.mxu0 0.0
  %350 = vmatpush1.msra.mxu0 0.0
  %351 = vmatprep.subr.mxu0 0.0
  %352 = vmatpush1.msra.mxu0 0.0
  %353 = vmatprep.subr.mxu0 0.0
  %354 = vmatpush1.msra.mxu0 0.0
  %355 = vmatprep.subr.mxu0 0.0
  %356 = vmatpush1.msra.mxu0 0.0
  %357 = vmatprep.subr.mxu0 0.0
  %358 = vmatpush1.msra.mxu0 0.0
  %359 = vmatprep.subr.mxu0 0.0
  %360 = vmatpush1.msra.mxu0 0.0
  %361 = vmatprep.subr.mxu0 0.0
  %362 = vmatpush1.msra.mxu0 0.0
  %363 = vmatprep.subr.mxu0 0.0
  %364 = vmatpush1.msra.mxu0 0.0
  %365 = vmatprep.subr.mxu0 0.0
  %366 = vmatpush1.msra.mxu0 0.0
  %367 = vmatprep.subr.mxu0 0.0
  %368 = vmatpush1.msra.mxu0 0.0
  %369 = vmatprep.subr.mxu0 0.0
  %370 = vmatpush1.msra.mxu0 0.0
  %371 = vmatprep.mubr.f32.mxu0 0.0
  %372 = vmatmul.mubr.f32.gmra.mrb[0].mxu0 %v305
  %v373 = vpop.f32.mrb[0].mxu0
  %v374 = vadd.f32 0.0, %v373
  %v375 = vpop.f32.mrb[0].mxu0
  %376 = vdwg.mxu0
  %377 = vrot.lane.b32.xlu0 %v198, 120
  %v378 = vpop.permute.xlu0 %377
  %379 = vrot.lane.b32.xlu0 %v198, 88
  %v380 = vpop.permute.xlu0 %379
  %v381 = vsel %vm209, %v378, 0
  %v383 = vsel %vm209, %v380, 0
  %385 = vmatprep.subr.mxu0 0.0
  %386 = vmatpush1.xpose.msra.mxu0 %v383
  %387 = vmatprep.subr.mxu0 0.0
  %388 = vmatpush1.xpose.msra.mxu0 0.0
  %389 = vmatprep.subr.mxu0 0.0
  %390 = vmatpush1.xpose.msra.mxu0 0.0
  %391 = vmatprep.subr.mxu0 0.0
  %392 = vmatpush1.xpose.msra.mxu0 0.0
  %393 = vmatprep.subr.mxu0 0.0
  %394 = vmatpush1.xpose.msra.mxu0 0.0
  %395 = vmatprep.subr.mxu0 0.0
  %396 = vmatpush1.xpose.msra.mxu0 0.0
  %397 = vmatprep.subr.mxu0 0.0
  %398 = vmatpush1.xpose.msra.mxu0 0.0
  %399 = vmatprep.subr.mxu0 0.0
  %400 = vmatpush1.xpose.msra.mxu0 0.0
  %401 = vmatprep.subr.mxu0 0.0
  %402 = vmatpush1.xpose.msra.mxu0 0.0
  %403 = vmatprep.subr.mxu0 0.0
  %404 = vmatpush1.xpose.msra.mxu0 0.0
  %405 = vmatprep.subr.mxu0 0.0
  %406 = vmatpush1.xpose.msra.mxu0 0.0
  %407 = vmatprep.subr.mxu0 0.0
  %408 = vmatpush1.xpose.msra.mxu0 0.0
  %409 = vmatprep.subr.mxu0 0.0
  %410 = vmatpush1.xpose.msra.mxu0 0.0
  %411 = vmatprep.subr.mxu0 0.0
  %412 = vmatpush1.xpose.msra.mxu0 0.0
  %413 = vmatprep.subr.mxu0 0.0
  %414 = vmatpush1.xpose.msra.mxu0 0.0
  %415 = vmatprep.subr.mxu0 0.0
  %416 = vmatpush1.xpose.msra.mxu0 0.0
  %417 = vmatprep.subr.mxu0 0.0
  %418 = vmatpush1.xpose.msra.mxu0 0.0
  %419 = vmatprep.subr.mxu0 0.0
  %420 = vmatpush1.xpose.msra.mxu0 0.0
  %421 = vmatprep.subr.mxu0 0.0
  %422 = vmatpush1.xpose.msra.mxu0 0.0
  %423 = vmatprep.subr.mxu0 0.0
  %424 = vmatpush1.xpose.msra.mxu0 0.0
  %425 = vmatprep.subr.mxu0 0.0
  %426 = vmatpush1.xpose.msra.mxu0 0.0
  %427 = vmatprep.subr.mxu0 0.0
  %428 = vmatpush1.xpose.msra.mxu0 0.0
  %429 = vmatprep.subr.mxu0 0.0
  %430 = vmatpush1.xpose.msra.mxu0 0.0
  %431 = vmatprep.subr.mxu0 0.0
  %432 = vmatpush1.xpose.msra.mxu0 0.0
  %433 = vmatprep.subr.mxu0 0.0
  %434 = vmatpush1.xpose.msra.mxu0 0.0
  %435 = vmatprep.subr.mxu0 0.0
  %436 = vmatpush1.xpose.msra.mxu0 0.0
  %437 = vmatprep.subr.mxu0 0.0
  %438 = vmatpush1.xpose.msra.mxu0 0.0
  %439 = vmatprep.subr.mxu0 0.0
  %440 = vmatpush1.xpose.msra.mxu0 0.0
  %441 = vmatprep.subr.mxu0 0.0
  %442 = vmatpush1.xpose.msra.mxu0 0.0
  %443 = vmatprep.subr.mxu0 0.0
  %444 = vmatpush1.xpose.msra.mxu0 0.0
  %445 = vmatprep.subr.mxu0 0.0
  %446 = vmatpush1.xpose.msra.mxu0 0.0
  %447 = vmatprep.subr.mxu0 0.0
  %448 = vmatpush1.xpose.msra.mxu0 0.0
  %449 = vmatprep.mubr.f32.mxu0 0.0
  %450 = vmatmul.mubr.f32.gmra.mrb[0].mxu0 %v381
  %v451 = vpop.f32.mrb[0].mxu0
  %v452 = vadd.f32 0.0, %v451
  %v453 = vpop.f32.mrb[0].mxu0
  %454 = vdwg.mxu0
  %v455 = vmul.f32 %v452, 0.35355338
  %v456 = vadd.f32 %v455, %v288
  %v457 = vsel %vm209, %v456, -inf
  %458 = vmax.xlane.f32.xlu0 %v457
  %v459 = vpop.xlane.xlu0 %458
  %v460 = vsub.f32 %v456, %v459
  %v461 = vmul.f32 %v460, 1.442695
  %v462 = vpow.pop %v461
  %v463 = vsel %vm209, %v462, 0.0
  %464 = vadd.xlane.f32.xlu0 %v463
  %v465 = vpop.xlane.xlu0 %464
  %v466 = vrcp.pop %v465
  %v467 = vmul.f32 %v462, %v466
  %468 = vrot.lane.b32.xlu0 %v198, 56
  %v469 = vpop.permute.xlu0 %468
  %v472 = vsel %vm209, %v467, 0
  %474 = vmatprep.subr.mxu0 0.0
  %475 = vmatpush1.msra.mxu0 %v469
  %476 = vmatprep.subr.mxu0 0.0
  %477 = vmatpush1.msra.mxu0 0.0
  %478 = vmatprep.subr.mxu0 0.0
  %479 = vmatpush1.msra.mxu0 0.0
  %480 = vmatprep.subr.mxu0 0.0
  %481 = vmatpush1.msra.mxu0 0.0
  %482 = vmatprep.subr.mxu0 0.0
  %483 = vmatpush1.msra.mxu0 0.0
  %484 = vmatprep.subr.mxu0 0.0
  %485 = vmatpush1.msra.mxu0 0.0
  %486 = vmatprep.subr.mxu0 0.0
  %487 = vmatpush1.msra.mxu0 0.0
  %488 = vmatprep.subr.mxu0 0.0
  %489 = vmatpush1.msra.mxu0 0.0
  %490 = vmatprep.subr.mxu0 0.0
  %491 = vmatpush1.msra.mxu0 0.0
  %492 = vmatprep.subr.mxu0 0.0
  %493 = vmatpush1.msra.mxu0 0.0
  %494 = vmatprep.subr.mxu0 0.0
  %495 = vmatpush1.msra.mxu0 0.0
  %496 = vmatprep.subr.mxu0 0.0
  %497 = vmatpush1.msra.mxu0 0.0
  %498 = vmatprep.subr.mxu0 0.0
  %499 = vmatpush1.msra.mxu0 0.0
  %500 = vmatprep.subr.mxu0 0.0
  %501 = vmatpush1.msra.mxu0 0.0
  %502 = vmatprep.subr.mxu0 0.0
  %503 = vmatpush1.msra.mxu0 0.0
  %504 = vmatprep.subr.mxu0 0.0
  %505 = vmatpush1.msra.mxu0 0.0
  %506 = vmatprep.subr.mxu0 0.0
  %507 = vmatpush1.msra.mxu0 0.0
  %508 = vmatprep.subr.mxu0 0.0
  %509 = vmatpush1.msra.mxu0 0.0
  %510 = vmatprep.subr.mxu0 0.0
  %511 = vmatpush1.msra.mxu0 0.0
  %512 = vmatprep.subr.mxu0 0.0
  %513 = vmatpush1.msra.mxu0 0.0
  %514 = vmatprep.subr.mxu0 0.0
  %515 = vmatpush1.msra.mxu0 0.0
  %516 = vmatprep.subr.mxu0 0.0
  %517 = vmatpush1.msra.mxu0 0.0
  %518 = vmatprep.subr.mxu0 0.0
  %519 = vmatpush1.msra.mxu0 0.0
  %520 = vmatprep.subr.mxu0 0.0
  %521 = vmatpush1.msra.mxu0 0.0
  %522 = vmatprep.subr.mxu0 0.0
  %523 = vmatpush1.msra.mxu0 0.0
  %524 = vmatprep.subr.mxu0 0.0
  %525 = vmatpush1.msra.mxu0 0.0
  %526 = vmatprep.subr.mxu0 0.0
  %527 = vmatpush1.msra.mxu0 0.0
  %528 = vmatprep.subr.mxu0 0.0
  %529 = vmatpush1.msra.mxu0 0.0
  %530 = vmatprep.subr.mxu0 0.0
  %531 = vmatpush1.msra.mxu0 0.0
  %532 = vmatprep.subr.mxu0 0.0
  %533 = vmatpush1.msra.mxu0 0.0
  %534 = vmatprep.subr.mxu0 0.0
  %535 = vmatpush1.msra.mxu0 0.0
  %536 = vmatprep.subr.mxu0 0.0
  %537 = vmatpush1.msra.mxu0 0.0
  %538 = vmatprep.mubr.f32.mxu0 0.0
  %539 = vmatmul.mubr.f32.gmra.mrb[0].mxu0 %v472
  %v540 = vpop.f32.mrb[0].mxu0
  %v541 = vadd.f32 0.0, %v540
  %v542 = vpop.f32.mrb[0].mxu0
  %543 = vdwg.mxu0
  %544 = vrot.lane.b32.xlu0 %v198, 112
  %v545 = vpop.permute.xlu0 %544
  %546 = vrot.lane.b32.xlu0 %v198, 80
  %v547 = vpop.permute.xlu0 %546
  %v548 = vsel %vm209, %v545, 0
  %v550 = vsel %vm209, %v547, 0
  %552 = vmatprep.subr.mxu0 0.0
  %553 = vmatpush1.xpose.msra.mxu0 %v550
  %554 = vmatprep.subr.mxu0 0.0
  %555 = vmatpush1.xpose.msra.mxu0 0.0
  %556 = vmatprep.subr.mxu0 0.0
  %557 = vmatpush1.xpose.msra.mxu0 0.0
  %558 = vmatprep.subr.mxu0 0.0
  %559 = vmatpush1.xpose.msra.mxu0 0.0
  %560 = vmatprep.subr.mxu0 0.0
  %561 = vmatpush1.xpose.msra.mxu0 0.0
  %562 = vmatprep.subr.mxu0 0.0
  %563 = vmatpush1.xpose.msra.mxu0 0.0
  %564 = vmatprep.subr.mxu0 0.0
  %565 = vmatpush1.xpose.msra.mxu0 0.0
  %566 = vmatprep.subr.mxu0 0.0
  %567 = vmatpush1.xpose.msra.mxu0 0.0
  %568 = vmatprep.subr.mxu0 0.0
  %569 = vmatpush1.xpose.msra.mxu0 0.0
  %570 = vmatprep.subr.mxu0 0.0
  %571 = vmatpush1.xpose.msra.mxu0 0.0
  %572 = vmatprep.subr.mxu0 0.0
  %573 = vmatpush1.xpose.msra.mxu0 0.0
  %574 = vmatprep.subr.mxu0 0.0
  %575 = vmatpush1.xpose.msra.mxu0 0.0
  %576 = vmatprep.subr.mxu0 0.0
  %577 = vmatpush1.xpose.msra.mxu0 0.0
  %578 = vmatprep.subr.mxu0 0.0
  %579 = vmatpush1.xpose.msra.mxu0 0.0
  %580 = vmatprep.subr.mxu0 0.0
  %581 = vmatpush1.xpose.msra.mxu0 0.0
  %582 = vmatprep.subr.mxu0 0.0
  %583 = vmatpush1.xpose.msra.mxu0 0.0
  %584 = vmatprep.subr.mxu0 0.0
  %585 = vmatpush1.xpose.msra.mxu0 0.0
  %586 = vmatprep.subr.mxu0 0.0
  %587 = vmatpush1.xpose.msra.mxu0 0.0
  %588 = vmatprep.subr.mxu0 0.0
  %589 = vmatpush1.xpose.msra.mxu0 0.0
  %590 = vmatprep.subr.mxu0 0.0
  %591 = vmatpush1.xpose.msra.mxu0 0.0
  %592 = vmatprep.subr.mxu0 0.0
  %593 = vmatpush1.xpose.msra.mxu0 0.0
  %594 = vmatprep.subr.mxu0 0.0
  %595 = vmatpush1.xpose.msra.mxu0 0.0
  %596 = vmatprep.subr.mxu0 0.0
  %597 = vmatpush1.xpose.msra.mxu0 0.0
  %598 = vmatprep.subr.mxu0 0.0
  %599 = vmatpush1.xpose.msra.mxu0 0.0
  %600 = vmatprep.subr.mxu0 0.0
  %601 = vmatpush1.xpose.msra.mxu0 0.0
  %602 = vmatprep.subr.mxu0 0.0
  %603 = vmatpush1.xpose.msra.mxu0 0.0
  %604 = vmatprep.subr.mxu0 0.0
  %605 = vmatpush1.xpose.msra.mxu0 0.0
  %606 = vmatprep.subr.mxu0 0.0
  %607 = vmatpush1.xpose.msra.mxu0 0.0
  %608 = vmatprep.subr.mxu0 0.0
  %609 = vmatpush1.xpose.msra.mxu0 0.0
  %610 = vmatprep.subr.mxu0 0.0
  %611 = vmatpush1.xpose.msra.mxu0 0.0
  %612 = vmatprep.subr.mxu0 0.0
  %613 = vmatpush1.xpose.msra.mxu0 0.0
  %614 = vmatprep.subr.mxu0 0.0
  %615 = vmatpush1.xpose.msra.mxu0 0.0
  %616 = vmatprep.mubr.f32.mxu0 0.0
  %617 = vmatmul.mubr.f32.gmra.mrb[0].mxu0 %v548
  %v618 = vpop.f32.mrb[0].mxu0
  %v619 = vadd.f32 0.0, %v618
  %v620 = vpop.f32.mrb[0].mxu0
  %621 = vdwg.mxu0
  %v622 = vmul.f32 %v619, 0.35355338
  %v623 = vadd.f32 %v622, %v288
  %v624 = vsel %vm209, %v623, -inf
  %625 = vmax.xlane.f32.xlu0 %v624
  %v626 = vpop.xlane.xlu0 %625
  %v627 = vsub.f32 %v623, %v626
  %v628 = vmul.f32 %v627, 1.442695
  %v629 = vpow.pop %v628
  %v630 = vsel %vm209, %v629, 0.0
  %631 = vadd.xlane.f32.xlu0 %v630
  %v632 = vpop.xlane.xlu0 %631
  %v633 = vrcp.pop %v632
  %v634 = vmul.f32 %v629, %v633
  %635 = vrot.lane.b32.xlu0 %v198, 48
  %v636 = vpop.permute.xlu0 %635
  %v639 = vsel %vm209, %v634, 0
  %641 = vmatprep.subr.mxu0 0.0
  %642 = vmatpush1.msra.mxu0 %v636
  %643 = vmatprep.subr.mxu0 0.0
  %644 = vmatpush1.msra.mxu0 0.0
  %645 = vmatprep.subr.mxu0 0.0
  %646 = vmatpush1.msra.mxu0 0.0
  %647 = vmatprep.subr.mxu0 0.0
  %648 = vmatpush1.msra.mxu0 0.0
  %649 = vmatprep.subr.mxu0 0.0
  %650 = vmatpush1.msra.mxu0 0.0
  %651 = vmatprep.subr.mxu0 0.0
  %652 = vmatpush1.msra.mxu0 0.0
  %653 = vmatprep.subr.mxu0 0.0
  %654 = vmatpush1.msra.mxu0 0.0
  %655 = vmatprep.subr.mxu0 0.0
  %656 = vmatpush1.msra.mxu0 0.0
  %657 = vmatprep.subr.mxu0 0.0
  %658 = vmatpush1.msra.mxu0 0.0
  %659 = vmatprep.subr.mxu0 0.0
  %660 = vmatpush1.msra.mxu0 0.0
  %661 = vmatprep.subr.mxu0 0.0
  %662 = vmatpush1.msra.mxu0 0.0
  %663 = vmatprep.subr.mxu0 0.0
  %664 = vmatpush1.msra.mxu0 0.0
  %665 = vmatprep.subr.mxu0 0.0
  %666 = vmatpush1.msra.mxu0 0.0
  %667 = vmatprep.subr.mxu0 0.0
  %668 = vmatpush1.msra.mxu0 0.0
  %669 = vmatprep.subr.mxu0 0.0
  %670 = vmatpush1.msra.mxu0 0.0
  %671 = vmatprep.subr.mxu0 0.0
  %672 = vmatpush1.msra.mxu0 0.0
  %673 = vmatprep.subr.mxu0 0.0
  %674 = vmatpush1.msra.mxu0 0.0
  %675 = vmatprep.subr.mxu0 0.0
  %676 = vmatpush1.msra.mxu0 0.0
  %677 = vmatprep.subr.mxu0 0.0
  %678 = vmatpush1.msra.mxu0 0.0
  %679 = vmatprep.subr.mxu0 0.0
  %680 = vmatpush1.msra.mxu0 0.0
  %681 = vmatprep.subr.mxu0 0.0
  %682 = vmatpush1.msra.mxu0 0.0
  %683 = vmatprep.subr.mxu0 0.0
  %684 = vmatpush1.msra.mxu0 0.0
  %685 = vmatprep.subr.mxu0 0.0
  %686 = vmatpush1.msra.mxu0 0.0
  %687 = vmatprep.subr.mxu0 0.0
  %688 = vmatpush1.msra.mxu0 0.0
  %689 = vmatprep.subr.mxu0 0.0
  %690 = vmatpush1.msra.mxu0 0.0
  %691 = vmatprep.subr.mxu0 0.0
  %692 = vmatpush1.msra.mxu0 0.0
  %693 = vmatprep.subr.mxu0 0.0
  %694 = vmatpush1.msra.mxu0 0.0
  %695 = vmatprep.subr.mxu0 0.0
  %696 = vmatpush1.msra.mxu0 0.0
  %697 = vmatprep.subr.mxu0 0.0
  %698 = vmatpush1.msra.mxu0 0.0
  %699 = vmatprep.subr.mxu0 0.0
  %700 = vmatpush1.msra.mxu0 0.0
  %701 = vmatprep.subr.mxu0 0.0
  %702 = vmatpush1.msra.mxu0 0.0
  %703 = vmatprep.subr.mxu0 0.0
  %704 = vmatpush1.msra.mxu0 0.0
  %705 = vmatprep.mubr.f32.mxu0 0.0
  %706 = vmatmul.mubr.f32.gmra.mrb[0].mxu0 %v639
  %v707 = vpop.f32.mrb[0].mxu0
  %v708 = vadd.f32 0.0, %v707
  %v709 = vpop.f32.mrb[0].mxu0
  %710 = vdwg.mxu0
  %711 = vrot.lane.b32.xlu0 %v198, 104
  %v712 = vpop.permute.xlu0 %711
  %713 = vrot.lane.b32.xlu0 %v198, 72
  %v714 = vpop.permute.xlu0 %713
  %v715 = vsel %vm209, %v712, 0
  %v717 = vsel %vm209, %v714, 0
  %719 = vmatprep.subr.mxu0 0.0
  %720 = vmatpush1.xpose.msra.mxu0 %v717
  %721 = vmatprep.subr.mxu0 0.0
  %722 = vmatpush1.xpose.msra.mxu0 0.0
  %723 = vmatprep.subr.mxu0 0.0
  %724 = vmatpush1.xpose.msra.mxu0 0.0
  %725 = vmatprep.subr.mxu0 0.0
  %726 = vmatpush1.xpose.msra.mxu0 0.0
  %727 = vmatprep.subr.mxu0 0.0
  %728 = vmatpush1.xpose.msra.mxu0 0.0
  %729 = vmatprep.subr.mxu0 0.0
  %730 = vmatpush1.xpose.msra.mxu0 0.0
  %731 = vmatprep.subr.mxu0 0.0
  %732 = vmatpush1.xpose.msra.mxu0 0.0
  %733 = vmatprep.subr.mxu0 0.0
  %734 = vmatpush1.xpose.msra.mxu0 0.0
  %735 = vmatprep.subr.mxu0 0.0
  %736 = vmatpush1.xpose.msra.mxu0 0.0
  %737 = vmatprep.subr.mxu0 0.0
  %738 = vmatpush1.xpose.msra.mxu0 0.0
  %739 = vmatprep.subr.mxu0 0.0
  %740 = vmatpush1.xpose.msra.mxu0 0.0
  %741 = vmatprep.subr.mxu0 0.0
  %742 = vmatpush1.xpose.msra.mxu0 0.0
  %743 = vmatprep.subr.mxu0 0.0
  %744 = vmatpush1.xpose.msra.mxu0 0.0
  %745 = vmatprep.subr.mxu0 0.0
  %746 = vmatpush1.xpose.msra.mxu0 0.0
  %747 = vmatprep.subr.mxu0 0.0
  %748 = vmatpush1.xpose.msra.mxu0 0.0
  %749 = vmatprep.subr.mxu0 0.0
  %750 = vmatpush1.xpose.msra.mxu0 0.0
  %751 = vmatprep.subr.mxu0 0.0
  %752 = vmatpush1.xpose.msra.mxu0 0.0
  %753 = vmatprep.subr.mxu0 0.0
  %754 = vmatpush1.xpose.msra.mxu0 0.0
  %755 = vmatprep.subr.mxu0 0.0
  %756 = vmatpush1.xpose.msra.mxu0 0.0
  %757 = vmatprep.subr.mxu0 0.0
  %758 = vmatpush1.xpose.msra.mxu0 0.0
  %759 = vmatprep.subr.mxu0 0.0
  %760 = vmatpush1.xpose.msra.mxu0 0.0
  %761 = vmatprep.subr.mxu0 0.0
  %762 = vmatpush1.xpose.msra.mxu0 0.0
  %763 = vmatprep.subr.mxu0 0.0
  %764 = vmatpush1.xpose.msra.mxu0 0.0
  %765 = vmatprep.subr.mxu0 0.0
  %766 = vmatpush1.xpose.msra.mxu0 0.0
  %767 = vmatprep.subr.mxu0 0.0
  %768 = vmatpush1.xpose.msra.mxu0 0.0
  %769 = vmatprep.subr.mxu0 0.0
  %770 = vmatpush1.xpose.msra.mxu0 0.0
  %771 = vmatprep.subr.mxu0 0.0
  %772 = vmatpush1.xpose.msra.mxu0 0.0
  %773 = vmatprep.subr.mxu0 0.0
  %774 = vmatpush1.xpose.msra.mxu0 0.0
  %775 = vmatprep.subr.mxu0 0.0
  %776 = vmatpush1.xpose.msra.mxu0 0.0
  %777 = vmatprep.subr.mxu0 0.0
  %778 = vmatpush1.xpose.msra.mxu0 0.0
  %779 = vmatprep.subr.mxu0 0.0
  %780 = vmatpush1.xpose.msra.mxu0 0.0
  %781 = vmatprep.subr.mxu0 0.0
  %782 = vmatpush1.xpose.msra.mxu0 0.0
  %783 = vmatprep.mubr.f32.mxu0 0.0
  %784 = vmatmul.mubr.f32.gmra.mrb[0].mxu0 %v715
  %v785 = vpop.f32.mrb[0].mxu0
  %v786 = vadd.f32 0.0, %v785
  %v787 = vpop.f32.mrb[0].mxu0
  %788 = vdwg.mxu0
  %v789 = vmul.f32 %v786, 0.35355338
  %v790 = vadd.f32 %v789, %v288
  %v791 = vsel %vm209, %v790, -inf
  %792 = vmax.xlane.f32.xlu0 %v791
  %v793 = vpop.xlane.xlu0 %792
  %v794 = vsub.f32 %v790, %v793
  %v795 = vmul.f32 %v794, 1.442695
  %v796 = vpow.pop %v795
  %v797 = vsel %vm209, %v796, 0.0
  %798 = vadd.xlane.f32.xlu0 %v797
  %v799 = vpop.xlane.xlu0 %798
  %v800 = vrcp.pop %v799
  %v801 = vmul.f32 %v796, %v800
  %802 = vrot.lane.b32.xlu0 %v198, 40
  %v803 = vpop.permute.xlu0 %802
  %v806 = vsel %vm209, %v801, 0
  %808 = vmatprep.subr.mxu0 0.0
  %809 = vmatpush1.msra.mxu0 %v803
  %810 = vmatprep.subr.mxu0 0.0
  %811 = vmatpush1.msra.mxu0 0.0
  %812 = vmatprep.subr.mxu0 0.0
  %813 = vmatpush1.msra.mxu0 0.0
  %814 = vmatprep.subr.mxu0 0.0
  %815 = vmatpush1.msra.mxu0 0.0
  %816 = vmatprep.subr.mxu0 0.0
  %817 = vmatpush1.msra.mxu0 0.0
  %818 = vmatprep.subr.mxu0 0.0
  %819 = vmatpush1.msra.mxu0 0.0
  %820 = vmatprep.subr.mxu0 0.0
  %821 = vmatpush1.msra.mxu0 0.0
  %822 = vmatprep.subr.mxu0 0.0
  %823 = vmatpush1.msra.mxu0 0.0
  %824 = vmatprep.subr.mxu0 0.0
  %825 = vmatpush1.msra.mxu0 0.0
  %826 = vmatprep.subr.mxu0 0.0
  %827 = vmatpush1.msra.mxu0 0.0
  %828 = vmatprep.subr.mxu0 0.0
  %829 = vmatpush1.msra.mxu0 0.0
  %830 = vmatprep.subr.mxu0 0.0
  %831 = vmatpush1.msra.mxu0 0.0
  %832 = vmatprep.subr.mxu0 0.0
  %833 = vmatpush1.msra.mxu0 0.0
  %834 = vmatprep.subr.mxu0 0.0
  %835 = vmatpush1.msra.mxu0 0.0
  %836 = vmatprep.subr.mxu0 0.0
  %837 = vmatpush1.msra.mxu0 0.0
  %838 = vmatprep.subr.mxu0 0.0
  %839 = vmatpush1.msra.mxu0 0.0
  %840 = vmatprep.subr.mxu0 0.0
  %841 = vmatpush1.msra.mxu0 0.0
  %842 = vmatprep.subr.mxu0 0.0
  %843 = vmatpush1.msra.mxu0 0.0
  %844 = vmatprep.subr.mxu0 0.0
  %845 = vmatpush1.msra.mxu0 0.0
  %846 = vmatprep.subr.mxu0 0.0
  %847 = vmatpush1.msra.mxu0 0.0
  %848 = vmatprep.subr.mxu0 0.0
  %849 = vmatpush1.msra.mxu0 0.0
  %850 = vmatprep.subr.mxu0 0.0
  %851 = vmatpush1.msra.mxu0 0.0
  %852 = vmatprep.subr.mxu0 0.0
  %853 = vmatpush1.msra.mxu0 0.0
  %854 = vmatprep.subr.mxu0 0.0
  %855 = vmatpush1.msra.mxu0 0.0
  %856 = vmatprep.subr.mxu0 0.0
  %857 = vmatpush1.msra.mxu0 0.0
  %858 = vmatprep.subr.mxu0 0.0
  %859 = vmatpush1.msra.mxu0 0.0
  %860 = vmatprep.subr.mxu0 0.0
  %861 = vmatpush1.msra.mxu0 0.0
  %862 = vmatprep.subr.mxu0 0.0
  %863 = vmatpush1.msra.mxu0 0.0
  %864 = vmatprep.subr.mxu0 0.0
  %865 = vmatpush1.msra.mxu0 0.0
  %866 = vmatprep.subr.mxu0 0.0
  %867 = vmatpush1.msra.mxu0 0.0
  %868 = vmatprep.subr.mxu0 0.0
  %869 = vmatpush1.msra.mxu0 0.0
  %870 = vmatprep.subr.mxu0 0.0
  %871 = vmatpush1.msra.mxu0 0.0
  %872 = vmatprep.mubr.f32.mxu0 0.0
  %873 = vmatmul.mubr.f32.gmra.mrb[0].mxu0 %v806
  %v874 = vpop.f32.mrb[0].mxu0
  %v875 = vadd.f32 0.0, %v874
  %v876 = vpop.f32.mrb[0].mxu0
  %877 = vdwg.mxu0
  %879 = vrot.lane.b32.xlu0 %v541, 8
  %v880 = vpop.permute.xlu0 %879
  %883 = vrot.lane.b32.xlu0 %v708, 16
  %v884 = vpop.permute.xlu0 %883
  %887 = vrot.lane.b32.xlu0 %v875, 24
  %v888 = vpop.permute.xlu0 %887
  %v890 = vsel %vm209, %v374, %v880
  %vm891 = vcmask 130048
  %v892 = vsel %vm891, %v890, %v884
  %vm893 = vcmask 195584
  %v894 = vsel %vm893, %v892, %v888
  %896 = vrot.lane.b32.xlu0 %v203, 96
  %v897 = vpop.permute.xlu0 %896
  %v898 = vsel %vm209, %v203, 0
  %v900 = vsel %vm209, %v897, 0
  %902 = vmatprep.subr.mxu0 0.0
  %903 = vmatpush1.xpose.msra.mxu0 %v900
  %904 = vmatprep.subr.mxu0 0.0
  %905 = vmatpush1.xpose.msra.mxu0 0.0
  %906 = vmatprep.subr.mxu0 0.0
  %907 = vmatpush1.xpose.msra.mxu0 0.0
  %908 = vmatprep.subr.mxu0 0.0
  %909 = vmatpush1.xpose.msra.mxu0 0.0
  %910 = vmatprep.subr.mxu0 0.0
  %911 = vmatpush1.xpose.msra.mxu0 0.0
  %912 = vmatprep.subr.mxu0 0.0
  %913 = vmatpush1.xpose.msra.mxu0 0.0
  %914 = vmatprep.subr.mxu0 0.0
  %915 = vmatpush1.xpose.msra.mxu0 0.0
  %916 = vmatprep.subr.mxu0 0.0
  %917 = vmatpush1.xpose.msra.mxu0 0.0
  %918 = vmatprep.subr.mxu0 0.0
  %919 = vmatpush1.xpose.msra.mxu0 0.0
  %920 = vmatprep.subr.mxu0 0.0
  %921 = vmatpush1.xpose.msra.mxu0 0.0
  %922 = vmatprep.subr.mxu0 0.0
  %923 = vmatpush1.xpose.msra.mxu0 0.0
  %924 = vmatprep.subr.mxu0 0.0
  %925 = vmatpush1.xpose.msra.mxu0 0.0
  %926 = vmatprep.subr.mxu0 0.0
  %927 = vmatpush1.xpose.msra.mxu0 0.0
  %928 = vmatprep.subr.mxu0 0.0
  %929 = vmatpush1.xpose.msra.mxu0 0.0
  %930 = vmatprep.subr.mxu0 0.0
  %931 = vmatpush1.xpose.msra.mxu0 0.0
  %932 = vmatprep.subr.mxu0 0.0
  %933 = vmatpush1.xpose.msra.mxu0 0.0
  %934 = vmatprep.subr.mxu0 0.0
  %935 = vmatpush1.xpose.msra.mxu0 0.0
  %936 = vmatprep.subr.mxu0 0.0
  %937 = vmatpush1.xpose.msra.mxu0 0.0
  %938 = vmatprep.subr.mxu0 0.0
  %939 = vmatpush1.xpose.msra.mxu0 0.0
  %940 = vmatprep.subr.mxu0 0.0
  %941 = vmatpush1.xpose.msra.mxu0 0.0
  %942 = vmatprep.subr.mxu0 0.0
  %943 = vmatpush1.xpose.msra.mxu0 0.0
  %944 = vmatprep.subr.mxu0 0.0
  %945 = vmatpush1.xpose.msra.mxu0 0.0
  %946 = vmatprep.subr.mxu0 0.0
  %947 = vmatpush1.xpose.msra.mxu0 0.0
  %948 = vmatprep.subr.mxu0 0.0
  %949 = vmatpush1.xpose.msra.mxu0 0.0
  %950 = vmatprep.subr.mxu0 0.0
  %951 = vmatpush1.xpose.msra.mxu0 0.0
  %952 = vmatprep.subr.mxu0 0.0
  %953 = vmatpush1.xpose.msra.mxu0 0.0
  %954 = vmatprep.subr.mxu0 0.0
  %955 = vmatpush1.xpose.msra.mxu0 0.0
  %956 = vmatprep.subr.mxu0 0.0
  %957 = vmatpush1.xpose.msra.mxu0 0.0
  %958 = vmatprep.subr.mxu0 0.0
  %959 = vmatpush1.xpose.msra.mxu0 0.0
  %960 = vmatprep.subr.mxu0 0.0
  %961 = vmatpush1.xpose.msra.mxu0 0.0
  %962 = vmatprep.subr.mxu0 0.0
  %963 = vmatpush1.xpose.msra.mxu0 0.0
  %964 = vmatprep.subr.mxu0 0.0
  %965 = vmatpush1.xpose.msra.mxu0 0.0
  %966 = vmatprep.mubr.f32.mxu0 0.0
  %967 = vmatmul.mubr.f32.gmra.mrb[0].mxu0 %v898
  %v968 = vpop.f32.mrb[0].mxu0
  %v969 = vadd.f32 0.0, %v968
  %v970 = vpop.f32.mrb[0].mxu0
  %971 = vdwg.mxu0
  %v972 = vmul.f32 %v969, 0.35355338
  %v973 = vlaneseq
  %v974 = vshrl.u32 %v973, 7
  %v975 = vsub.s32 1, %v974
  %v976 = vrot.slane %v113, %v975
  %v977 = vadd.f32 %v972, %v976
  %v978 = vsel %vm209, %v977, -inf
  %979 = vmax.xlane.f32.xlu0 %v978
  %v980 = vpop.xlane.xlu0 %979
  %v981 = vsub.f32 %v977, %v980
  %v982 = vmul.f32 %v981, 1.442695
  %v983 = vpow.pop %v982
  %v984 = vsel %vm209, %v983, 0.0
  %985 = vadd.xlane.f32.xlu0 %v984
  %v986 = vpop.xlane.xlu0 %985
  %v987 = vrcp.pop %v986
  %v988 = vmul.f32 %v983, %v987
  %989 = vrot.lane.b32.xlu0 %v203, 64
  %v990 = vpop.permute.xlu0 %989
  %v993 = vsel %vm209, %v988, 0
  %995 = vmatprep.subr.mxu0 0.0
  %996 = vmatpush1.msra.mxu0 %v990
  %997 = vmatprep.subr.mxu0 0.0
  %998 = vmatpush1.msra.mxu0 0.0
  %999 = vmatprep.subr.mxu0 0.0
  %1000 = vmatpush1.msra.mxu0 0.0
  %1001 = vmatprep.subr.mxu0 0.0
  %1002 = vmatpush1.msra.mxu0 0.0
  %1003 = vmatprep.subr.mxu0 0.0
  %1004 = vmatpush1.msra.mxu0 0.0
  %1005 = vmatprep.subr.mxu0 0.0
  %1006 = vmatpush1.msra.mxu0 0.0
  %1007 = vmatprep.subr.mxu0 0.0
  %1008 = vmatpush1.msra.mxu0 0.0
  %1009 = vmatprep.subr.mxu0 0.0
  %1010 = vmatpush1.msra.mxu0 0.0
  %1011 = vmatprep.subr.mxu0 0.0
  %1012 = vmatpush1.msra.mxu0 0.0
  %1013 = vmatprep.subr.mxu0 0.0
  %1014 = vmatpush1.msra.mxu0 0.0
  %1015 = vmatprep.subr.mxu0 0.0
  %1016 = vmatpush1.msra.mxu0 0.0
  %1017 = vmatprep.subr.mxu0 0.0
  %1018 = vmatpush1.msra.mxu0 0.0
  %1019 = vmatprep.subr.mxu0 0.0
  %1020 = vmatpush1.msra.mxu0 0.0
  %1021 = vmatprep.subr.mxu0 0.0
  %1022 = vmatpush1.msra.mxu0 0.0
  %1023 = vmatprep.subr.mxu0 0.0
  %1024 = vmatpush1.msra.mxu0 0.0
  %1025 = vmatprep.subr.mxu0 0.0
  %1026 = vmatpush1.msra.mxu0 0.0
  %1027 = vmatprep.subr.mxu0 0.0
  %1028 = vmatpush1.msra.mxu0 0.0
  %1029 = vmatprep.subr.mxu0 0.0
  %1030 = vmatpush1.msra.mxu0 0.0
  %1031 = vmatprep.subr.mxu0 0.0
  %1032 = vmatpush1.msra.mxu0 0.0
  %1033 = vmatprep.subr.mxu0 0.0
  %1034 = vmatpush1.msra.mxu0 0.0
  %1035 = vmatprep.subr.mxu0 0.0
  %1036 = vmatpush1.msra.mxu0 0.0
  %1037 = vmatprep.subr.mxu0 0.0
  %1038 = vmatpush1.msra.mxu0 0.0
  %1039 = vmatprep.subr.mxu0 0.0
  %1040 = vmatpush1.msra.mxu0 0.0
  %1041 = vmatprep.subr.mxu0 0.0
  %1042 = vmatpush1.msra.mxu0 0.0
  %1043 = vmatprep.subr.mxu0 0.0
  %1044 = vmatpush1.msra.mxu0 0.0
  %1045 = vmatprep.subr.mxu0 0.0
  %1046 = vmatpush1.msra.mxu0 0.0
  %1047 = vmatprep.subr.mxu0 0.0
  %1048 = vmatpush1.msra.mxu0 0.0
  %1049 = vmatprep.subr.mxu0 0.0
  %1050 = vmatpush1.msra.mxu0 0.0
  %1051 = vmatprep.subr.mxu0 0.0
  %1052 = vmatpush1.msra.mxu0 0.0
  %1053 = vmatprep.subr.mxu0 0.0
  %1054 = vmatpush1.msra.mxu0 0.0
  %1055 = vmatprep.subr.mxu0 0.0
  %1056 = vmatpush1.msra.mxu0 0.0
  %1057 = vmatprep.subr.mxu0 0.0
  %1058 = vmatpush1.msra.mxu0 0.0
  %1059 = vmatprep.mubr.f32.mxu0 0.0
  %1060 = vmatmul.mubr.f32.gmra.mrb[0].mxu0 %v993
  %v1061 = vpop.f32.mrb[0].mxu0
  %v1062 = vadd.f32 0.0, %v1061
  %v1063 = vpop.f32.mrb[0].mxu0
  %1064 = vdwg.mxu0
  %1065 = vrot.lane.b32.xlu0 %v203, 120
  %v1066 = vpop.permute.xlu0 %1065
  %1067 = vrot.lane.b32.xlu0 %v203, 88
  %v1068 = vpop.permute.xlu0 %1067
  %v1069 = vsel %vm209, %v1066, 0
  %v1071 = vsel %vm209, %v1068, 0
  %1073 = vmatprep.subr.mxu0 0.0
  %1074 = vmatpush1.xpose.msra.mxu0 %v1071
  %1075 = vmatprep.subr.mxu0 0.0
  %1076 = vmatpush1.xpose.msra.mxu0 0.0
  %1077 = vmatprep.subr.mxu0 0.0
  %1078 = vmatpush1.xpose.msra.mxu0 0.0
  %1079 = vmatprep.subr.mxu0 0.0
  %1080 = vmatpush1.xpose.msra.mxu0 0.0
  %1081 = vmatprep.subr.mxu0 0.0
  %1082 = vmatpush1.xpose.msra.mxu0 0.0
  %1083 = vmatprep.subr.mxu0 0.0
  %1084 = vmatpush1.xpose.msra.mxu0 0.0
  %1085 = vmatprep.subr.mxu0 0.0
  %1086 = vmatpush1.xpose.msra.mxu0 0.0
  %1087 = vmatprep.subr.mxu0 0.0
  %1088 = vmatpush1.xpose.msra.mxu0 0.0
  %1089 = vmatprep.subr.mxu0 0.0
  %1090 = vmatpush1.xpose.msra.mxu0 0.0
  %1091 = vmatprep.subr.mxu0 0.0
  %1092 = vmatpush1.xpose.msra.mxu0 0.0
  %1093 = vmatprep.subr.mxu0 0.0
  %1094 = vmatpush1.xpose.msra.mxu0 0.0
  %1095 = vmatprep.subr.mxu0 0.0
  %1096 = vmatpush1.xpose.msra.mxu0 0.0
  %1097 = vmatprep.subr.mxu0 0.0
  %1098 = vmatpush1.xpose.msra.mxu0 0.0
  %1099 = vmatprep.subr.mxu0 0.0
  %1100 = vmatpush1.xpose.msra.mxu0 0.0
  %1101 = vmatprep.subr.mxu0 0.0
  %1102 = vmatpush1.xpose.msra.mxu0 0.0
  %1103 = vmatprep.subr.mxu0 0.0
  %1104 = vmatpush1.xpose.msra.mxu0 0.0
  %1105 = vmatprep.subr.mxu0 0.0
  %1106 = vmatpush1.xpose.msra.mxu0 0.0
  %1107 = vmatprep.subr.mxu0 0.0
  %1108 = vmatpush1.xpose.msra.mxu0 0.0
  %1109 = vmatprep.subr.mxu0 0.0
  %1110 = vmatpush1.xpose.msra.mxu0 0.0
  %1111 = vmatprep.subr.mxu0 0.0
  %1112 = vmatpush1.xpose.msra.mxu0 0.0
  %1113 = vmatprep.subr.mxu0 0.0
  %1114 = vmatpush1.xpose.msra.mxu0 0.0
  %1115 = vmatprep.subr.mxu0 0.0
  %1116 = vmatpush1.xpose.msra.mxu0 0.0
  %1117 = vmatprep.subr.mxu0 0.0
  %1118 = vmatpush1.xpose.msra.mxu0 0.0
  %1119 = vmatprep.subr.mxu0 0.0
  %1120 = vmatpush1.xpose.msra.mxu0 0.0
  %1121 = vmatprep.subr.mxu0 0.0
  %1122 = vmatpush1.xpose.msra.mxu0 0.0
  %1123 = vmatprep.subr.mxu0 0.0
  %1124 = vmatpush1.xpose.msra.mxu0 0.0
  %1125 = vmatprep.subr.mxu0 0.0
  %1126 = vmatpush1.xpose.msra.mxu0 0.0
  %1127 = vmatprep.subr.mxu0 0.0
  %1128 = vmatpush1.xpose.msra.mxu0 0.0
  %1129 = vmatprep.subr.mxu0 0.0
  %1130 = vmatpush1.xpose.msra.mxu0 0.0
  %1131 = vmatprep.subr.mxu0 0.0
  %1132 = vmatpush1.xpose.msra.mxu0 0.0
  %1133 = vmatprep.subr.mxu0 0.0
  %1134 = vmatpush1.xpose.msra.mxu0 0.0
  %1135 = vmatprep.subr.mxu0 0.0
  %1136 = vmatpush1.xpose.msra.mxu0 0.0
  %1137 = vmatprep.mubr.f32.mxu0 0.0
  %1138 = vmatmul.mubr.f32.gmra.mrb[0].mxu0 %v1069
  %v1139 = vpop.f32.mrb[0].mxu0
  %v1140 = vadd.f32 0.0, %v1139
  %v1141 = vpop.f32.mrb[0].mxu0
  %1142 = vdwg.mxu0
  %v1143 = vmul.f32 %v1140, 0.35355338
  %v1144 = vadd.f32 %v1143, %v976
  %v1145 = vsel %vm209, %v1144, -inf
  %1146 = vmax.xlane.f32.xlu0 %v1145
  %v1147 = vpop.xlane.xlu0 %1146
  %v1148 = vsub.f32 %v1144, %v1147
  %v1149 = vmul.f32 %v1148, 1.442695
  %v1150 = vpow.pop %v1149
  %v1151 = vsel %vm209, %v1150, 0.0
  %1152 = vadd.xlane.f32.xlu0 %v1151
  %v1153 = vpop.xlane.xlu0 %1152
  %v1154 = vrcp.pop %v1153
  %v1155 = vmul.f32 %v1150, %v1154
  %1156 = vrot.lane.b32.xlu0 %v203, 56
  %v1157 = vpop.permute.xlu0 %1156
  %v1160 = vsel %vm209, %v1155, 0
  %1162 = vmatprep.subr.mxu0 0.0
  %1163 = vmatpush1.msra.mxu0 %v1157
  %1164 = vmatprep.subr.mxu0 0.0
  %1165 = vmatpush1.msra.mxu0 0.0
  %1166 = vmatprep.subr.mxu0 0.0
  %1167 = vmatpush1.msra.mxu0 0.0
  %1168 = vmatprep.subr.mxu0 0.0
  %1169 = vmatpush1.msra.mxu0 0.0
  %1170 = vmatprep.subr.mxu0 0.0
  %1171 = vmatpush1.msra.mxu0 0.0
  %1172 = vmatprep.subr.mxu0 0.0
  %1173 = vmatpush1.msra.mxu0 0.0
  %1174 = vmatprep.subr.mxu0 0.0
  %1175 = vmatpush1.msra.mxu0 0.0
  %1176 = vmatprep.subr.mxu0 0.0
  %1177 = vmatpush1.msra.mxu0 0.0
  %1178 = vmatprep.subr.mxu0 0.0
  %1179 = vmatpush1.msra.mxu0 0.0
  %1180 = vmatprep.subr.mxu0 0.0
  %1181 = vmatpush1.msra.mxu0 0.0
  %1182 = vmatprep.subr.mxu0 0.0
  %1183 = vmatpush1.msra.mxu0 0.0
  %1184 = vmatprep.subr.mxu0 0.0
  %1185 = vmatpush1.msra.mxu0 0.0
  %1186 = vmatprep.subr.mxu0 0.0
  %1187 = vmatpush1.msra.mxu0 0.0
  %1188 = vmatprep.subr.mxu0 0.0
  %1189 = vmatpush1.msra.mxu0 0.0
  %1190 = vmatprep.subr.mxu0 0.0
  %1191 = vmatpush1.msra.mxu0 0.0
  %1192 = vmatprep.subr.mxu0 0.0
  %1193 = vmatpush1.msra.mxu0 0.0
  %1194 = vmatprep.subr.mxu0 0.0
  %1195 = vmatpush1.msra.mxu0 0.0
  %1196 = vmatprep.subr.mxu0 0.0
  %1197 = vmatpush1.msra.mxu0 0.0
  %1198 = vmatprep.subr.mxu0 0.0
  %1199 = vmatpush1.msra.mxu0 0.0
  %1200 = vmatprep.subr.mxu0 0.0
  %1201 = vmatpush1.msra.mxu0 0.0
  %1202 = vmatprep.subr.mxu0 0.0
  %1203 = vmatpush1.msra.mxu0 0.0
  %1204 = vmatprep.subr.mxu0 0.0
  %1205 = vmatpush1.msra.mxu0 0.0
  %1206 = vmatprep.subr.mxu0 0.0
  %1207 = vmatpush1.msra.mxu0 0.0
  %1208 = vmatprep.subr.mxu0 0.0
  %1209 = vmatpush1.msra.mxu0 0.0
  %1210 = vmatprep.subr.mxu0 0.0
  %1211 = vmatpush1.msra.mxu0 0.0
  %1212 = vmatprep.subr.mxu0 0.0
  %1213 = vmatpush1.msra.mxu0 0.0
  %1214 = vmatprep.subr.mxu0 0.0
  %1215 = vmatpush1.msra.mxu0 0.0
  %1216 = vmatprep.subr.mxu0 0.0
  %1217 = vmatpush1.msra.mxu0 0.0
  %1218 = vmatprep.subr.mxu0 0.0
  %1219 = vmatpush1.msra.mxu0 0.0
  %1220 = vmatprep.subr.mxu0 0.0
  %1221 = vmatpush1.msra.mxu0 0.0
  %1222 = vmatprep.subr.mxu0 0.0
  %1223 = vmatpush1.msra.mxu0 0.0
  %1224 = vmatprep.subr.mxu0 0.0
  %1225 = vmatpush1.msra.mxu0 0.0
  %1226 = vmatprep.mubr.f32.mxu0 0.0
  %1227 = vmatmul.mubr.f32.gmra.mrb[0].mxu0 %v1160
  %v1228 = vpop.f32.mrb[0].mxu0
  %v1229 = vadd.f32 0.0, %v1228
  %v1230 = vpop.f32.mrb[0].mxu0
  %1231 = vdwg.mxu0
  %1232 = vrot.lane.b32.xlu0 %v203, 112
  %v1233 = vpop.permute.xlu0 %1232
  %1234 = vrot.lane.b32.xlu0 %v203, 80
  %v1235 = vpop.permute.xlu0 %1234
  %v1236 = vsel %vm209, %v1233, 0
  %v1238 = vsel %vm209, %v1235, 0
  %1240 = vmatprep.subr.mxu0 0.0
  %1241 = vmatpush1.xpose.msra.mxu0 %v1238
  %1242 = vmatprep.subr.mxu0 0.0
  %1243 = vmatpush1.xpose.msra.mxu0 0.0
  %1244 = vmatprep.subr.mxu0 0.0
  %1245 = vmatpush1.xpose.msra.mxu0 0.0
  %1246 = vmatprep.subr.mxu0 0.0
  %1247 = vmatpush1.xpose.msra.mxu0 0.0
  %1248 = vmatprep.subr.mxu0 0.0
  %1249 = vmatpush1.xpose.msra.mxu0 0.0
  %1250 = vmatprep.subr.mxu0 0.0
  %1251 = vmatpush1.xpose.msra.mxu0 0.0
  %1252 = vmatprep.subr.mxu0 0.0
  %1253 = vmatpush1.xpose.msra.mxu0 0.0
  %1254 = vmatprep.subr.mxu0 0.0
  %1255 = vmatpush1.xpose.msra.mxu0 0.0
  %1256 = vmatprep.subr.mxu0 0.0
  %1257 = vmatpush1.xpose.msra.mxu0 0.0
  %1258 = vmatprep.subr.mxu0 0.0
  %1259 = vmatpush1.xpose.msra.mxu0 0.0
  %1260 = vmatprep.subr.mxu0 0.0
  %1261 = vmatpush1.xpose.msra.mxu0 0.0
  %1262 = vmatprep.subr.mxu0 0.0
  %1263 = vmatpush1.xpose.msra.mxu0 0.0
  %1264 = vmatprep.subr.mxu0 0.0
  %1265 = vmatpush1.xpose.msra.mxu0 0.0
  %1266 = vmatprep.subr.mxu0 0.0
  %1267 = vmatpush1.xpose.msra.mxu0 0.0
  %1268 = vmatprep.subr.mxu0 0.0
  %1269 = vmatpush1.xpose.msra.mxu0 0.0
  %1270 = vmatprep.subr.mxu0 0.0
  %1271 = vmatpush1.xpose.msra.mxu0 0.0
  %1272 = vmatprep.subr.mxu0 0.0
  %1273 = vmatpush1.xpose.msra.mxu0 0.0
  %1274 = vmatprep.subr.mxu0 0.0
  %1275 = vmatpush1.xpose.msra.mxu0 0.0
  %1276 = vmatprep.subr.mxu0 0.0
  %1277 = vmatpush1.xpose.msra.mxu0 0.0
  %1278 = vmatprep.subr.mxu0 0.0
  %1279 = vmatpush1.xpose.msra.mxu0 0.0
  %1280 = vmatprep.subr.mxu0 0.0
  %1281 = vmatpush1.xpose.msra.mxu0 0.0
  %1282 = vmatprep.subr.mxu0 0.0
  %1283 = vmatpush1.xpose.msra.mxu0 0.0
  %1284 = vmatprep.subr.mxu0 0.0
  %1285 = vmatpush1.xpose.msra.mxu0 0.0
  %1286 = vmatprep.subr.mxu0 0.0
  %1287 = vmatpush1.xpose.msra.mxu0 0.0
  %1288 = vmatprep.subr.mxu0 0.0
  %1289 = vmatpush1.xpose.msra.mxu0 0.0
  %1290 = vmatprep.subr.mxu0 0.0
  %1291 = vmatpush1.xpose.msra.mxu0 0.0
  %1292 = vmatprep.subr.mxu0 0.0
  %1293 = vmatpush1.xpose.msra.mxu0 0.0
  %1294 = vmatprep.subr.mxu0 0.0
  %1295 = vmatpush1.xpose.msra.mxu0 0.0
  %1296 = vmatprep.subr.mxu0 0.0
  %1297 = vmatpush1.xpose.msra.mxu0 0.0
  %1298 = vmatprep.subr.mxu0 0.0
  %1299 = vmatpush1.xpose.msra.mxu0 0.0
  %1300 = vmatprep.subr.mxu0 0.0
  %1301 = vmatpush1.xpose.msra.mxu0 0.0
  %1302 = vmatprep.subr.mxu0 0.0
  %1303 = vmatpush1.xpose.msra.mxu0 0.0
  %1304 = vmatprep.mubr.f32.mxu0 0.0
  %1305 = vmatmul.mubr.f32.gmra.mrb[0].mxu0 %v1236
  %v1306 = vpop.f32.mrb[0].mxu0
  %v1307 = vadd.f32 0.0, %v1306
  %v1308 = vpop.f32.mrb[0].mxu0
  %1309 = vdwg.mxu0
  %v1310 = vmul.f32 %v1307, 0.35355338
  %v1311 = vadd.f32 %v1310, %v976
  %v1312 = vsel %vm209, %v1311, -inf
  %1313 = vmax.xlane.f32.xlu0 %v1312
  %v1314 = vpop.xlane.xlu0 %1313
  %v1315 = vsub.f32 %v1311, %v1314
  %v1316 = vmul.f32 %v1315, 1.442695
  %v1317 = vpow.pop %v1316
  %v1318 = vsel %vm209, %v1317, 0.0
  %1319 = vadd.xlane.f32.xlu0 %v1318
  %v1320 = vpop.xlane.xlu0 %1319
  %v1321 = vrcp.pop %v1320
  %v1322 = vmul.f32 %v1317, %v1321
  %1323 = vrot.lane.b32.xlu0 %v203, 48
  %v1324 = vpop.permute.xlu0 %1323
  %v1327 = vsel %vm209, %v1322, 0
  %1329 = vmatprep.subr.mxu0 0.0
  %1330 = vmatpush1.msra.mxu0 %v1324
  %1331 = vmatprep.subr.mxu0 0.0
  %1332 = vmatpush1.msra.mxu0 0.0
  %1333 = vmatprep.subr.mxu0 0.0
  %1334 = vmatpush1.msra.mxu0 0.0
  %1335 = vmatprep.subr.mxu0 0.0
  %1336 = vmatpush1.msra.mxu0 0.0
  %1337 = vmatprep.subr.mxu0 0.0
  %1338 = vmatpush1.msra.mxu0 0.0
  %1339 = vmatprep.subr.mxu0 0.0
  %1340 = vmatpush1.msra.mxu0 0.0
  %1341 = vmatprep.subr.mxu0 0.0
  %1342 = vmatpush1.msra.mxu0 0.0
  %1343 = vmatprep.subr.mxu0 0.0
  %1344 = vmatpush1.msra.mxu0 0.0
  %1345 = vmatprep.subr.mxu0 0.0
  %1346 = vmatpush1.msra.mxu0 0.0
  %1347 = vmatprep.subr.mxu0 0.0
  %1348 = vmatpush1.msra.mxu0 0.0
  %1349 = vmatprep.subr.mxu0 0.0
  %1350 = vmatpush1.msra.mxu0 0.0
  %1351 = vmatprep.subr.mxu0 0.0
  %1352 = vmatpush1.msra.mxu0 0.0
  %1353 = vmatprep.subr.mxu0 0.0
  %1354 = vmatpush1.msra.mxu0 0.0
  %1355 = vmatprep.subr.mxu0 0.0
  %1356 = vmatpush1.msra.mxu0 0.0
  %1357 = vmatprep.subr.mxu0 0.0
  %1358 = vmatpush1.msra.mxu0 0.0
  %1359 = vmatprep.subr.mxu0 0.0
  %1360 = vmatpush1.msra.mxu0 0.0
  %1361 = vmatprep.subr.mxu0 0.0
  %1362 = vmatpush1.msra.mxu0 0.0
  %1363 = vmatprep.subr.mxu0 0.0
  %1364 = vmatpush1.msra.mxu0 0.0
  %1365 = vmatprep.subr.mxu0 0.0
  %1366 = vmatpush1.msra.mxu0 0.0
  %1367 = vmatprep.subr.mxu0 0.0
  %1368 = vmatpush1.msra.mxu0 0.0
  %1369 = vmatprep.subr.mxu0 0.0
  %1370 = vmatpush1.msra.mxu0 0.0
  %1371 = vmatprep.subr.mxu0 0.0
  %1372 = vmatpush1.msra.mxu0 0.0
  %1373 = vmatprep.subr.mxu0 0.0
  %1374 = vmatpush1.msra.mxu0 0.0
  %1375 = vmatprep.subr.mxu0 0.0
  %1376 = vmatpush1.msra.mxu0 0.0
  %1377 = vmatprep.subr.mxu0 0.0
  %1378 = vmatpush1.msra.mxu0 0.0
  %1379 = vmatprep.subr.mxu0 0.0
  %1380 = vmatpush1.msra.mxu0 0.0
  %1381 = vmatprep.subr.mxu0 0.0
  %1382 = vmatpush1.msra.mxu0 0.0
  %1383 = vmatprep.subr.mxu0 0.0
  %1384 = vmatpush1.msra.mxu0 0.0
  %1385 = vmatprep.subr.mxu0 0.0
  %1386 = vmatpush1.msra.mxu0 0.0
  %1387 = vmatprep.subr.mxu0 0.0
  %1388 = vmatpush1.msra.mxu0 0.0
  %1389 = vmatprep.subr.mxu0 0.0
  %1390 = vmatpush1.msra.mxu0 0.0
  %1391 = vmatprep.subr.mxu0 0.0
  %1392 = vmatpush1.msra.mxu0 0.0
  %1393 = vmatprep.mubr.f32.mxu0 0.0
  %1394 = vmatmul.mubr.f32.gmra.mrb[0].mxu0 %v1327
  %v1395 = vpop.f32.mrb[0].mxu0
  %v1396 = vadd.f32 0.0, %v1395
  %v1397 = vpop.f32.mrb[0].mxu0
  %1398 = vdwg.mxu0
  %1399 = vrot.lane.b32.xlu0 %v203, 104
  %v1400 = vpop.permute.xlu0 %1399
  %1401 = vrot.lane.b32.xlu0 %v203, 72
  %v1402 = vpop.permute.xlu0 %1401
  %v1403 = vsel %vm209, %v1400, 0
  %v1405 = vsel %vm209, %v1402, 0
  %1407 = vmatprep.subr.mxu0 0.0
  %1408 = vmatpush1.xpose.msra.mxu0 %v1405
  %1409 = vmatprep.subr.mxu0 0.0
  %1410 = vmatpush1.xpose.msra.mxu0 0.0
  %1411 = vmatprep.subr.mxu0 0.0
  %1412 = vmatpush1.xpose.msra.mxu0 0.0
  %1413 = vmatprep.subr.mxu0 0.0
  %1414 = vmatpush1.xpose.msra.mxu0 0.0
  %1415 = vmatprep.subr.mxu0 0.0
  %1416 = vmatpush1.xpose.msra.mxu0 0.0
  %1417 = vmatprep.subr.mxu0 0.0
  %1418 = vmatpush1.xpose.msra.mxu0 0.0
  %1419 = vmatprep.subr.mxu0 0.0
  %1420 = vmatpush1.xpose.msra.mxu0 0.0
  %1421 = vmatprep.subr.mxu0 0.0
  %1422 = vmatpush1.xpose.msra.mxu0 0.0
  %1423 = vmatprep.subr.mxu0 0.0
  %1424 = vmatpush1.xpose.msra.mxu0 0.0
  %1425 = vmatprep.subr.mxu0 0.0
  %1426 = vmatpush1.xpose.msra.mxu0 0.0
  %1427 = vmatprep.subr.mxu0 0.0
  %1428 = vmatpush1.xpose.msra.mxu0 0.0
  %1429 = vmatprep.subr.mxu0 0.0
  %1430 = vmatpush1.xpose.msra.mxu0 0.0
  %1431 = vmatprep.subr.mxu0 0.0
  %1432 = vmatpush1.xpose.msra.mxu0 0.0
  %1433 = vmatprep.subr.mxu0 0.0
  %1434 = vmatpush1.xpose.msra.mxu0 0.0
  %1435 = vmatprep.subr.mxu0 0.0
  %1436 = vmatpush1.xpose.msra.mxu0 0.0
  %1437 = vmatprep.subr.mxu0 0.0
  %1438 = vmatpush1.xpose.msra.mxu0 0.0
  %1439 = vmatprep.subr.mxu0 0.0
  %1440 = vmatpush1.xpose.msra.mxu0 0.0
  %1441 = vmatprep.subr.mxu0 0.0
  %1442 = vmatpush1.xpose.msra.mxu0 0.0
  %1443 = vmatprep.subr.mxu0 0.0
  %1444 = vmatpush1.xpose.msra.mxu0 0.0
  %1445 = vmatprep.subr.mxu0 0.0
  %1446 = vmatpush1.xpose.msra.mxu0 0.0
  %1447 = vmatprep.subr.mxu0 0.0
  %1448 = vmatpush1.xpose.msra.mxu0 0.0
  %1449 = vmatprep.subr.mxu0 0.0
  %1450 = vmatpush1.xpose.msra.mxu0 0.0
  %1451 = vmatprep.subr.mxu0 0.0
  %1452 = vmatpush1.xpose.msra.mxu0 0.0
  %1453 = vmatprep.subr.mxu0 0.0
  %1454 = vmatpush1.xpose.msra.mxu0 0.0
  %1455 = vmatprep.subr.mxu0 0.0
  %1456 = vmatpush1.xpose.msra.mxu0 0.0
  %1457 = vmatprep.subr.mxu0 0.0
  %1458 = vmatpush1.xpose.msra.mxu0 0.0
  %1459 = vmatprep.subr.mxu0 0.0
  %1460 = vmatpush1.xpose.msra.mxu0 0.0
  %1461 = vmatprep.subr.mxu0 0.0
  %1462 = vmatpush1.xpose.msra.mxu0 0.0
  %1463 = vmatprep.subr.mxu0 0.0
  %1464 = vmatpush1.xpose.msra.mxu0 0.0
  %1465 = vmatprep.subr.mxu0 0.0
  %1466 = vmatpush1.xpose.msra.mxu0 0.0
  %1467 = vmatprep.subr.mxu0 0.0
  %1468 = vmatpush1.xpose.msra.mxu0 0.0
  %1469 = vmatprep.subr.mxu0 0.0
  %1470 = vmatpush1.xpose.msra.mxu0 0.0
  %1471 = vmatprep.mubr.f32.mxu0 0.0
  %1472 = vmatmul.mubr.f32.gmra.mrb[0].mxu0 %v1403
  %v1473 = vpop.f32.mrb[0].mxu0
  %v1474 = vadd.f32 0.0, %v1473
  %v1475 = vpop.f32.mrb[0].mxu0
  %1476 = vdwg.mxu0
  %v1477 = vmul.f32 %v1474, 0.35355338
  %v1478 = vadd.f32 %v1477, %v976
  %v1479 = vsel %vm209, %v1478, -inf
  %1480 = vmax.xlane.f32.xlu0 %v1479
  %v1481 = vpop.xlane.xlu0 %1480
  %v1482 = vsub.f32 %v1478, %v1481
  %v1483 = vmul.f32 %v1482, 1.442695
  %v1484 = vpow.pop %v1483
  %v1485 = vsel %vm209, %v1484, 0.0
  %1486 = vadd.xlane.f32.xlu0 %v1485
  %v1487 = vpop.xlane.xlu0 %1486
  %v1488 = vrcp.pop %v1487
  %v1489 = vmul.f32 %v1484, %v1488
  %1490 = vrot.lane.b32.xlu0 %v203, 40
  %v1491 = vpop.permute.xlu0 %1490
  %v1494 = vsel %vm209, %v1489, 0
  %1496 = vmatprep.subr.mxu0 0.0
  %1497 = vmatpush1.msra.mxu0 %v1491
  %1498 = vmatprep.subr.mxu0 0.0
  %1499 = vmatpush1.msra.mxu0 0.0
  %1500 = vmatprep.subr.mxu0 0.0
  %1501 = vmatpush1.msra.mxu0 0.0
  %1502 = vmatprep.subr.mxu0 0.0
  %1503 = vmatpush1.msra.mxu0 0.0
  %1504 = vmatprep.subr.mxu0 0.0
  %1505 = vmatpush1.msra.mxu0 0.0
  %1506 = vmatprep.subr.mxu0 0.0
  %1507 = vmatpush1.msra.mxu0 0.0
  %1508 = vmatprep.subr.mxu0 0.0
  %1509 = vmatpush1.msra.mxu0 0.0
  %1510 = vmatprep.subr.mxu0 0.0
  %1511 = vmatpush1.msra.mxu0 0.0
  %1512 = vmatprep.subr.mxu0 0.0
  %1513 = vmatpush1.msra.mxu0 0.0
  %1514 = vmatprep.subr.mxu0 0.0
  %1515 = vmatpush1.msra.mxu0 0.0
  %1516 = vmatprep.subr.mxu0 0.0
  %1517 = vmatpush1.msra.mxu0 0.0
  %1518 = vmatprep.subr.mxu0 0.0
  %1519 = vmatpush1.msra.mxu0 0.0
  %1520 = vmatprep.subr.mxu0 0.0
  %1521 = vmatpush1.msra.mxu0 0.0
  %1522 = vmatprep.subr.mxu0 0.0
  %1523 = vmatpush1.msra.mxu0 0.0
  %1524 = vmatprep.subr.mxu0 0.0
  %1525 = vmatpush1.msra.mxu0 0.0
  %1526 = vmatprep.subr.mxu0 0.0
  %1527 = vmatpush1.msra.mxu0 0.0
  %1528 = vmatprep.subr.mxu0 0.0
  %1529 = vmatpush1.msra.mxu0 0.0
  %1530 = vmatprep.subr.mxu0 0.0
  %1531 = vmatpush1.msra.mxu0 0.0
  %1532 = vmatprep.subr.mxu0 0.0
  %1533 = vmatpush1.msra.mxu0 0.0
  %1534 = vmatprep.subr.mxu0 0.0
  %1535 = vmatpush1.msra.mxu0 0.0
  %1536 = vmatprep.subr.mxu0 0.0
  %1537 = vmatpush1.msra.mxu0 0.0
  %1538 = vmatprep.subr.mxu0 0.0
  %1539 = vmatpush1.msra.mxu0 0.0
  %1540 = vmatprep.subr.mxu0 0.0
  %1541 = vmatpush1.msra.mxu0 0.0
  %1542 = vmatprep.subr.mxu0 0.0
  %1543 = vmatpush1.msra.mxu0 0.0
  %1544 = vmatprep.subr.mxu0 0.0
  %1545 = vmatpush1.msra.mxu0 0.0
  %1546 = vmatprep.subr.mxu0 0.0
  %1547 = vmatpush1.msra.mxu0 0.0
  %1548 = vmatprep.subr.mxu0 0.0
  %1549 = vmatpush1.msra.mxu0 0.0
  %1550 = vmatprep.subr.mxu0 0.0
  %1551 = vmatpush1.msra.mxu0 0.0
  %1552 = vmatprep.subr.mxu0 0.0
  %1553 = vmatpush1.msra.mxu0 0.0
  %1554 = vmatprep.subr.mxu0 0.0
  %1555 = vmatpush1.msra.mxu0 0.0
  %1556 = vmatprep.subr.mxu0 0.0
  %1557 = vmatpush1.msra.mxu0 0.0
  %1558 = vmatprep.subr.mxu0 0.0
  %1559 = vmatpush1.msra.mxu0 0.0
  %1560 = vmatprep.mubr.f32.mxu0 0.0
  %1561 = vmatmul.mubr.f32.gmra.mrb[0].mxu0 %v1494
  %v1562 = vpop.f32.mrb[0].mxu0
  %v1563 = vadd.f32 0.0, %v1562
  %v1564 = vpop.f32.mrb[0].mxu0
  %1565 = vdwg.mxu0
  %1567 = vrot.lane.b32.xlu0 %v1229, 8
  %v1568 = vpop.permute.xlu0 %1567
  %1571 = vrot.lane.b32.xlu0 %v1396, 16
  %v1572 = vpop.permute.xlu0 %1571
  %1575 = vrot.lane.b32.xlu0 %v1563, 24
  %v1576 = vpop.permute.xlu0 %1575
  %v1578 = vsel %vm209, %v1062, %v1568
  %v1579 = vsel %vm891, %v1578, %v1572
  %v1580 = vsel %vm893, %v1579, %v1576
  %v1581 = vld [vmem:[%s6] sm:$0xff]
  %v1582 = vld [vmem:[%s6 + $0x8] sm:$0xff]
  %v1583 = vld [vmem:[%s6 + $0x10] sm:$0xff]
  %v1584 = vld [vmem:[%s6 + $0x18] sm:$0xff]
  %v1585 = vld [vmem:[%s7] sm:$0x1]
  %v1587 = vlaneseq
  %v1588 = vshrl.u32 %v1587, 7
  %v1589 = vsub.s32 0, %v1588
  %v1590 = vrot.slane %v1585, %v1589
  %v1593 = vsel %vm69, %v894, 0
  %v1596 = vsel %vm69, %v1580, 0
  %1598 = vmatprep.subr.mxu0 0.0
  %1599 = vmatpush1.msra.mxu0 %v1581
  %1600 = vmatprep.subr.mxu0 0.0
  %1601 = vmatpush1.msra.mxu0 %v1582
  %1602 = vmatprep.subr.mxu0 0.0
  %1603 = vmatpush1.msra.mxu0 %v1583
  %1604 = vmatprep.subr.mxu0 0.0
  %1605 = vmatpush1.msra.mxu0 %v1584
  %1606 = vmatprep.subr.mxu0 0.0
  %1607 = vmatpush1.msra.mxu0 0.0
  %1608 = vmatprep.subr.mxu0 0.0
  %1609 = vmatpush1.msra.mxu0 0.0
  %1610 = vmatprep.subr.mxu0 0.0
  %1611 = vmatpush1.msra.mxu0 0.0
  %1612 = vmatprep.subr.mxu0 0.0
  %1613 = vmatpush1.msra.mxu0 0.0
  %1614 = vmatprep.subr.mxu0 0.0
  %1615 = vmatpush1.msra.mxu0 0.0
  %1616 = vmatprep.subr.mxu0 0.0
  %1617 = vmatpush1.msra.mxu0 0.0
  %1618 = vmatprep.subr.mxu0 0.0
  %1619 = vmatpush1.msra.mxu0 0.0
  %1620 = vmatprep.subr.mxu0 0.0
  %1621 = vmatpush1.msra.mxu0 0.0
  %1622 = vmatprep.subr.mxu0 0.0
  %1623 = vmatpush1.msra.mxu0 0.0
  %1624 = vmatprep.subr.mxu0 0.0
  %1625 = vmatpush1.msra.mxu0 0.0
  %1626 = vmatprep.subr.mxu0 0.0
  %1627 = vmatpush1.msra.mxu0 0.0
  %1628 = vmatprep.subr.mxu0 0.0
  %1629 = vmatpush1.msra.mxu0 0.0
  %1630 = vmatprep.subr.mxu0 0.0
  %1631 = vmatpush1.msra.mxu0 0.0
  %1632 = vmatprep.subr.mxu0 0.0
  %1633 = vmatpush1.msra.mxu0 0.0
  %1634 = vmatprep.subr.mxu0 0.0
  %1635 = vmatpush1.msra.mxu0 0.0
  %1636 = vmatprep.subr.mxu0 0.0
  %1637 = vmatpush1.msra.mxu0 0.0
  %1638 = vmatprep.subr.mxu0 0.0
  %1639 = vmatpush1.msra.mxu0 0.0
  %1640 = vmatprep.subr.mxu0 0.0
  %1641 = vmatpush1.msra.mxu0 0.0
  %1642 = vmatprep.subr.mxu0 0.0
  %1643 = vmatpush1.msra.mxu0 0.0
  %1644 = vmatprep.subr.mxu0 0.0
  %1645 = vmatpush1.msra.mxu0 0.0
  %1646 = vmatprep.subr.mxu0 0.0
  %1647 = vmatpush1.msra.mxu0 0.0
  %1648 = vmatprep.subr.mxu0 0.0
  %1649 = vmatpush1.msra.mxu0 0.0
  %1650 = vmatprep.subr.mxu0 0.0
  %1651 = vmatpush1.msra.mxu0 0.0
  %1652 = vmatprep.subr.mxu0 0.0
  %1653 = vmatpush1.msra.mxu0 0.0
  %1654 = vmatprep.subr.mxu0 0.0
  %1655 = vmatpush1.msra.mxu0 0.0
  %1656 = vmatprep.subr.mxu0 0.0
  %1657 = vmatpush1.msra.mxu0 0.0
  %1658 = vmatprep.subr.mxu0 0.0
  %1659 = vmatpush1.msra.mxu0 0.0
  %1660 = vmatprep.subr.mxu0 0.0
  %1661 = vmatpush1.msra.mxu0 0.0
  %1662 = vmatprep.mubr.f32.mxu0 0.0
  %1663 = vmatmul.mubr.f32.gmra.mrb[0].mxu0 %v1593
  %v1664 = vpop.f32.mrb[0].mxu0
  %v1665 = vadd.f32 %v1590, %v1664
  %v1666 = vpop.f32.mrb[0].mxu0
  %1667 = vmatprep.mubr.f32.mxu0 0.0
  %1668 = vmatmul.mubr.f32.gmra.mrb[0].mxu0 %v1596
  %v1669 = vpop.f32.mrb[0].mxu0
  %v1670 = vadd.f32 %v1590, %v1669
  %v1671 = vpop.f32.mrb[0].mxu0
  %1672 = vdwg.mxu0
  %v1673 = vadd.f32 %v111, %v1665
  %v1674 = vadd.f32 %v112, %v1670
  %v1675 = vld [vmem:[%s8] sm:$0x1]
  %v1676 = vld [vmem:[%s9] sm:$0x1]
  %v1677 = vsel %vm69, %v1673, 0.0
  %1678 = vadd.xlane.f32.xlu0 %v1677
  %v1679 = vpop.xlane.xlu0 %1678
  %v1680 = vsel %vm69, %v1674, 0.0
  %1681 = vadd.xlane.f32.xlu0 %v1680
  %v1682 = vpop.xlane.xlu0 %1681
  %v1683 = vmul.f32 %v1679, %v76
  %v1684 = vmul.f32 %v1682, %v76
  %v1685 = vsub.f32 %v1673, %v1683
  %v1686 = vsub.f32 %v1674, %v1684
  %v1687 = vmul.f32 %v1685, %v1685
  %v1688 = vmul.f32 %v1686, %v1686
  %v1689 = vsel %vm69, %v1687, 0.0
  %1690 = vadd.xlane.f32.xlu0 %v1689
  %v1691 = vpop.xlane.xlu0 %1690
  %v1692 = vsel %vm69, %v1688, 0.0
  %1693 = vadd.xlane.f32.xlu0 %v1692
  %v1694 = vpop.xlane.xlu0 %1693
  %v1695 = vmul.f32 %v1691, %v76
  %v1696 = vmul.f32 %v1694, %v76
  %v1697 = vadd.f32 %v1695, 1e-12
  %v1698 = vadd.f32 %v1696, 1e-12
  %v1699 = vrsqrt.pop %v1697
  %v1700 = vrsqrt.pop %v1698
  %v1701 = vmul.f32 %v1685, %v1699
  %v1702 = vmul.f32 %v1686, %v1700
  %v1704 = vlaneseq
  %v1705 = vshrl.u32 %v1704, 7
  %v1706 = vsub.s32 0, %v1705
  %v1707 = vrot.slane %v1675, %v1706
  %v1709 = vmul.f32 %v1701, %v1707
  %v1710 = vmul.f32 %v1702, %v1707
  %v1712 = vlaneseq
  %v1713 = vshrl.u32 %v1712, 7
  %v1714 = vsub.s32 0, %v1713
  %v1715 = vrot.slane %v1676, %v1714
  %v1717 = vadd.f32 %v1709, %v1715
  %v1718 = vadd.f32 %v1710, %v1715
  %v1719 = vld [vmem:[%s10] sm:$0xff]
  %v1720 = vld [vmem:[%s10 + $0x8] sm:$0xff]
  %v1721 = vld [vmem:[%s10 + $0x10] sm:$0xff]
  %v1722 = vld [vmem:[%s10 + $0x18] sm:$0xff]
  %v1723 = vld [vmem:[%s11] sm:$0x1]
  %v1725 = vlaneseq
  %v1726 = vshrl.u32 %v1725, 7
  %v1727 = vsub.s32 0, %v1726
  %v1728 = vrot.slane %v1723, %v1727
  %v1731 = vsel %vm69, %v1717, 0
  %v1734 = vsel %vm69, %v1718, 0
  %1736 = vmatprep.subr.mxu0 0.0
  %1737 = vmatpush1.msra.mxu0 %v1719
  %1738 = vmatprep.subr.mxu0 0.0
  %1739 = vmatpush1.msra.mxu0 %v1720
  %1740 = vmatprep.subr.mxu0 0.0
  %1741 = vmatpush1.msra.mxu0 %v1721
  %1742 = vmatprep.subr.mxu0 0.0
  %1743 = vmatpush1.msra.mxu0 %v1722
  %1744 = vmatprep.subr.mxu0 0.0
  %1745 = vmatpush1.msra.mxu0 0.0
  %1746 = vmatprep.subr.mxu0 0.0
  %1747 = vmatpush1.msra.mxu0 0.0
  %1748 = vmatprep.subr.mxu0 0.0
  %1749 = vmatpush1.msra.mxu0 0.0
  %1750 = vmatprep.subr.mxu0 0.0
  %1751 = vmatpush1.msra.mxu0 0.0
  %1752 = vmatprep.subr.mxu0 0.0
  %1753 = vmatpush1.msra.mxu0 0.0
  %1754 = vmatprep.subr.mxu0 0.0
  %1755 = vmatpush1.msra.mxu0 0.0
  %1756 = vmatprep.subr.mxu0 0.0
  %1757 = vmatpush1.msra.mxu0 0.0
  %1758 = vmatprep.subr.mxu0 0.0
  %1759 = vmatpush1.msra.mxu0 0.0
  %1760 = vmatprep.subr.mxu0 0.0
  %1761 = vmatpush1.msra.mxu0 0.0
  %1762 = vmatprep.subr.mxu0 0.0
  %1763 = vmatpush1.msra.mxu0 0.0
  %1764 = vmatprep.subr.mxu0 0.0
  %1765 = vmatpush1.msra.mxu0 0.0
  %1766 = vmatprep.subr.mxu0 0.0
  %1767 = vmatpush1.msra.mxu0 0.0
  %1768 = vmatprep.subr.mxu0 0.0
  %1769 = vmatpush1.msra.mxu0 0.0
  %1770 = vmatprep.subr.mxu0 0.0
  %1771 = vmatpush1.msra.mxu0 0.0
  %1772 = vmatprep.subr.mxu0 0.0
  %1773 = vmatpush1.msra.mxu0 0.0
  %1774 = vmatprep.subr.mxu0 0.0
  %1775 = vmatpush1.msra.mxu0 0.0
  %1776 = vmatprep.subr.mxu0 0.0
  %1777 = vmatpush1.msra.mxu0 0.0
  %1778 = vmatprep.subr.mxu0 0.0
  %1779 = vmatpush1.msra.mxu0 0.0
  %1780 = vmatprep.subr.mxu0 0.0
  %1781 = vmatpush1.msra.mxu0 0.0
  %1782 = vmatprep.subr.mxu0 0.0
  %1783 = vmatpush1.msra.mxu0 0.0
  %1784 = vmatprep.subr.mxu0 0.0
  %1785 = vmatpush1.msra.mxu0 0.0
  %1786 = vmatprep.subr.mxu0 0.0
  %1787 = vmatpush1.msra.mxu0 0.0
  %1788 = vmatprep.subr.mxu0 0.0
  %1789 = vmatpush1.msra.mxu0 0.0
  %1790 = vmatprep.subr.mxu0 0.0
  %1791 = vmatpush1.msra.mxu0 0.0
  %1792 = vmatprep.subr.mxu0 0.0
  %1793 = vmatpush1.msra.mxu0 0.0
  %1794 = vmatprep.subr.mxu0 0.0
  %1795 = vmatpush1.msra.mxu0 0.0
  %1796 = vmatprep.subr.mxu0 0.0
  %1797 = vmatpush1.msra.mxu0 0.0
  %1798 = vmatprep.subr.mxu0 0.0
  %1799 = vmatpush1.msra.mxu0 0.0
  %1800 = vmatprep.mubr.f32.mxu0 0.0
  %1801 = vmatmul.mubr.f32.gmra.mrb[0].mxu0 %v1731
  %v1802 = vpop.f32.mrb[0].mxu0
  %v1803 = vadd.f32 %v1728, %v1802
  %v1804 = vpop.f32.mrb[0].mxu0
  %1805 = vmatprep.mubr.f32.mxu0 0.0
  %1806 = vmatmul.mubr.f32.gmra.mrb[0].mxu0 %v1734
  %v1807 = vpop.f32.mrb[0].mxu0
  %v1808 = vadd.f32 %v1728, %v1807
  %v1809 = vpop.f32.mrb[0].mxu0
  %1810 = vdwg.mxu0
  %v1811 = vmul.f32 %v1803, %v1803
  %v1812 = vmul.f32 %v1808, %v1808
  %v1813 = vmul.f32 %v1803, %v1811
  %v1814 = vmul.f32 %v1808, %v1812
  %v1815 = vmul.f32 %v1813, 0.044715
  %v1816 = vmul.f32 %v1814, 0.044715
  %v1817 = vadd.f32 %v1803, %v1815
  %v1818 = vadd.f32 %v1808, %v1816
  %v1819 = vmul.f32 %v1817, 0.7978846
  %v1820 = vmul.f32 %v1818, 0.7978846
  %v1821 = vtanh.pop %v1819
  %v1822 = vtanh.pop %v1820
  %v1823 = vadd.f32 %v1821, 1.0
  %v1824 = vadd.f32 %v1822, 1.0
  %v1825 = vmul.f32 %v1823, 0.5
  %v1826 = vmul.f32 %v1824, 0.5
  %v1827 = vmul.f32 %v1803, %v1825
  %v1828 = vmul.f32 %v1808, %v1826
  %v1829 = vld [vmem:[%s12] sm:$0xff]
  %v1830 = vld [vmem:[%s12 + $0x8] sm:$0xff]
  %v1831 = vld [vmem:[%s12 + $0x10] sm:$0xff]
  %v1832 = vld [vmem:[%s12 + $0x18] sm:$0xff]
  %v1833 = vld [vmem:[%s12 + $0x20] sm:$0xff]
  %v1834 = vld [vmem:[%s12 + $0x28] sm:$0xff]
  %v1835 = vld [vmem:[%s12 + $0x30] sm:$0xff]
  %v1836 = vld [vmem:[%s12 + $0x38] sm:$0xff]
  %v1837 = vld [vmem:[%s13] sm:$0x1]
  %v1839 = vlaneseq
  %v1840 = vshrl.u32 %v1839, 7
  %v1841 = vsub.s32 0, %v1840
  %v1842 = vrot.slane %v1837, %v1841
  %vm1844 = vcmask 523264
  %v1846 = vsel %vm1844, %v1827, 0
  %v1849 = vsel %vm1844, %v1828, 0
  %1851 = vmatprep.subr.mxu0 0.0
  %1852 = vmatpush1.msra.mxu0 %v1829
  %1853 = vmatprep.subr.mxu0 0.0
  %1854 = vmatpush1.msra.mxu0 %v1830
  %1855 = vmatprep.subr.mxu0 0.0
  %1856 = vmatpush1.msra.mxu0 %v1831
  %1857 = vmatprep.subr.mxu0 0.0
  %1858 = vmatpush1.msra.mxu0 %v1832
  %1859 = vmatprep.subr.mxu0 0.0
  %1860 = vmatpush1.msra.mxu0 %v1833
  %1861 = vmatprep.subr.mxu0 0.0
  %1862 = vmatpush1.msra.mxu0 %v1834
  %1863 = vmatprep.subr.mxu0 0.0
  %1864 = vmatpush1.msra.mxu0 %v1835
  %1865 = vmatprep.subr.mxu0 0.0
  %1866 = vmatpush1.msra.mxu0 %v1836
  %1867 = vmatprep.subr.mxu0 0.0
  %1868 = vmatpush1.msra.mxu0 0.0
  %1869 = vmatprep.subr.mxu0 0.0
  %1870 = vmatpush1.msra.mxu0 0.0
  %1871 = vmatprep.subr.mxu0 0.0
  %1872 = vmatpush1.msra.mxu0 0.0
  %1873 = vmatprep.subr.mxu0 0.0
  %1874 = vmatpush1.msra.mxu0 0.0
  %1875 = vmatprep.subr.mxu0 0.0
  %1876 = vmatpush1.msra.mxu0 0.0
  %1877 = vmatprep.subr.mxu0 0.0
  %1878 = vmatpush1.msra.mxu0 0.0
  %1879 = vmatprep.subr.mxu0 0.0
  %1880 = vmatpush1.msra.mxu0 0.0
  %1881 = vmatprep.subr.mxu0 0.0
  %1882 = vmatpush1.msra.mxu0 0.0
  %1883 = vmatprep.subr.mxu0 0.0
  %1884 = vmatpush1.msra.mxu0 0.0
  %1885 = vmatprep.subr.mxu0 0.0
  %1886 = vmatpush1.msra.mxu0 0.0
  %1887 = vmatprep.subr.mxu0 0.0
  %1888 = vmatpush1.msra.mxu0 0.0
  %1889 = vmatprep.subr.mxu0 0.0
  %1890 = vmatpush1.msra.mxu0 0.0
  %1891 = vmatprep.subr.mxu0 0.0
  %1892 = vmatpush1.msra.mxu0 0.0
  %1893 = vmatprep.subr.mxu0 0.0
  %1894 = vmatpush1.msra.mxu0 0.0
  %1895 = vmatprep.subr.mxu0 0.0
  %1896 = vmatpush1.msra.mxu0 0.0
  %1897 = vmatprep.subr.mxu0 0.0
  %1898 = vmatpush1.msra.mxu0 0.0
  %1899 = vmatprep.subr.mxu0 0.0
  %1900 = vmatpush1.msra.mxu0 0.0
  %1901 = vmatprep.subr.mxu0 0.0
  %1902 = vmatpush1.msra.mxu0 0.0
  %1903 = vmatprep.subr.mxu0 0.0
  %1904 = vmatpush1.msra.mxu0 0.0
  %1905 = vmatprep.subr.mxu0 0.0
  %1906 = vmatpush1.msra.mxu0 0.0
  %1907 = vmatprep.subr.mxu0 0.0
  %1908 = vmatpush1.msra.mxu0 0.0
  %1909 = vmatprep.subr.mxu0 0.0
  %1910 = vmatpush1.msra.mxu0 0.0
  %1911 = vmatprep.subr.mxu0 0.0
  %1912 = vmatpush1.msra.mxu0 0.0
  %1913 = vmatprep.subr.mxu0 0.0
  %1914 = vmatpush1.msra.mxu0 0.0
  %1915 = vmatprep.mubr.f32.mxu0 0.0
  %1916 = vmatmul.mubr.f32.gmra.mrb[0].mxu0 %v1846
  %v1917 = vpop.f32.mrb[0].mxu0
  %v1918 = vadd.f32 %v1842, %v1917
  %v1919 = vpop.f32.mrb[0].mxu0
  %1920 = vmatprep.mubr.f32.mxu0 0.0
  %1921 = vmatmul.mubr.f32.gmra.mrb[0].mxu0 %v1849
  %v1922 = vpop.f32.mrb[0].mxu0
  %v1923 = vadd.f32 %v1842, %v1922
  %v1924 = vpop.f32.mrb[0].mxu0
  %1925 = vdwg.mxu0
  %v1926 = vadd.f32 %v1717, %v1918
  %v1927 = vadd.f32 %v1718, %v1923
  %v1928 = vld [vmem:[%s14] sm:$0x1]
  %v1929 = vld [vmem:[%s15] sm:$0x1]
  %v1930 = vsel %vm69, %v1926, 0.0
  %1931 = vadd.xlane.f32.xlu0 %v1930
  %v1932 = vpop.xlane.xlu0 %1931
  %v1933 = vsel %vm69, %v1927, 0.0
  %1934 = vadd.xlane.f32.xlu0 %v1933
  %v1935 = vpop.xlane.xlu0 %1934
  %v1936 = vmul.f32 %v1932, %v76
  %v1937 = vmul.f32 %v1935, %v76
  %v1938 = vsub.f32 %v1926, %v1936
  %v1939 = vsub.f32 %v1927, %v1937
  %v1940 = vmul.f32 %v1938, %v1938
  %v1941 = vmul.f32 %v1939, %v1939
  %v1942 = vsel %vm69, %v1940, 0.0
  %1943 = vadd.xlane.f32.xlu0 %v1942
  %v1944 = vpop.xlane.xlu0 %1943
  %v1945 = vsel %vm69, %v1941, 0.0
  %1946 = vadd.xlane.f32.xlu0 %v1945
  %v1947 = vpop.xlane.xlu0 %1946
  %v1948 = vmul.f32 %v1944, %v76
  %v1949 = vmul.f32 %v1947, %v76
  %v1950 = vadd.f32 %v1948, 1e-12
  %v1951 = vadd.f32 %v1949, 1e-12
  %v1952 = vrsqrt.pop %v1950
  %v1953 = vrsqrt.pop %v1951
  %v1954 = vmul.f32 %v1938, %v1952
  %v1955 = vmul.f32 %v1939, %v1953
  %v1957 = vlaneseq
  %v1958 = vshrl.u32 %v1957, 7
  %v1959 = vsub.s32 0, %v1958
  %v1960 = vrot.slane %v1928, %v1959
  %v1962 = vmul.f32 %v1954, %v1960
  %v1963 = vmul.f32 %v1955, %v1960
  %v1965 = vlaneseq
  %v1966 = vshrl.u32 %v1965, 7
  %v1967 = vsub.s32 0, %v1966
  %v1968 = vrot.slane %v1929, %v1967
  %v1970 = vadd.f32 %v1962, %v1968
  %v1971 = vadd.f32 %v1963, %v1968
  %s1972 = scalar_lea.vmem %s4, 32
  %v1973 = vld [vmem:[%s1972] sm:$0xff]
  %v1974 = vld [vmem:[%s1972 + $0x8] sm:$0xff]
  %v1975 = vld [vmem:[%s1972 + $0x10] sm:$0xff]
  %v1976 = vld [vmem:[%s1972 + $0x18] sm:$0xff]
  %s1977 = scalar_lea.vmem %s5, 1
  %v1978 = vld [vmem:[%s1977] sm:$0x1]
  %v1980 = vlaneseq
  %v1981 = vshrl.u32 %v1980, 7
  %v1982 = vsub.s32 0, %v1981
  %v1983 = vrot.slane %v1978, %v1982
  %v1986 = vsel %vm69, %v1970, 0
  %v1989 = vsel %vm69, %v1971, 0
  %1991 = vmatprep.subr.mxu0 0.0
  %1992 = vmatpush1.msra.mxu0 %v1973
  %1993 = vmatprep.subr.mxu0 0.0
  %1994 = vmatpush1.msra.mxu0 %v1974
  %1995 = vmatprep.subr.mxu0 0.0
  %1996 = vmatpush1.msra.mxu0 %v1975
  %1997 = vmatprep.subr.mxu0 0.0
  %1998 = vmatpush1.msra.mxu0 %v1976
  %1999 = vmatprep.subr.mxu0 0.0
  %2000 = vmatpush1.msra.mxu0 0.0
  %2001 = vmatprep.subr.mxu0 0.0
  %2002 = vmatpush1.msra.mxu0 0.0
  %2003 = vmatprep.subr.mxu0 0.0
  %2004 = vmatpush1.msra.mxu0 0.0
  %2005 = vmatprep.subr.mxu0 0.0
  %2006 = vmatpush1.msra.mxu0 0.0
  %2007 = vmatprep.subr.mxu0 0.0
  %2008 = vmatpush1.msra.mxu0 0.0
  %2009 = vmatprep.subr.mxu0 0.0
  %2010 = vmatpush1.msra.mxu0 0.0
  %2011 = vmatprep.subr.mxu0 0.0
  %2012 = vmatpush1.msra.mxu0 0.0
  %2013 = vmatprep.subr.mxu0 0.0
  %2014 = vmatpush1.msra.mxu0 0.0
  %2015 = vmatprep.subr.mxu0 0.0
  %2016 = vmatpush1.msra.mxu0 0.0
  %2017 = vmatprep.subr.mxu0 0.0
  %2018 = vmatpush1.msra.mxu0 0.0
  %2019 = vmatprep.subr.mxu0 0.0
  %2020 = vmatpush1.msra.mxu0 0.0
  %2021 = vmatprep.subr.mxu0 0.0
  %2022 = vmatpush1.msra.mxu0 0.0
  %2023 = vmatprep.subr.mxu0 0.0
  %2024 = vmatpush1.msra.mxu0 0.0
  %2025 = vmatprep.subr.mxu0 0.0
  %2026 = vmatpush1.msra.mxu0 0.0
  %2027 = vmatprep.subr.mxu0 0.0
  %2028 = vmatpush1.msra.mxu0 0.0
  %2029 = vmatprep.subr.mxu0 0.0
  %2030 = vmatpush1.msra.mxu0 0.0
  %2031 = vmatprep.subr.mxu0 0.0
  %2032 = vmatpush1.msra.mxu0 0.0
  %2033 = vmatprep.subr.mxu0 0.0
  %2034 = vmatpush1.msra.mxu0 0.0
  %2035 = vmatprep.subr.mxu0 0.0
  %2036 = vmatpush1.msra.mxu0 0.0
  %2037 = vmatprep.subr.mxu0 0.0
  %2038 = vmatpush1.msra.mxu0 0.0
  %2039 = vmatprep.subr.mxu0 0.0
  %2040 = vmatpush1.msra.mxu0 0.0
  %2041 = vmatprep.subr.mxu0 0.0
  %2042 = vmatpush1.msra.mxu0 0.0
  %2043 = vmatprep.subr.mxu0 0.0
  %2044 = vmatpush1.msra.mxu0 0.0
  %2045 = vmatprep.subr.mxu0 0.0
  %2046 = vmatpush1.msra.mxu0 0.0
  %2047 = vmatprep.subr.mxu0 0.0
  %2048 = vmatpush1.msra.mxu0 0.0
  %2049 = vmatprep.subr.mxu0 0.0
  %2050 = vmatpush1.msra.mxu0 0.0
  %2051 = vmatprep.subr.mxu0 0.0
  %2052 = vmatpush1.msra.mxu0 0.0
  %2053 = vmatprep.subr.mxu0 0.0
  %2054 = vmatpush1.msra.mxu0 0.0
  %2055 = vmatprep.mubr.f32.mxu0 0.0
  %2056 = vmatmul.mubr.f32.gmra.mrb[0].mxu0 %v1986
  %v2057 = vpop.f32.mrb[0].mxu0
  %v2058 = vadd.f32 %v1983, %v2057
  %v2059 = vpop.f32.mrb[0].mxu0
  %2060 = vmatprep.mubr.f32.mxu0 0.0
  %2061 = vmatmul.mubr.f32.gmra.mrb[0].mxu0 %v1989
  %v2062 = vpop.f32.mrb[0].mxu0
  %v2063 = vadd.f32 %v1983, %v2062
  %v2064 = vpop.f32.mrb[0].mxu0
  %2065 = vdwg.mxu0
  %2067 = vrot.lane.b32.xlu0 %v2058, 96
  %v2068 = vpop.permute.xlu0 %2067
  %v2069 = vsel %vm209, %v2058, 0
  %v2071 = vsel %vm209, %v2068, 0
  %2073 = vmatprep.subr.mxu0 0.0
  %2074 = vmatpush1.xpose.msra.mxu0 %v2071
  %2075 = vmatprep.subr.mxu0 0.0
  %2076 = vmatpush1.xpose.msra.mxu0 0.0
  %2077 = vmatprep.subr.mxu0 0.0
  %2078 = vmatpush1.xpose.msra.mxu0 0.0
  %2079 = vmatprep.subr.mxu0 0.0
  %2080 = vmatpush1.xpose.msra.mxu0 0.0
  %2081 = vmatprep.subr.mxu0 0.0
  %2082 = vmatpush1.xpose.msra.mxu0 0.0
  %2083 = vmatprep.subr.mxu0 0.0
  %2084 = vmatpush1.xpose.msra.mxu0 0.0
  %2085 = vmatprep.subr.mxu0 0.0
  %2086 = vmatpush1.xpose.msra.mxu0 0.0
  %2087 = vmatprep.subr.mxu0 0.0
  %2088 = vmatpush1.xpose.msra.mxu0 0.0
  %2089 = vmatprep.subr.mxu0 0.0
  %2090 = vmatpush1.xpose.msra.mxu0 0.0
  %2091 = vmatprep.subr.mxu0 0.0
  %2092 = vmatpush1.xpose.msra.mxu0 0.0
  %2093 = vmatprep.subr.mxu0 0.0
  %2094 = vmatpush1.xpose.msra.mxu0 0.0
  %2095 = vmatprep.subr.mxu0 0.0
  %2096 = vmatpush1.xpose.msra.mxu0 0.0
  %2097 = vmatprep.subr.mxu0 0.0
  %2098 = vmatpush1.xpose.msra.mxu0 0.0
  %2099 = vmatprep.subr.mxu0 0.0
  %2100 = vmatpush1.xpose.msra.mxu0 0.0
  %2101 = vmatprep.subr.mxu0 0.0
  %2102 = vmatpush1.xpose.msra.mxu0 0.0
  %2103 = vmatprep.subr.mxu0 0.0
  %2104 = vmatpush1.xpose.msra.mxu0 0.0
  %2105 = vmatprep.subr.mxu0 0.0
  %2106 = vmatpush1.xpose.msra.mxu0 0.0
  %2107 = vmatprep.subr.mxu0 0.0
  %2108 = vmatpush1.xpose.msra.mxu0 0.0
  %2109 = vmatprep.subr.mxu0 0.0
  %2110 = vmatpush1.xpose.msra.mxu0 0.0
  %2111 = vmatprep.subr.mxu0 0.0
  %2112 = vmatpush1.xpose.msra.mxu0 0.0
  %2113 = vmatprep.subr.mxu0 0.0
  %2114 = vmatpush1.xpose.msra.mxu0 0.0
  %2115 = vmatprep.subr.mxu0 0.0
  %2116 = vmatpush1.xpose.msra.mxu0 0.0
  %2117 = vmatprep.subr.mxu0 0.0
  %2118 = vmatpush1.xpose.msra.mxu0 0.0
  %2119 = vmatprep.subr.mxu0 0.0
  %2120 = vmatpush1.xpose.msra.mxu0 0.0
  %2121 = vmatprep.subr.mxu0 0.0
  %2122 = vmatpush1.xpose.msra.mxu0 0.0
  %2123 = vmatprep.subr.mxu0 0.0
  %2124 = vmatpush1.xpose.msra.mxu0 0.0
  %2125 = vmatprep.subr.mxu0 0.0
  %2126 = vmatpush1.xpose.msra.mxu0 0.0
  %2127 = vmatprep.subr.mxu0 0.0
  %2128 = vmatpush1.xpose.msra.mxu0 0.0
  %2129 = vmatprep.subr.mxu0 0.0
  %2130 = vmatpush1.xpose.msra.mxu0 0.0
  %2131 = vmatprep.subr.mxu0 0.0
  %2132 = vmatpush1.xpose.msra.mxu0 0.0
  %2133 = vmatprep.subr.mxu0 0.0
  %2134 = vmatpush1.xpose.msra.mxu0 0.0
  %2135 = vmatprep.subr.mxu0 0.0
  %2136 = vmatpush1.xpose.msra.mxu0 0.0
  %2137 = vmatprep.mubr.f32.mxu0 0.0
  %2138 = vmatmul.mubr.f32.gmra.mrb[0].mxu0 %v2069
  %v2139 = vpop.f32.mrb[0].mxu0
  %v2140 = vadd.f32 0.0, %v2139
  %v2141 = vpop.f32.mrb[0].mxu0
  %2142 = vdwg.mxu0
  %v2143 = vmul.f32 %v2140, 0.35355338
  %v2144 = vadd.f32 %v2143, %v288
  %v2145 = vsel %vm209, %v2144, -inf
  %2146 = vmax.xlane.f32.xlu0 %v2145
  %v2147 = vpop.xlane.xlu0 %2146
  %v2148 = vsub.f32 %v2144, %v2147
  %v2149 = vmul.f32 %v2148, 1.442695
  %v2150 = vpow.pop %v2149
  %v2151 = vsel %vm209, %v2150, 0.0
  %2152 = vadd.xlane.f32.xlu0 %v2151
  %v2153 = vpop.xlane.xlu0 %2152
  %v2154 = vrcp.pop %v2153
  %v2155 = vmul.f32 %v2150, %v2154
  %2156 = vrot.lane.b32.xlu0 %v2058, 64
  %v2157 = vpop.permute.xlu0 %2156
  %v2160 = vsel %vm209, %v2155, 0
  %2162 = vmatprep.subr.mxu0 0.0
  %2163 = vmatpush1.msra.mxu0 %v2157
  %2164 = vmatprep.subr.mxu0 0.0
  %2165 = vmatpush1.msra.mxu0 0.0
  %2166 = vmatprep.subr.mxu0 0.0
  %2167 = vmatpush1.msra.mxu0 0.0
  %2168 = vmatprep.subr.mxu0 0.0
  %2169 = vmatpush1.msra.mxu0 0.0
  %2170 = vmatprep.subr.mxu0 0.0
  %2171 = vmatpush1.msra.mxu0 0.0
  %2172 = vmatprep.subr.mxu0 0.0
  %2173 = vmatpush1.msra.mxu0 0.0
  %2174 = vmatprep.subr.mxu0 0.0
  %2175 = vmatpush1.msra.mxu0 0.0
  %2176 = vmatprep.subr.mxu0 0.0
  %2177 = vmatpush1.msra.mxu0 0.0
  %2178 = vmatprep.subr.mxu0 0.0
  %2179 = vmatpush1.msra.mxu0 0.0
  %2180 = vmatprep.subr.mxu0 0.0
  %2181 = vmatpush1.msra.mxu0 0.0
  %2182 = vmatprep.subr.mxu0 0.0
  %2183 = vmatpush1.msra.mxu0 0.0
  %2184 = vmatprep.subr.mxu0 0.0
  %2185 = vmatpush1.msra.mxu0 0.0
  %2186 = vmatprep.subr.mxu0 0.0
  %2187 = vmatpush1.msra.mxu0 0.0
  %2188 = vmatprep.subr.mxu0 0.0
  %2189 = vmatpush1.msra.mxu0 0.0
  %2190 = vmatprep.subr.mxu0 0.0
  %2191 = vmatpush1.msra.mxu0 0.0
  %2192 = vmatprep.subr.mxu0 0.0
  %2193 = vmatpush1.msra.mxu0 0.0
  %2194 = vmatprep.subr.mxu0 0.0
  %2195 = vmatpush1.msra.mxu0 0.0
  %2196 = vmatprep.subr.mxu0 0.0
  %2197 = vmatpush1.msra.mxu0 0.0
  %2198 = vmatprep.subr.mxu0 0.0
  %2199 = vmatpush1.msra.mxu0 0.0
  %2200 = vmatprep.subr.mxu0 0.0
  %2201 = vmatpush1.msra.mxu0 0.0
  %2202 = vmatprep.subr.mxu0 0.0
  %2203 = vmatpush1.msra.mxu0 0.0
  %2204 = vmatprep.subr.mxu0 0.0
  %2205 = vmatpush1.msra.mxu0 0.0
  %2206 = vmatprep.subr.mxu0 0.0
  %2207 = vmatpush1.msra.mxu0 0.0
  %2208 = vmatprep.subr.mxu0 0.0
  %2209 = vmatpush1.msra.mxu0 0.0
  %2210 = vmatprep.subr.mxu0 0.0
  %2211 = vmatpush1.msra.mxu0 0.0
  %2212 = vmatprep.subr.mxu0 0.0
  %2213 = vmatpush1.msra.mxu0 0.0
  %2214 = vmatprep.subr.mxu0 0.0
  %2215 = vmatpush1.msra.mxu0 0.0
  %2216 = vmatprep.subr.mxu0 0.0
  %2217 = vmatpush1.msra.mxu0 0.0
  %2218 = vmatprep.subr.mxu0 0.0
  %2219 = vmatpush1.msra.mxu0 0.0
  %2220 = vmatprep.subr.mxu0 0.0
  %2221 = vmatpush1.msra.mxu0 0.0
  %2222 = vmatprep.subr.mxu0 0.0
  %2223 = vmatpush1.msra.mxu0 0.0
  %2224 = vmatprep.subr.mxu0 0.0
  %2225 = vmatpush1.msra.mxu0 0.0
  %2226 = vmatprep.mubr.f32.mxu0 0.0
  %2227 = vmatmul.mubr.f32.gmra.mrb[0].mxu0 %v2160
  %v2228 = vpop.f32.mrb[0].mxu0
  %v2229 = vadd.f32 0.0, %v2228
  %v2230 = vpop.f32.mrb[0].mxu0
  %2231 = vdwg.mxu0
  %2232 = vrot.lane.b32.xlu0 %v2058, 120
  %v2233 = vpop.permute.xlu0 %2232
  %2234 = vrot.lane.b32.xlu0 %v2058, 88
  %v2235 = vpop.permute.xlu0 %2234
  %v2236 = vsel %vm209, %v2233, 0
  %v2238 = vsel %vm209, %v2235, 0
  %2240 = vmatprep.subr.mxu0 0.0
  %2241 = vmatpush1.xpose.msra.mxu0 %v2238
  %2242 = vmatprep.subr.mxu0 0.0
  %2243 = vmatpush1.xpose.msra.mxu0 0.0
  %2244 = vmatprep.subr.mxu0 0.0
  %2245 = vmatpush1.xpose.msra.mxu0 0.0
  %2246 = vmatprep.subr.mxu0 0.0
  %2247 = vmatpush1.xpose.msra.mxu0 0.0
  %2248 = vmatprep.subr.mxu0 0.0
  %2249 = vmatpush1.xpose.msra.mxu0 0.0
  %2250 = vmatprep.subr.mxu0 0.0
  %2251 = vmatpush1.xpose.msra.mxu0 0.0
  %2252 = vmatprep.subr.mxu0 0.0
  %2253 = vmatpush1.xpose.msra.mxu0 0.0
  %2254 = vmatprep.subr.mxu0 0.0
  %2255 = vmatpush1.xpose.msra.mxu0 0.0
  %2256 = vmatprep.subr.mxu0 0.0
  %2257 = vmatpush1.xpose.msra.mxu0 0.0
  %2258 = vmatprep.subr.mxu0 0.0
  %2259 = vmatpush1.xpose.msra.mxu0 0.0
  %2260 = vmatprep.subr.mxu0 0.0
  %2261 = vmatpush1.xpose.msra.mxu0 0.0
  %2262 = vmatprep.subr.mxu0 0.0
  %2263 = vmatpush1.xpose.msra.mxu0 0.0
  %2264 = vmatprep.subr.mxu0 0.0
  %2265 = vmatpush1.xpose.msra.mxu0 0.0
  %2266 = vmatprep.subr.mxu0 0.0
  %2267 = vmatpush1.xpose.msra.mxu0 0.0
  %2268 = vmatprep.subr.mxu0 0.0
  %2269 = vmatpush1.xpose.msra.mxu0 0.0
  %2270 = vmatprep.subr.mxu0 0.0
  %2271 = vmatpush1.xpose.msra.mxu0 0.0
  %2272 = vmatprep.subr.mxu0 0.0
  %2273 = vmatpush1.xpose.msra.mxu0 0.0
  %2274 = vmatprep.subr.mxu0 0.0
  %2275 = vmatpush1.xpose.msra.mxu0 0.0
  %2276 = vmatprep.subr.mxu0 0.0
  %2277 = vmatpush1.xpose.msra.mxu0 0.0
  %2278 = vmatprep.subr.mxu0 0.0
  %2279 = vmatpush1.xpose.msra.mxu0 0.0
  %2280 = vmatprep.subr.mxu0 0.0
  %2281 = vmatpush1.xpose.msra.mxu0 0.0
  %2282 = vmatprep.subr.mxu0 0.0
  %2283 = vmatpush1.xpose.msra.mxu0 0.0
  %2284 = vmatprep.subr.mxu0 0.0
  %2285 = vmatpush1.xpose.msra.mxu0 0.0
  %2286 = vmatprep.subr.mxu0 0.0
  %2287 = vmatpush1.xpose.msra.mxu0 0.0
  %2288 = vmatprep.subr.mxu0 0.0
  %2289 = vmatpush1.xpose.msra.mxu0 0.0
  %2290 = vmatprep.subr.mxu0 0.0
  %2291 = vmatpush1.xpose.msra.mxu0 0.0
  %2292 = vmatprep.subr.mxu0 0.0
  %2293 = vmatpush1.xpose.msra.mxu0 0.0
  %2294 = vmatprep.subr.mxu0 0.0
  %2295 = vmatpush1.xpose.msra.mxu0 0.0
  %2296 = vmatprep.subr.mxu0 0.0
  %2297 = vmatpush1.xpose.msra.mxu0 0.0
  %2298 = vmatprep.subr.mxu0 0.0
  %2299 = vmatpush1.xpose.msra.mxu0 0.0
  %2300 = vmatprep.subr.mxu0 0.0
  %2301 = vmatpush1.xpose.msra.mxu0 0.0
  %2302 = vmatprep.subr.mxu0 0.0
  %2303 = vmatpush1.xpose.msra.mxu0 0.0
  %2304 = vmatprep.mubr.f32.mxu0 0.0
  %2305 = vmatmul.mubr.f32.gmra.mrb[0].mxu0 %v2236
  %v2306 = vpop.f32.mrb[0].mxu0
  %v2307 = vadd.f32 0.0, %v2306
  %v2308 = vpop.f32.mrb[0].mxu0
  %2309 = vdwg.mxu0
  %v2310 = vmul.f32 %v2307, 0.35355338
  %v2311 = vadd.f32 %v2310, %v288
  %v2312 = vsel %vm209, %v2311, -inf
  %2313 = vmax.xlane.f32.xlu0 %v2312
  %v2314 = vpop.xlane.xlu0 %2313
  %v2315 = vsub.f32 %v2311, %v2314
  %v2316 = vmul.f32 %v2315, 1.442695
  %v2317 = vpow.pop %v2316
  %v2318 = vsel %vm209, %v2317, 0.0
  %2319 = vadd.xlane.f32.xlu0 %v2318
  %v2320 = vpop.xlane.xlu0 %2319
  %v2321 = vrcp.pop %v2320
  %v2322 = vmul.f32 %v2317, %v2321
  %2323 = vrot.lane.b32.xlu0 %v2058, 56
  %v2324 = vpop.permute.xlu0 %2323
  %v2327 = vsel %vm209, %v2322, 0
  %2329 = vmatprep.subr.mxu0 0.0
  %2330 = vmatpush1.msra.mxu0 %v2324
  %2331 = vmatprep.subr.mxu0 0.0
  %2332 = vmatpush1.msra.mxu0 0.0
  %2333 = vmatprep.subr.mxu0 0.0
  %2334 = vmatpush1.msra.mxu0 0.0
  %2335 = vmatprep.subr.mxu0 0.0
  %2336 = vmatpush1.msra.mxu0 0.0
  %2337 = vmatprep.subr.mxu0 0.0
  %2338 = vmatpush1.msra.mxu0 0.0
  %2339 = vmatprep.subr.mxu0 0.0
  %2340 = vmatpush1.msra.mxu0 0.0
  %2341 = vmatprep.subr.mxu0 0.0
  %2342 = vmatpush1.msra.mxu0 0.0
  %2343 = vmatprep.subr.mxu0 0.0
  %2344 = vmatpush1.msra.mxu0 0.0
  %2345 = vmatprep.subr.mxu0 0.0
  %2346 = vmatpush1.msra.mxu0 0.0
  %2347 = vmatprep.subr.mxu0 0.0
  %2348 = vmatpush1.msra.mxu0 0.0
  %2349 = vmatprep.subr.mxu0 0.0
  %2350 = vmatpush1.msra.mxu0 0.0
  %2351 = vmatprep.subr.mxu0 0.0
  %2352 = vmatpush1.msra.mxu0 0.0
  %2353 = vmatprep.subr.mxu0 0.0
  %2354 = vmatpush1.msra.mxu0 0.0
  %2355 = vmatprep.subr.mxu0 0.0
  %2356 = vmatpush1.msra.mxu0 0.0
  %2357 = vmatprep.subr.mxu0 0.0
  %2358 = vmatpush1.msra.mxu0 0.0
  %2359 = vmatprep.subr.mxu0 0.0
  %2360 = vmatpush1.msra.mxu0 0.0
  %2361 = vmatprep.subr.mxu0 0.0
  %2362 = vmatpush1.msra.mxu0 0.0
  %2363 = vmatprep.subr.mxu0 0.0
  %2364 = vmatpush1.msra.mxu0 0.0
  %2365 = vmatprep.subr.mxu0 0.0
  %2366 = vmatpush1.msra.mxu0 0.0
  %2367 = vmatprep.subr.mxu0 0.0
  %2368 = vmatpush1.msra.mxu0 0.0
  %2369 = vmatprep.subr.mxu0 0.0
  %2370 = vmatpush1.msra.mxu0 0.0
  %2371 = vmatprep.subr.mxu0 0.0
  %2372 = vmatpush1.msra.mxu0 0.0
  %2373 = vmatprep.subr.mxu0 0.0
  %2374 = vmatpush1.msra.mxu0 0.0
  %2375 = vmatprep.subr.mxu0 0.0
  %2376 = vmatpush1.msra.mxu0 0.0
  %2377 = vmatprep.subr.mxu0 0.0
  %2378 = vmatpush1.msra.mxu0 0.0
  %2379 = vmatprep.subr.mxu0 0.0
  %2380 = vmatpush1.msra.mxu0 0.0
  %2381 = vmatprep.subr.mxu0 0.0
  %2382 = vmatpush1.msra.mxu0 0.0
  %2383 = vmatprep.subr.mxu0 0.0
  %2384 = vmatpush1.msra.mxu0 0.0
  %2385 = vmatprep.subr.mxu0 0.0
  %2386 = vmatpush1.msra.mxu0 0.0
  %2387 = vmatprep.subr.mxu0 0.0
  %2388 = vmatpush1.msra.mxu0 0.0
  %2389 = vmatprep.subr.mxu0 0.0
  %2390 = vmatpush1.msra.mxu0 0.0
  %2391 = vmatprep.subr.mxu0 0.0
  %2392 = vmatpush1.msra.mxu0 0.0
  %2393 = vmatprep.mubr.f32.mxu0 0.0
  %2394 = vmatmul.mubr.f32.gmra.mrb[0].mxu0 %v2327
  %v2395 = vpop.f32.mrb[0].mxu0
  %v2396 = vadd.f32 0.0, %v2395
  %v2397 = vpop.f32.mrb[0].mxu0
  %2398 = vdwg.mxu0
  %2399 = vrot.lane.b32.xlu0 %v2058, 112
  %v2400 = vpop.permute.xlu0 %2399
  %2401 = vrot.lane.b32.xlu0 %v2058, 80
  %v2402 = vpop.permute.xlu0 %2401
  %v2403 = vsel %vm209, %v2400, 0
  %v2405 = vsel %vm209, %v2402, 0
  %2407 = vmatprep.subr.mxu0 0.0
  %2408 = vmatpush1.xpose.msra.mxu0 %v2405
  %2409 = vmatprep.subr.mxu0 0.0
  %2410 = vmatpush1.xpose.msra.mxu0 0.0
  %2411 = vmatprep.subr.mxu0 0.0
  %2412 = vmatpush1.xpose.msra.mxu0 0.0
  %2413 = vmatprep.subr.mxu0 0.0
  %2414 = vmatpush1.xpose.msra.mxu0 0.0
  %2415 = vmatprep.subr.mxu0 0.0
  %2416 = vmatpush1.xpose.msra.mxu0 0.0
  %2417 = vmatprep.subr.mxu0 0.0
  %2418 = vmatpush1.xpose.msra.mxu0 0.0
  %2419 = vmatprep.subr.mxu0 0.0
  %2420 = vmatpush1.xpose.msra.mxu0 0.0
  %2421 = vmatprep.subr.mxu0 0.0
  %2422 = vmatpush1.xpose.msra.mxu0 0.0
  %2423 = vmatprep.subr.mxu0 0.0
  %2424 = vmatpush1.xpose.msra.mxu0 0.0
  %2425 = vmatprep.subr.mxu0 0.0
  %2426 = vmatpush1.xpose.msra.mxu0 0.0
  %2427 = vmatprep.subr.mxu0 0.0
  %2428 = vmatpush1.xpose.msra.mxu0 0.0
  %2429 = vmatprep.subr.mxu0 0.0
  %2430 = vmatpush1.xpose.msra.mxu0 0.0
  %2431 = vmatprep.subr.mxu0 0.0
  %2432 = vmatpush1.xpose.msra.mxu0 0.0
  %2433 = vmatprep.subr.mxu0 0.0
  %2434 = vmatpush1.xpose.msra.mxu0 0.0
  %2435 = vmatprep.subr.mxu0 0.0
  %2436 = vmatpush1.xpose.msra.mxu0 0.0
  %2437 = vmatprep.subr.mxu0 0.0
  %2438 = vmatpush1.xpose.msra.mxu0 0.0
  %2439 = vmatprep.subr.mxu0 0.0
  %2440 = vmatpush1.xpose.msra.mxu0 0.0
  %2441 = vmatprep.subr.mxu0 0.0
  %2442 = vmatpush1.xpose.msra.mxu0 0.0
  %2443 = vmatprep.subr.mxu0 0.0
  %2444 = vmatpush1.xpose.msra.mxu0 0.0
  %2445 = vmatprep.subr.mxu0 0.0
  %2446 = vmatpush1.xpose.msra.mxu0 0.0
  %2447 = vmatprep.subr.mxu0 0.0
  %2448 = vmatpush1.xpose.msra.mxu0 0.0
  %2449 = vmatprep.subr.mxu0 0.0
  %2450 = vmatpush1.xpose.msra.mxu0 0.0
  %2451 = vmatprep.subr.mxu0 0.0
  %2452 = vmatpush1.xpose.msra.mxu0 0.0
  %2453 = vmatprep.subr.mxu0 0.0
  %2454 = vmatpush1.xpose.msra.mxu0 0.0
  %2455 = vmatprep.subr.mxu0 0.0
  %2456 = vmatpush1.xpose.msra.mxu0 0.0
  %2457 = vmatprep.subr.mxu0 0.0
  %2458 = vmatpush1.xpose.msra.mxu0 0.0
  %2459 = vmatprep.subr.mxu0 0.0
  %2460 = vmatpush1.xpose.msra.mxu0 0.0
  %2461 = vmatprep.subr.mxu0 0.0
  %2462 = vmatpush1.xpose.msra.mxu0 0.0
  %2463 = vmatprep.subr.mxu0 0.0
  %2464 = vmatpush1.xpose.msra.mxu0 0.0
  %2465 = vmatprep.subr.mxu0 0.0
  %2466 = vmatpush1.xpose.msra.mxu0 0.0
  %2467 = vmatprep.subr.mxu0 0.0
  %2468 = vmatpush1.xpose.msra.mxu0 0.0
  %2469 = vmatprep.subr.mxu0 0.0
  %2470 = vmatpush1.xpose.msra.mxu0 0.0
  %2471 = vmatprep.mubr.f32.mxu0 0.0
  %2472 = vmatmul.mubr.f32.gmra.mrb[0].mxu0 %v2403
  %v2473 = vpop.f32.mrb[0].mxu0
  %v2474 = vadd.f32 0.0, %v2473
  %v2475 = vpop.f32.mrb[0].mxu0
  %2476 = vdwg.mxu0
  %v2477 = vmul.f32 %v2474, 0.35355338
  %v2478 = vadd.f32 %v2477, %v288
  %v2479 = vsel %vm209, %v2478, -inf
  %2480 = vmax.xlane.f32.xlu0 %v2479
  %v2481 = vpop.xlane.xlu0 %2480
  %v2482 = vsub.f32 %v2478, %v2481
  %v2483 = vmul.f32 %v2482, 1.442695
  %v2484 = vpow.pop %v2483
  %v2485 = vsel %vm209, %v2484, 0.0
  %2486 = vadd.xlane.f32.xlu0 %v2485
  %v2487 = vpop.xlane.xlu0 %2486
  %v2488 = vrcp.pop %v2487
  %v2489 = vmul.f32 %v2484, %v2488
  %2490 = vrot.lane.b32.xlu0 %v2058, 48
  %v2491 = vpop.permute.xlu0 %2490
  %v2494 = vsel %vm209, %v2489, 0
  %2496 = vmatprep.subr.mxu0 0.0
  %2497 = vmatpush1.msra.mxu0 %v2491
  %2498 = vmatprep.subr.mxu0 0.0
  %2499 = vmatpush1.msra.mxu0 0.0
  %2500 = vmatprep.subr.mxu0 0.0
  %2501 = vmatpush1.msra.mxu0 0.0
  %2502 = vmatprep.subr.mxu0 0.0
  %2503 = vmatpush1.msra.mxu0 0.0
  %2504 = vmatprep.subr.mxu0 0.0
  %2505 = vmatpush1.msra.mxu0 0.0
  %2506 = vmatprep.subr.mxu0 0.0
  %2507 = vmatpush1.msra.mxu0 0.0
  %2508 = vmatprep.subr.mxu0 0.0
  %2509 = vmatpush1.msra.mxu0 0.0
  %2510 = vmatprep.subr.mxu0 0.0
  %2511 = vmatpush1.msra.mxu0 0.0
  %2512 = vmatprep.subr.mxu0 0.0
  %2513 = vmatpush1.msra.mxu0 0.0
  %2514 = vmatprep.subr.mxu0 0.0
  %2515 = vmatpush1.msra.mxu0 0.0
  %2516 = vmatprep.subr.mxu0 0.0
  %2517 = vmatpush1.msra.mxu0 0.0
  %2518 = vmatprep.subr.mxu0 0.0
  %2519 = vmatpush1.msra.mxu0 0.0
  %2520 = vmatprep.subr.mxu0 0.0
  %2521 = vmatpush1.msra.mxu0 0.0
  %2522 = vmatprep.subr.mxu0 0.0
  %2523 = vmatpush1.msra.mxu0 0.0
  %2524 = vmatprep.subr.mxu0 0.0
  %2525 = vmatpush1.msra.mxu0 0.0
  %2526 = vmatprep.subr.mxu0 0.0
  %2527 = vmatpush1.msra.mxu0 0.0
  %2528 = vmatprep.subr.mxu0 0.0
  %2529 = vmatpush1.msra.mxu0 0.0
  %2530 = vmatprep.subr.mxu0 0.0
  %2531 = vmatpush1.msra.mxu0 0.0
  %2532 = vmatprep.subr.mxu0 0.0
  %2533 = vmatpush1.msra.mxu0 0.0
  %2534 = vmatprep.subr.mxu0 0.0
  %2535 = vmatpush1.msra.mxu0 0.0
  %2536 = vmatprep.subr.mxu0 0.0
  %2537 = vmatpush1.msra.mxu0 0.0
  %2538 = vmatprep.subr.mxu0 0.0
  %2539 = vmatpush1.msra.mxu0 0.0
  %2540 = vmatprep.subr.mxu0 0.0
  %2541 = vmatpush1.msra.mxu0 0.0
  %2542 = vmatprep.subr.mxu0 0.0
  %2543 = vmatpush1.msra.mxu0 0.0
  %2544 = vmatprep.subr.mxu0 0.0
  %2545 = vmatpush1.msra.mxu0 0.0
  %2546 = vmatprep.subr.mxu0 0.0
  %2547 = vmatpush1.msra.mxu0 0.0
  %2548 = vmatprep.subr.mxu0 0.0
  %2549 = vmatpush1.msra.mxu0 0.0
  %2550 = vmatprep.subr.mxu0 0.0
  %2551 = vmatpush1.msra.mxu0 0.0
  %2552 = vmatprep.subr.mxu0 0.0
  %2553 = vmatpush1.msra.mxu0 0.0
  %2554 = vmatprep.subr.mxu0 0.0
  %2555 = vmatpush1.msra.mxu0 0.0
  %2556 = vmatprep.subr.mxu0 0.0
  %2557 = vmatpush1.msra.mxu0 0.0
  %2558 = vmatprep.subr.mxu0 0.0
  %2559 = vmatpush1.msra.mxu0 0.0
  %2560 = vmatprep.mubr.f32.mxu0 0.0
  %2561 = vmatmul.mubr.f32.gmra.mrb[0].mxu0 %v2494
  %v2562 = vpop.f32.mrb[0].mxu0
  %v2563 = vadd.f32 0.0, %v2562
  %v2564 = vpop.f32.mrb[0].mxu0
  %2565 = vdwg.mxu0
  %2566 = vrot.lane.b32.xlu0 %v2058, 104
  %v2567 = vpop.permute.xlu0 %2566
  %2568 = vrot.lane.b32.xlu0 %v2058, 72
  %v2569 = vpop.permute.xlu0 %2568
  %v2570 = vsel %vm209, %v2567, 0
  %v2572 = vsel %vm209, %v2569, 0
  %2574 = vmatprep.subr.mxu0 0.0
  %2575 = vmatpush1.xpose.msra.mxu0 %v2572
  %2576 = vmatprep.subr.mxu0 0.0
  %2577 = vmatpush1.xpose.msra.mxu0 0.0
  %2578 = vmatprep.subr.mxu0 0.0
  %2579 = vmatpush1.xpose.msra.mxu0 0.0
  %2580 = vmatprep.subr.mxu0 0.0
  %2581 = vmatpush1.xpose.msra.mxu0 0.0
  %2582 = vmatprep.subr.mxu0 0.0
  %2583 = vmatpush1.xpose.msra.mxu0 0.0
  %2584 = vmatprep.subr.mxu0 0.0
  %2585 = vmatpush1.xpose.msra.mxu0 0.0
  %2586 = vmatprep.subr.mxu0 0.0
  %2587 = vmatpush1.xpose.msra.mxu0 0.0
  %2588 = vmatprep.subr.mxu0 0.0
  %2589 = vmatpush1.xpose.msra.mxu0 0.0
  %2590 = vmatprep.subr.mxu0 0.0
  %2591 = vmatpush1.xpose.msra.mxu0 0.0
  %2592 = vmatprep.subr.mxu0 0.0
  %2593 = vmatpush1.xpose.msra.mxu0 0.0
  %2594 = vmatprep.subr.mxu0 0.0
  %2595 = vmatpush1.xpose.msra.mxu0 0.0
  %2596 = vmatprep.subr.mxu0 0.0
  %2597 = vmatpush1.xpose.msra.mxu0 0.0
  %2598 = vmatprep.subr.mxu0 0.0
  %2599 = vmatpush1.xpose.msra.mxu0 0.0
  %2600 = vmatprep.subr.mxu0 0.0
  %2601 = vmatpush1.xpose.msra.mxu0 0.0
  %2602 = vmatprep.subr.mxu0 0.0
  %2603 = vmatpush1.xpose.msra.mxu0 0.0
  %2604 = vmatprep.subr.mxu0 0.0
  %2605 = vmatpush1.xpose.msra.mxu0 0.0
  %2606 = vmatprep.subr.mxu0 0.0
  %2607 = vmatpush1.xpose.msra.mxu0 0.0
  %2608 = vmatprep.subr.mxu0 0.0
  %2609 = vmatpush1.xpose.msra.mxu0 0.0
  %2610 = vmatprep.subr.mxu0 0.0
  %2611 = vmatpush1.xpose.msra.mxu0 0.0
  %2612 = vmatprep.subr.mxu0 0.0
  %2613 = vmatpush1.xpose.msra.mxu0 0.0
  %2614 = vmatprep.subr.mxu0 0.0
  %2615 = vmatpush1.xpose.msra.mxu0 0.0
  %2616 = vmatprep.subr.mxu0 0.0
  %2617 = vmatpush1.xpose.msra.mxu0 0.0
  %2618 = vmatprep.subr.mxu0 0.0
  %2619 = vmatpush1.xpose.msra.mxu0 0.0
  %2620 = vmatprep.subr.mxu0 0.0
  %2621 = vmatpush1.xpose.msra.mxu0 0.0
  %2622 = vmatprep.subr.mxu0 0.0
  %2623 = vmatpush1.xpose.msra.mxu0 0.0
  %2624 = vmatprep.subr.mxu0 0.0
  %2625 = vmatpush1.xpose.msra.mxu0 0.0
  %2626 = vmatprep.subr.mxu0 0.0
  %2627 = vmatpush1.xpose.msra.mxu0 0.0
  %2628 = vmatprep.subr.mxu0 0.0
  %2629 = vmatpush1.xpose.msra.mxu0 0.0
  %2630 = vmatprep.subr.mxu0 0.0
  %2631 = vmatpush1.xpose.msra.mxu0 0.0
  %2632 = vmatprep.subr.mxu0 0.0
  %2633 = vmatpush1.xpose.msra.mxu0 0.0
  %2634 = vmatprep.subr.mxu0 0.0
  %2635 = vmatpush1.xpose.msra.mxu0 0.0
  %2636 = vmatprep.subr.mxu0 0.0
  %2637 = vmatpush1.xpose.msra.mxu0 0.0
  %2638 = vmatprep.mubr.f32.mxu0 0.0
  %2639 = vmatmul.mubr.f32.gmra.mrb[0].mxu0 %v2570
  %v2640 = vpop.f32.mrb[0].mxu0
  %v2641 = vadd.f32 0.0, %v2640
  %v2642 = vpop.f32.mrb[0].mxu0
  %2643 = vdwg.mxu0
  %v2644 = vmul.f32 %v2641, 0.35355338
  %v2645 = vadd.f32 %v2644, %v288
  %v2646 = vsel %vm209, %v2645, -inf
  %2647 = vmax.xlane.f32.xlu0 %v2646
  %v2648 = vpop.xlane.xlu0 %2647
  %v2649 = vsub.f32 %v2645, %v2648
  %v2650 = vmul.f32 %v2649, 1.442695
  %v2651 = vpow.pop %v2650
  %v2652 = vsel %vm209, %v2651, 0.0
  %2653 = vadd.xlane.f32.xlu0 %v2652
  %v2654 = vpop.xlane.xlu0 %2653
  %v2655 = vrcp.pop %v2654
  %v2656 = vmul.f32 %v2651, %v2655
  %2657 = vrot.lane.b32.xlu0 %v2058, 40
  %v2658 = vpop.permute.xlu0 %2657
  %v2661 = vsel %vm209, %v2656, 0
  %2663 = vmatprep.subr.mxu0 0.0
  %2664 = vmatpush1.msra.mxu0 %v2658
  %2665 = vmatprep.subr.mxu0 0.0
  %2666 = vmatpush1.msra.mxu0 0.0
  %2667 = vmatprep.subr.mxu0 0.0
  %2668 = vmatpush1.msra.mxu0 0.0
  %2669 = vmatprep.subr.mxu0 0.0
  %2670 = vmatpush1.msra.mxu0 0.0
  %2671 = vmatprep.subr.mxu0 0.0
  %2672 = vmatpush1.msra.mxu0 0.0
  %2673 = vmatprep.subr.mxu0 0.0
  %2674 = vmatpush1.msra.mxu0 0.0
  %2675 = vmatprep.subr.mxu0 0.0
  %2676 = vmatpush1.msra.mxu0 0.0
  %2677 = vmatprep.subr.mxu0 0.0
  %2678 = vmatpush1.msra.mxu0 0.0
  %2679 = vmatprep.subr.mxu0 0.0
  %2680 = vmatpush1.msra.mxu0 0.0
  %2681 = vmatprep.subr.mxu0 0.0
  %2682 = vmatpush1.msra.mxu0 0.0
  %2683 = vmatprep.subr.mxu0 0.0
  %2684 = vmatpush1.msra.mxu0 0.0
  %2685 = vmatprep.subr.mxu0 0.0
  %2686 = vmatpush1.msra.mxu0 0.0
  %2687 = vmatprep.subr.mxu0 0.0
  %2688 = vmatpush1.msra.mxu0 0.0
  %2689 = vmatprep.subr.mxu0 0.0
  %2690 = vmatpush1.msra.mxu0 0.0
  %2691 = vmatprep.subr.mxu0 0.0
  %2692 = vmatpush1.msra.mxu0 0.0
  %2693 = vmatprep.subr.mxu0 0.0
  %2694 = vmatpush1.msra.mxu0 0.0
  %2695 = vmatprep.subr.mxu0 0.0
  %2696 = vmatpush1.msra.mxu0 0.0
  %2697 = vmatprep.subr.mxu0 0.0
  %2698 = vmatpush1.msra.mxu0 0.0
  %2699 = vmatprep.subr.mxu0 0.0
  %2700 = vmatpush1.msra.mxu0 0.0
  %2701 = vmatprep.subr.mxu0 0.0
  %2702 = vmatpush1.msra.mxu0 0.0
  %2703 = vmatprep.subr.mxu0 0.0
  %2704 = vmatpush1.msra.mxu0 0.0
  %2705 = vmatprep.subr.mxu0 0.0
  %2706 = vmatpush1.msra.mxu0 0.0
  %2707 = vmatprep.subr.mxu0 0.0
  %2708 = vmatpush1.msra.mxu0 0.0
  %2709 = vmatprep.subr.mxu0 0.0
  %2710 = vmatpush1.msra.mxu0 0.0
  %2711 = vmatprep.subr.mxu0 0.0
  %2712 = vmatpush1.msra.mxu0 0.0
  %2713 = vmatprep.subr.mxu0 0.0
  %2714 = vmatpush1.msra.mxu0 0.0
  %2715 = vmatprep.subr.mxu0 0.0
  %2716 = vmatpush1.msra.mxu0 0.0
  %2717 = vmatprep.subr.mxu0 0.0
  %2718 = vmatpush1.msra.mxu0 0.0
  %2719 = vmatprep.subr.mxu0 0.0
  %2720 = vmatpush1.msra.mxu0 0.0
  %2721 = vmatprep.subr.mxu0 0.0
  %2722 = vmatpush1.msra.mxu0 0.0
  %2723 = vmatprep.subr.mxu0 0.0
  %2724 = vmatpush1.msra.mxu0 0.0
  %2725 = vmatprep.subr.mxu0 0.0
  %2726 = vmatpush1.msra.mxu0 0.0
  %2727 = vmatprep.mubr.f32.mxu0 0.0
  %2728 = vmatmul.mubr.f32.gmra.mrb[0].mxu0 %v2661
  %v2729 = vpop.f32.mrb[0].mxu0
  %v2730 = vadd.f32 0.0, %v2729
  %v2731 = vpop.f32.mrb[0].mxu0
  %2732 = vdwg.mxu0
  %2734 = vrot.lane.b32.xlu0 %v2396, 8
  %v2735 = vpop.permute.xlu0 %2734
  %2738 = vrot.lane.b32.xlu0 %v2563, 16
  %v2739 = vpop.permute.xlu0 %2738
  %2742 = vrot.lane.b32.xlu0 %v2730, 24
  %v2743 = vpop.permute.xlu0 %2742
  %v2745 = vsel %vm209, %v2229, %v2735
  %v2746 = vsel %vm891, %v2745, %v2739
  %v2747 = vsel %vm893, %v2746, %v2743
  %2749 = vrot.lane.b32.xlu0 %v2063, 96
  %v2750 = vpop.permute.xlu0 %2749
  %v2751 = vsel %vm209, %v2063, 0
  %v2753 = vsel %vm209, %v2750, 0
  %2755 = vmatprep.subr.mxu0 0.0
  %2756 = vmatpush1.xpose.msra.mxu0 %v2753
  %2757 = vmatprep.subr.mxu0 0.0
  %2758 = vmatpush1.xpose.msra.mxu0 0.0
  %2759 = vmatprep.subr.mxu0 0.0
  %2760 = vmatpush1.xpose.msra.mxu0 0.0
  %2761 = vmatprep.subr.mxu0 0.0
  %2762 = vmatpush1.xpose.msra.mxu0 0.0
  %2763 = vmatprep.subr.mxu0 0.0
  %2764 = vmatpush1.xpose.msra.mxu0 0.0
  %2765 = vmatprep.subr.mxu0 0.0
  %2766 = vmatpush1.xpose.msra.mxu0 0.0
  %2767 = vmatprep.subr.mxu0 0.0
  %2768 = vmatpush1.xpose.msra.mxu0 0.0
  %2769 = vmatprep.subr.mxu0 0.0
  %2770 = vmatpush1.xpose.msra.mxu0 0.0
  %2771 = vmatprep.subr.mxu0 0.0
  %2772 = vmatpush1.xpose.msra.mxu0 0.0
  %2773 = vmatprep.subr.mxu0 0.0
  %2774 = vmatpush1.xpose.msra.mxu0 0.0
  %2775 = vmatprep.subr.mxu0 0.0
  %2776 = vmatpush1.xpose.msra.mxu0 0.0
  %2777 = vmatprep.subr.mxu0 0.0
  %2778 = vmatpush1.xpose.msra.mxu0 0.0
  %2779 = vmatprep.subr.mxu0 0.0
  %2780 = vmatpush1.xpose.msra.mxu0 0.0
  %2781 = vmatprep.subr.mxu0 0.0
  %2782 = vmatpush1.xpose.msra.mxu0 0.0
  %2783 = vmatprep.subr.mxu0 0.0
  %2784 = vmatpush1.xpose.msra.mxu0 0.0
  %2785 = vmatprep.subr.mxu0 0.0
  %2786 = vmatpush1.xpose.msra.mxu0 0.0
  %2787 = vmatprep.subr.mxu0 0.0
  %2788 = vmatpush1.xpose.msra.mxu0 0.0
  %2789 = vmatprep.subr.mxu0 0.0
  %2790 = vmatpush1.xpose.msra.mxu0 0.0
  %2791 = vmatprep.subr.mxu0 0.0
  %2792 = vmatpush1.xpose.msra.mxu0 0.0
  %2793 = vmatprep.subr.mxu0 0.0
  %2794 = vmatpush1.xpose.msra.mxu0 0.0
  %2795 = vmatprep.subr.mxu0 0.0
  %2796 = vmatpush1.xpose.msra.mxu0 0.0
  %2797 = vmatprep.subr.mxu0 0.0
  %2798 = vmatpush1.xpose.msra.mxu0 0.0
  %2799 = vmatprep.subr.mxu0 0.0
  %2800 = vmatpush1.xpose.msra.mxu0 0.0
  %2801 = vmatprep.subr.mxu0 0.0
  %2802 = vmatpush1.xpose.msra.mxu0 0.0
  %2803 = vmatprep.subr.mxu0 0.0
  %2804 = vmatpush1.xpose.msra.mxu0 0.0
  %2805 = vmatprep.subr.mxu0 0.0
  %2806 = vmatpush1.xpose.msra.mxu0 0.0
  %2807 = vmatprep.subr.mxu0 0.0
  %2808 = vmatpush1.xpose.msra.mxu0 0.0
  %2809 = vmatprep.subr.mxu0 0.0
  %2810 = vmatpush1.xpose.msra.mxu0 0.0
  %2811 = vmatprep.subr.mxu0 0.0
  %2812 = vmatpush1.xpose.msra.mxu0 0.0
  %2813 = vmatprep.subr.mxu0 0.0
  %2814 = vmatpush1.xpose.msra.mxu0 0.0
  %2815 = vmatprep.subr.mxu0 0.0
  %2816 = vmatpush1.xpose.msra.mxu0 0.0
  %2817 = vmatprep.subr.mxu0 0.0
  %2818 = vmatpush1.xpose.msra.mxu0 0.0
  %2819 = vmatprep.mubr.f32.mxu0 0.0
  %2820 = vmatmul.mubr.f32.gmra.mrb[0].mxu0 %v2751
  %v2821 = vpop.f32.mrb[0].mxu0
  %v2822 = vadd.f32 0.0, %v2821
  %v2823 = vpop.f32.mrb[0].mxu0
  %2824 = vdwg.mxu0
  %v2825 = vmul.f32 %v2822, 0.35355338
  %v2826 = vadd.f32 %v2825, %v976
  %v2827 = vsel %vm209, %v2826, -inf
  %2828 = vmax.xlane.f32.xlu0 %v2827
  %v2829 = vpop.xlane.xlu0 %2828
  %v2830 = vsub.f32 %v2826, %v2829
  %v2831 = vmul.f32 %v2830, 1.442695
  %v2832 = vpow.pop %v2831
  %v2833 = vsel %vm209, %v2832, 0.0
  %2834 = vadd.xlane.f32.xlu0 %v2833
  %v2835 = vpop.xlane.xlu0 %2834
  %v2836 = vrcp.pop %v2835
  %v2837 = vmul.f32 %v2832, %v2836
  %2838 = vrot.lane.b32.xlu0 %v2063, 64
  %v2839 = vpop.permute.xlu0 %2838
  %v2842 = vsel %vm209, %v2837, 0
  %2844 = vmatprep.subr.mxu0 0.0
  %2845 = vmatpush1.msra.mxu0 %v2839
  %2846 = vmatprep.subr.mxu0 0.0
  %2847 = vmatpush1.msra.mxu0 0.0
  %2848 = vmatprep.subr.mxu0 0.0
  %2849 = vmatpush1.msra.mxu0 0.0
  %2850 = vmatprep.subr.mxu0 0.0
  %2851 = vmatpush1.msra.mxu0 0.0
  %2852 = vmatprep.subr.mxu0 0.0
  %2853 = vmatpush1.msra.mxu0 0.0
  %2854 = vmatprep.subr.mxu0 0.0
  %2855 = vmatpush1.msra.mxu0 0.0
  %2856 = vmatprep.subr.mxu0 0.0
  %2857 = vmatpush1.msra.mxu0 0.0
  %2858 = vmatprep.subr.mxu0 0.0
  %2859 = vmatpush1.msra.mxu0 0.0
  %2860 = vmatprep.subr.mxu0 0.0
  %2861 = vmatpush1.msra.mxu0 0.0
  %2862 = vmatprep.subr.mxu0 0.0
  %2863 = vmatpush1.msra.mxu0 0.0
  %2864 = vmatprep.subr.mxu0 0.0
  %2865 = vmatpush1.msra.mxu0 0.0
  %2866 = vmatprep.subr.mxu0 0.0
  %2867 = vmatpush1.msra.mxu0 0.0
  %2868 = vmatprep.subr.mxu0 0.0
  %2869 = vmatpush1.msra.mxu0 0.0
  %2870 = vmatprep.subr.mxu0 0.0
  %2871 = vmatpush1.msra.mxu0 0.0
  %2872 = vmatprep.subr.mxu0 0.0
  %2873 = vmatpush1.msra.mxu0 0.0
  %2874 = vmatprep.subr.mxu0 0.0
  %2875 = vmatpush1.msra.mxu0 0.0
  %2876 = vmatprep.subr.mxu0 0.0
  %2877 = vmatpush1.msra.mxu0 0.0
  %2878 = vmatprep.subr.mxu0 0.0
  %2879 = vmatpush1.msra.mxu0 0.0
  %2880 = vmatprep.subr.mxu0 0.0
  %2881 = vmatpush1.msra.mxu0 0.0
  %2882 = vmatprep.subr.mxu0 0.0
  %2883 = vmatpush1.msra.mxu0 0.0
  %2884 = vmatprep.subr.mxu0 0.0
  %2885 = vmatpush1.msra.mxu0 0.0
  %2886 = vmatprep.subr.mxu0 0.0
  %2887 = vmatpush1.msra.mxu0 0.0
  %2888 = vmatprep.subr.mxu0 0.0
  %2889 = vmatpush1.msra.mxu0 0.0
  %2890 = vmatprep.subr.mxu0 0.0
  %2891 = vmatpush1.msra.mxu0 0.0
  %2892 = vmatprep.subr.mxu0 0.0
  %2893 = vmatpush1.msra.mxu0 0.0
  %2894 = vmatprep.subr.mxu0 0.0
  %2895 = vmatpush1.msra.mxu0 0.0
  %2896 = vmatprep.subr.mxu0 0.0
  %2897 = vmatpush1.msra.mxu0 0.0
  %2898 = vmatprep.subr.mxu0 0.0
  %2899 = vmatpush1.msra.mxu0 0.0
  %2900 = vmatprep.subr.mxu0 0.0
  %2901 = vmatpush1.msra.mxu0 0.0
  %2902 = vmatprep.subr.mxu0 0.0
  %2903 = vmatpush1.msra.mxu0 0.0
  %2904 = vmatprep.subr.mxu0 0.0
  %2905 = vmatpush1.msra.mxu0 0.0
  %2906 = vmatprep.subr.mxu0 0.0
  %2907 = vmatpush1.msra.mxu0 0.0
  %2908 = vmatprep.mubr.f32.mxu0 0.0
  %2909 = vmatmul.mubr.f32.gmra.mrb[0].mxu0 %v2842
  %v2910 = vpop.f32.mrb[0].mxu0
  %v2911 = vadd.f32 0.0, %v2910
  %v2912 = vpop.f32.mrb[0].mxu0
  %2913 = vdwg.mxu0
  %2914 = vrot.lane.b32.xlu0 %v2063, 120
  %v2915 = vpop.permute.xlu0 %2914
  %2916 = vrot.lane.b32.xlu0 %v2063, 88
  %v2917 = vpop.permute.xlu0 %2916
  %v2918 = vsel %vm209, %v2915, 0
  %v2920 = vsel %vm209, %v2917, 0
  %2922 = vmatprep.subr.mxu0 0.0
  %2923 = vmatpush1.xpose.msra.mxu0 %v2920
  %2924 = vmatprep.subr.mxu0 0.0
  %2925 = vmatpush1.xpose.msra.mxu0 0.0
  %2926 = vmatprep.subr.mxu0 0.0
  %2927 = vmatpush1.xpose.msra.mxu0 0.0
  %2928 = vmatprep.subr.mxu0 0.0
  %2929 = vmatpush1.xpose.msra.mxu0 0.0
  %2930 = vmatprep.subr.mxu0 0.0
  %2931 = vmatpush1.xpose.msra.mxu0 0.0
  %2932 = vmatprep.subr.mxu0 0.0
  %2933 = vmatpush1.xpose.msra.mxu0 0.0
  %2934 = vmatprep.subr.mxu0 0.0
  %2935 = vmatpush1.xpose.msra.mxu0 0.0
  %2936 = vmatprep.subr.mxu0 0.0
  %2937 = vmatpush1.xpose.msra.mxu0 0.0
  %2938 = vmatprep.subr.mxu0 0.0
  %2939 = vmatpush1.xpose.msra.mxu0 0.0
  %2940 = vmatprep.subr.mxu0 0.0
  %2941 = vmatpush1.xpose.msra.mxu0 0.0
  %2942 = vmatprep.subr.mxu0 0.0
  %2943 = vmatpush1.xpose.msra.mxu0 0.0
  %2944 = vmatprep.subr.mxu0 0.0
  %2945 = vmatpush1.xpose.msra.mxu0 0.0
  %2946 = vmatprep.subr.mxu0 0.0
  %2947 = vmatpush1.xpose.msra.mxu0 0.0
  %2948 = vmatprep.subr.mxu0 0.0
  %2949 = vmatpush1.xpose.msra.mxu0 0.0
  %2950 = vmatprep.subr.mxu0 0.0
  %2951 = vmatpush1.xpose.msra.mxu0 0.0
  %2952 = vmatprep.subr.mxu0 0.0
  %2953 = vmatpush1.xpose.msra.mxu0 0.0
  %2954 = vmatprep.subr.mxu0 0.0
  %2955 = vmatpush1.xpose.msra.mxu0 0.0
  %2956 = vmatprep.subr.mxu0 0.0
  %2957 = vmatpush1.xpose.msra.mxu0 0.0
  %2958 = vmatprep.subr.mxu0 0.0
  %2959 = vmatpush1.xpose.msra.mxu0 0.0
  %2960 = vmatprep.subr.mxu0 0.0
  %2961 = vmatpush1.xpose.msra.mxu0 0.0
  %2962 = vmatprep.subr.mxu0 0.0
  %2963 = vmatpush1.xpose.msra.mxu0 0.0
  %2964 = vmatprep.subr.mxu0 0.0
  %2965 = vmatpush1.xpose.msra.mxu0 0.0
  %2966 = vmatprep.subr.mxu0 0.0
  %2967 = vmatpush1.xpose.msra.mxu0 0.0
  %2968 = vmatprep.subr.mxu0 0.0
  %2969 = vmatpush1.xpose.msra.mxu0 0.0
  %2970 = vmatprep.subr.mxu0 0.0
  %2971 = vmatpush1.xpose.msra.mxu0 0.0
  %2972 = vmatprep.subr.mxu0 0.0
  %2973 = vmatpush1.xpose.msra.mxu0 0.0
  %2974 = vmatprep.subr.mxu0 0.0
  %2975 = vmatpush1.xpose.msra.mxu0 0.0
  %2976 = vmatprep.subr.mxu0 0.0
  %2977 = vmatpush1.xpose.msra.mxu0 0.0
  %2978 = vmatprep.subr.mxu0 0.0
  %2979 = vmatpush1.xpose.msra.mxu0 0.0
  %2980 = vmatprep.subr.mxu0 0.0
  %2981 = vmatpush1.xpose.msra.mxu0 0.0
  %2982 = vmatprep.subr.mxu0 0.0
  %2983 = vmatpush1.xpose.msra.mxu0 0.0
  %2984 = vmatprep.subr.mxu0 0.0
  %2985 = vmatpush1.xpose.msra.mxu0 0.0
  %2986 = vmatprep.mubr.f32.mxu0 0.0
  %2987 = vmatmul.mubr.f32.gmra.mrb[0].mxu0 %v2918
  %v2988 = vpop.f32.mrb[0].mxu0
  %v2989 = vadd.f32 0.0, %v2988
  %v2990 = vpop.f32.mrb[0].mxu0
  %2991 = vdwg.mxu0
  %v2992 = vmul.f32 %v2989, 0.35355338
  %v2993 = vadd.f32 %v2992, %v976
  %v2994 = vsel %vm209, %v2993, -inf
  %2995 = vmax.xlane.f32.xlu0 %v2994
  %v2996 = vpop.xlane.xlu0 %2995
  %v2997 = vsub.f32 %v2993, %v2996
  %v2998 = vmul.f32 %v2997, 1.442695
  %v2999 = vpow.pop %v2998
  %v3000 = vsel %vm209, %v2999, 0.0
  %3001 = vadd.xlane.f32.xlu0 %v3000
  %v3002 = vpop.xlane.xlu0 %3001
  %v3003 = vrcp.pop %v3002
  %v3004 = vmul.f32 %v2999, %v3003
  %3005 = vrot.lane.b32.xlu0 %v2063, 56
  %v3006 = vpop.permute.xlu0 %3005
  %v3009 = vsel %vm209, %v3004, 0
  %3011 = vmatprep.subr.mxu0 0.0
  %3012 = vmatpush1.msra.mxu0 %v3006
  %3013 = vmatprep.subr.mxu0 0.0
  %3014 = vmatpush1.msra.mxu0 0.0
  %3015 = vmatprep.subr.mxu0 0.0
  %3016 = vmatpush1.msra.mxu0 0.0
  %3017 = vmatprep.subr.mxu0 0.0
  %3018 = vmatpush1.msra.mxu0 0.0
  %3019 = vmatprep.subr.mxu0 0.0
  %3020 = vmatpush1.msra.mxu0 0.0
  %3021 = vmatprep.subr.mxu0 0.0
  %3022 = vmatpush1.msra.mxu0 0.0
  %3023 = vmatprep.subr.mxu0 0.0
  %3024 = vmatpush1.msra.mxu0 0.0
  %3025 = vmatprep.subr.mxu0 0.0
  %3026 = vmatpush1.msra.mxu0 0.0
  %3027 = vmatprep.subr.mxu0 0.0
  %3028 = vmatpush1.msra.mxu0 0.0
  %3029 = vmatprep.subr.mxu0 0.0
  %3030 = vmatpush1.msra.mxu0 0.0
  %3031 = vmatprep.subr.mxu0 0.0
  %3032 = vmatpush1.msra.mxu0 0.0
  %3033 = vmatprep.subr.mxu0 0.0
  %3034 = vmatpush1.msra.mxu0 0.0
  %3035 = vmatprep.subr.mxu0 0.0
  %3036 = vmatpush1.msra.mxu0 0.0
  %3037 = vmatprep.subr.mxu0 0.0
  %3038 = vmatpush1.msra.mxu0 0.0
  %3039 = vmatprep.subr.mxu0 0.0
  %3040 = vmatpush1.msra.mxu0 0.0
  %3041 = vmatprep.subr.mxu0 0.0
  %3042 = vmatpush1.msra.mxu0 0.0
  %3043 = vmatprep.subr.mxu0 0.0
  %3044 = vmatpush1.msra.mxu0 0.0
  %3045 = vmatprep.subr.mxu0 0.0
  %3046 = vmatpush1.msra.mxu0 0.0
  %3047 = vmatprep.subr.mxu0 0.0
  %3048 = vmatpush1.msra.mxu0 0.0
  %3049 = vmatprep.subr.mxu0 0.0
  %3050 = vmatpush1.msra.mxu0 0.0
  %3051 = vmatprep.subr.mxu0 0.0
  %3052 = vmatpush1.msra.mxu0 0.0
  %3053 = vmatprep.subr.mxu0 0.0
  %3054 = vmatpush1.msra.mxu0 0.0
  %3055 = vmatprep.subr.mxu0 0.0
  %3056 = vmatpush1.msra.mxu0 0.0
  %3057 = vmatprep.subr.mxu0 0.0
  %3058 = vmatpush1.msra.mxu0 0.0
  %3059 = vmatprep.subr.mxu0 0.0
  %3060 = vmatpush1.msra.mxu0 0.0
  %3061 = vmatprep.subr.mxu0 0.0
  %3062 = vmatpush1.msra.mxu0 0.0
  %3063 = vmatprep.subr.mxu0 0.0
  %3064 = vmatpush1.msra.mxu0 0.0
  %3065 = vmatprep.subr.mxu0 0.0
  %3066 = vmatpush1.msra.mxu0 0.0
  %3067 = vmatprep.subr.mxu0 0.0
  %3068 = vmatpush1.msra.mxu0 0.0
  %3069 = vmatprep.subr.mxu0 0.0
  %3070 = vmatpush1.msra.mxu0 0.0
  %3071 = vmatprep.subr.mxu0 0.0
  %3072 = vmatpush1.msra.mxu0 0.0
  %3073 = vmatprep.subr.mxu0 0.0
  %3074 = vmatpush1.msra.mxu0 0.0
  %3075 = vmatprep.mubr.f32.mxu0 0.0
  %3076 = vmatmul.mubr.f32.gmra.mrb[0].mxu0 %v3009
  %v3077 = vpop.f32.mrb[0].mxu0
  %v3078 = vadd.f32 0.0, %v3077
  %v3079 = vpop.f32.mrb[0].mxu0
  %3080 = vdwg.mxu0
  %3081 = vrot.lane.b32.xlu0 %v2063, 112
  %v3082 = vpop.permute.xlu0 %3081
  %3083 = vrot.lane.b32.xlu0 %v2063, 80
  %v3084 = vpop.permute.xlu0 %3083
  %v3085 = vsel %vm209, %v3082, 0
  %v3087 = vsel %vm209, %v3084, 0
  %3089 = vmatprep.subr.mxu0 0.0
  %3090 = vmatpush1.xpose.msra.mxu0 %v3087
  %3091 = vmatprep.subr.mxu0 0.0
  %3092 = vmatpush1.xpose.msra.mxu0 0.0
  %3093 = vmatprep.subr.mxu0 0.0
  %3094 = vmatpush1.xpose.msra.mxu0 0.0
  %3095 = vmatprep.subr.mxu0 0.0
  %3096 = vmatpush1.xpose.msra.mxu0 0.0
  %3097 = vmatprep.subr.mxu0 0.0
  %3098 = vmatpush1.xpose.msra.mxu0 0.0
  %3099 = vmatprep.subr.mxu0 0.0
  %3100 = vmatpush1.xpose.msra.mxu0 0.0
  %3101 = vmatprep.subr.mxu0 0.0
  %3102 = vmatpush1.xpose.msra.mxu0 0.0
  %3103 = vmatprep.subr.mxu0 0.0
  %3104 = vmatpush1.xpose.msra.mxu0 0.0
  %3105 = vmatprep.subr.mxu0 0.0
  %3106 = vmatpush1.xpose.msra.mxu0 0.0
  %3107 = vmatprep.subr.mxu0 0.0
  %3108 = vmatpush1.xpose.msra.mxu0 0.0
  %3109 = vmatprep.subr.mxu0 0.0
  %3110 = vmatpush1.xpose.msra.mxu0 0.0
  %3111 = vmatprep.subr.mxu0 0.0
  %3112 = vmatpush1.xpose.msra.mxu0 0.0
  %3113 = vmatprep.subr.mxu0 0.0
  %3114 = vmatpush1.xpose.msra.mxu0 0.0
  %3115 = vmatprep.subr.mxu0 0.0
  %3116 = vmatpush1.xpose.msra.mxu0 0.0
  %3117 = vmatprep.subr.mxu0 0.0
  %3118 = vmatpush1.xpose.msra.mxu0 0.0
  %3119 = vmatprep.subr.mxu0 0.0
  %3120 = vmatpush1.xpose.msra.mxu0 0.0
  %3121 = vmatprep.subr.mxu0 0.0
  %3122 = vmatpush1.xpose.msra.mxu0 0.0
  %3123 = vmatprep.subr.mxu0 0.0
  %3124 = vmatpush1.xpose.msra.mxu0 0.0
  %3125 = vmatprep.subr.mxu0 0.0
  %3126 = vmatpush1.xpose.msra.mxu0 0.0
  %3127 = vmatprep.subr.mxu0 0.0
  %3128 = vmatpush1.xpose.msra.mxu0 0.0
  %3129 = vmatprep.subr.mxu0 0.0
  %3130 = vmatpush1.xpose.msra.mxu0 0.0
  %3131 = vmatprep.subr.mxu0 0.0
  %3132 = vmatpush1.xpose.msra.mxu0 0.0
  %3133 = vmatprep.subr.mxu0 0.0
  %3134 = vmatpush1.xpose.msra.mxu0 0.0
  %3135 = vmatprep.subr.mxu0 0.0
  %3136 = vmatpush1.xpose.msra.mxu0 0.0
  %3137 = vmatprep.subr.mxu0 0.0
  %3138 = vmatpush1.xpose.msra.mxu0 0.0
  %3139 = vmatprep.subr.mxu0 0.0
  %3140 = vmatpush1.xpose.msra.mxu0 0.0
  %3141 = vmatprep.subr.mxu0 0.0
  %3142 = vmatpush1.xpose.msra.mxu0 0.0
  %3143 = vmatprep.subr.mxu0 0.0
  %3144 = vmatpush1.xpose.msra.mxu0 0.0
  %3145 = vmatprep.subr.mxu0 0.0
  %3146 = vmatpush1.xpose.msra.mxu0 0.0
  %3147 = vmatprep.subr.mxu0 0.0
  %3148 = vmatpush1.xpose.msra.mxu0 0.0
  %3149 = vmatprep.subr.mxu0 0.0
  %3150 = vmatpush1.xpose.msra.mxu0 0.0
  %3151 = vmatprep.subr.mxu0 0.0
  %3152 = vmatpush1.xpose.msra.mxu0 0.0
  %3153 = vmatprep.mubr.f32.mxu0 0.0
  %3154 = vmatmul.mubr.f32.gmra.mrb[0].mxu0 %v3085
  %v3155 = vpop.f32.mrb[0].mxu0
  %v3156 = vadd.f32 0.0, %v3155
  %v3157 = vpop.f32.mrb[0].mxu0
  %3158 = vdwg.mxu0
  %v3159 = vmul.f32 %v3156, 0.35355338
  %v3160 = vadd.f32 %v3159, %v976
  %v3161 = vsel %vm209, %v3160, -inf
  %3162 = vmax.xlane.f32.xlu0 %v3161
  %v3163 = vpop.xlane.xlu0 %3162
  %v3164 = vsub.f32 %v3160, %v3163
  %v3165 = vmul.f32 %v3164, 1.442695
  %v3166 = vpow.pop %v3165
  %v3167 = vsel %vm209, %v3166, 0.0
  %3168 = vadd.xlane.f32.xlu0 %v3167
  %v3169 = vpop.xlane.xlu0 %3168
  %v3170 = vrcp.pop %v3169
  %v3171 = vmul.f32 %v3166, %v3170
  %3172 = vrot.lane.b32.xlu0 %v2063, 48
  %v3173 = vpop.permute.xlu0 %3172
  %v3176 = vsel %vm209, %v3171, 0
  %3178 = vmatprep.subr.mxu0 0.0
  %3179 = vmatpush1.msra.mxu0 %v3173
  %3180 = vmatprep.subr.mxu0 0.0
  %3181 = vmatpush1.msra.mxu0 0.0
  %3182 = vmatprep.subr.mxu0 0.0
  %3183 = vmatpush1.msra.mxu0 0.0
  %3184 = vmatprep.subr.mxu0 0.0
  %3185 = vmatpush1.msra.mxu0 0.0
  %3186 = vmatprep.subr.mxu0 0.0
  %3187 = vmatpush1.msra.mxu0 0.0
  %3188 = vmatprep.subr.mxu0 0.0
  %3189 = vmatpush1.msra.mxu0 0.0
  %3190 = vmatprep.subr.mxu0 0.0
  %3191 = vmatpush1.msra.mxu0 0.0
  %3192 = vmatprep.subr.mxu0 0.0
  %3193 = vmatpush1.msra.mxu0 0.0
  %3194 = vmatprep.subr.mxu0 0.0
  %3195 = vmatpush1.msra.mxu0 0.0
  %3196 = vmatprep.subr.mxu0 0.0
  %3197 = vmatpush1.msra.mxu0 0.0
  %3198 = vmatprep.subr.mxu0 0.0
  %3199 = vmatpush1.msra.mxu0 0.0
  %3200 = vmatprep.subr.mxu0 0.0
  %3201 = vmatpush1.msra.mxu0 0.0
  %3202 = vmatprep.subr.mxu0 0.0
  %3203 = vmatpush1.msra.mxu0 0.0
  %3204 = vmatprep.subr.mxu0 0.0
  %3205 = vmatpush1.msra.mxu0 0.0
  %3206 = vmatprep.subr.mxu0 0.0
  %3207 = vmatpush1.msra.mxu0 0.0
  %3208 = vmatprep.subr.mxu0 0.0
  %3209 = vmatpush1.msra.mxu0 0.0
  %3210 = vmatprep.subr.mxu0 0.0
  %3211 = vmatpush1.msra.mxu0 0.0
  %3212 = vmatprep.subr.mxu0 0.0
  %3213 = vmatpush1.msra.mxu0 0.0
  %3214 = vmatprep.subr.mxu0 0.0
  %3215 = vmatpush1.msra.mxu0 0.0
  %3216 = vmatprep.subr.mxu0 0.0
  %3217 = vmatpush1.msra.mxu0 0.0
  %3218 = vmatprep.subr.mxu0 0.0
  %3219 = vmatpush1.msra.mxu0 0.0
  %3220 = vmatprep.subr.mxu0 0.0
  %3221 = vmatpush1.msra.mxu0 0.0
  %3222 = vmatprep.subr.mxu0 0.0
  %3223 = vmatpush1.msra.mxu0 0.0
  %3224 = vmatprep.subr.mxu0 0.0
  %3225 = vmatpush1.msra.mxu0 0.0
  %3226 = vmatprep.subr.mxu0 0.0
  %3227 = vmatpush1.msra.mxu0 0.0
  %3228 = vmatprep.subr.mxu0 0.0
  %3229 = vmatpush1.msra.mxu0 0.0
  %3230 = vmatprep.subr.mxu0 0.0
  %3231 = vmatpush1.msra.mxu0 0.0
  %3232 = vmatprep.subr.mxu0 0.0
  %3233 = vmatpush1.msra.mxu0 0.0
  %3234 = vmatprep.subr.mxu0 0.0
  %3235 = vmatpush1.msra.mxu0 0.0
  %3236 = vmatprep.subr.mxu0 0.0
  %3237 = vmatpush1.msra.mxu0 0.0
  %3238 = vmatprep.subr.mxu0 0.0
  %3239 = vmatpush1.msra.mxu0 0.0
  %3240 = vmatprep.subr.mxu0 0.0
  %3241 = vmatpush1.msra.mxu0 0.0
  %3242 = vmatprep.mubr.f32.mxu0 0.0
  %3243 = vmatmul.mubr.f32.gmra.mrb[0].mxu0 %v3176
  %v3244 = vpop.f32.mrb[0].mxu0
  %v3245 = vadd.f32 0.0, %v3244
  %v3246 = vpop.f32.mrb[0].mxu0
  %3247 = vdwg.mxu0
  %3248 = vrot.lane.b32.xlu0 %v2063, 104
  %v3249 = vpop.permute.xlu0 %3248
  %3250 = vrot.lane.b32.xlu0 %v2063, 72
  %v3251 = vpop.permute.xlu0 %3250
  %v3252 = vsel %vm209, %v3249, 0
  %v3254 = vsel %vm209, %v3251, 0
  %3256 = vmatprep.subr.mxu0 0.0
  %3257 = vmatpush1.xpose.msra.mxu0 %v3254
  %3258 = vmatprep.subr.mxu0 0.0
  %3259 = vmatpush1.xpose.msra.mxu0 0.0
  %3260 = vmatprep.subr.mxu0 0.0
  %3261 = vmatpush1.xpose.msra.mxu0 0.0
  %3262 = vmatprep.subr.mxu0 0.0
  %3263 = vmatpush1.xpose.msra.mxu0 0.0
  %3264 = vmatprep.subr.mxu0 0.0
  %3265 = vmatpush1.xpose.msra.mxu0 0.0
  %3266 = vmatprep.subr.mxu0 0.0
  %3267 = vmatpush1.xpose.msra.mxu0 0.0
  %3268 = vmatprep.subr.mxu0 0.0
  %3269 = vmatpush1.xpose.msra.mxu0 0.0
  %3270 = vmatprep.subr.mxu0 0.0
  %3271 = vmatpush1.xpose.msra.mxu0 0.0
  %3272 = vmatprep.subr.mxu0 0.0
  %3273 = vmatpush1.xpose.msra.mxu0 0.0
  %3274 = vmatprep.subr.mxu0 0.0
  %3275 = vmatpush1.xpose.msra.mxu0 0.0
  %3276 = vmatprep.subr.mxu0 0.0
  %3277 = vmatpush1.xpose.msra.mxu0 0.0
  %3278 = vmatprep.subr.mxu0 0.0
  %3279 = vmatpush1.xpose.msra.mxu0 0.0
  %3280 = vmatprep.subr.mxu0 0.0
  %3281 = vmatpush1.xpose.msra.mxu0 0.0
  %3282 = vmatprep.subr.mxu0 0.0
  %3283 = vmatpush1.xpose.msra.mxu0 0.0
  %3284 = vmatprep.subr.mxu0 0.0
  %3285 = vmatpush1.xpose.msra.mxu0 0.0
  %3286 = vmatprep.subr.mxu0 0.0
  %3287 = vmatpush1.xpose.msra.mxu0 0.0
  %3288 = vmatprep.subr.mxu0 0.0
  %3289 = vmatpush1.xpose.msra.mxu0 0.0
  %3290 = vmatprep.subr.mxu0 0.0
  %3291 = vmatpush1.xpose.msra.mxu0 0.0
  %3292 = vmatprep.subr.mxu0 0.0
  %3293 = vmatpush1.xpose.msra.mxu0 0.0
  %3294 = vmatprep.subr.mxu0 0.0
  %3295 = vmatpush1.xpose.msra.mxu0 0.0
  %3296 = vmatprep.subr.mxu0 0.0
  %3297 = vmatpush1.xpose.msra.mxu0 0.0
  %3298 = vmatprep.subr.mxu0 0.0
  %3299 = vmatpush1.xpose.msra.mxu0 0.0
  %3300 = vmatprep.subr.mxu0 0.0
  %3301 = vmatpush1.xpose.msra.mxu0 0.0
  %3302 = vmatprep.subr.mxu0 0.0
  %3303 = vmatpush1.xpose.msra.mxu0 0.0
  %3304 = vmatprep.subr.mxu0 0.0
  %3305 = vmatpush1.xpose.msra.mxu0 0.0
  %3306 = vmatprep.subr.mxu0 0.0
  %3307 = vmatpush1.xpose.msra.mxu0 0.0
  %3308 = vmatprep.subr.mxu0 0.0
  %3309 = vmatpush1.xpose.msra.mxu0 0.0
  %3310 = vmatprep.subr.mxu0 0.0
  %3311 = vmatpush1.xpose.msra.mxu0 0.0
  %3312 = vmatprep.subr.mxu0 0.0
  %3313 = vmatpush1.xpose.msra.mxu0 0.0
  %3314 = vmatprep.subr.mxu0 0.0
  %3315 = vmatpush1.xpose.msra.mxu0 0.0
  %3316 = vmatprep.subr.mxu0 0.0
  %3317 = vmatpush1.xpose.msra.mxu0 0.0
  %3318 = vmatprep.subr.mxu0 0.0
  %3319 = vmatpush1.xpose.msra.mxu0 0.0
  %3320 = vmatprep.mubr.f32.mxu0 0.0
  %3321 = vmatmul.mubr.f32.gmra.mrb[0].mxu0 %v3252
  %v3322 = vpop.f32.mrb[0].mxu0
  %v3323 = vadd.f32 0.0, %v3322
  %v3324 = vpop.f32.mrb[0].mxu0
  %3325 = vdwg.mxu0
  %v3326 = vmul.f32 %v3323, 0.35355338
  %v3327 = vadd.f32 %v3326, %v976
  %v3328 = vsel %vm209, %v3327, -inf
  %3329 = vmax.xlane.f32.xlu0 %v3328
  %v3330 = vpop.xlane.xlu0 %3329
  %v3331 = vsub.f32 %v3327, %v3330
  %v3332 = vmul.f32 %v3331, 1.442695
  %v3333 = vpow.pop %v3332
  %v3334 = vsel %vm209, %v3333, 0.0
  %3335 = vadd.xlane.f32.xlu0 %v3334
  %v3336 = vpop.xlane.xlu0 %3335
  %v3337 = vrcp.pop %v3336
  %v3338 = vmul.f32 %v3333, %v3337
  %3339 = vrot.lane.b32.xlu0 %v2063, 40
  %v3340 = vpop.permute.xlu0 %3339
  %v3343 = vsel %vm209, %v3338, 0
  %3345 = vmatprep.subr.mxu0 0.0
  %3346 = vmatpush1.msra.mxu0 %v3340
  %3347 = vmatprep.subr.mxu0 0.0
  %3348 = vmatpush1.msra.mxu0 0.0
  %3349 = vmatprep.subr.mxu0 0.0
  %3350 = vmatpush1.msra.mxu0 0.0
  %3351 = vmatprep.subr.mxu0 0.0
  %3352 = vmatpush1.msra.mxu0 0.0
  %3353 = vmatprep.subr.mxu0 0.0
  %3354 = vmatpush1.msra.mxu0 0.0
  %3355 = vmatprep.subr.mxu0 0.0
  %3356 = vmatpush1.msra.mxu0 0.0
  %3357 = vmatprep.subr.mxu0 0.0
  %3358 = vmatpush1.msra.mxu0 0.0
  %3359 = vmatprep.subr.mxu0 0.0
  %3360 = vmatpush1.msra.mxu0 0.0
  %3361 = vmatprep.subr.mxu0 0.0
  %3362 = vmatpush1.msra.mxu0 0.0
  %3363 = vmatprep.subr.mxu0 0.0
  %3364 = vmatpush1.msra.mxu0 0.0
  %3365 = vmatprep.subr.mxu0 0.0
  %3366 = vmatpush1.msra.mxu0 0.0
  %3367 = vmatprep.subr.mxu0 0.0
  %3368 = vmatpush1.msra.mxu0 0.0
  %3369 = vmatprep.subr.mxu0 0.0
  %3370 = vmatpush1.msra.mxu0 0.0
  %3371 = vmatprep.subr.mxu0 0.0
  %3372 = vmatpush1.msra.mxu0 0.0
  %3373 = vmatprep.subr.mxu0 0.0
  %3374 = vmatpush1.msra.mxu0 0.0
  %3375 = vmatprep.subr.mxu0 0.0
  %3376 = vmatpush1.msra.mxu0 0.0
  %3377 = vmatprep.subr.mxu0 0.0
  %3378 = vmatpush1.msra.mxu0 0.0
  %3379 = vmatprep.subr.mxu0 0.0
  %3380 = vmatpush1.msra.mxu0 0.0
  %3381 = vmatprep.subr.mxu0 0.0
  %3382 = vmatpush1.msra.mxu0 0.0
  %3383 = vmatprep.subr.mxu0 0.0
  %3384 = vmatpush1.msra.mxu0 0.0
  %3385 = vmatprep.subr.mxu0 0.0
  %3386 = vmatpush1.msra.mxu0 0.0
  %3387 = vmatprep.subr.mxu0 0.0
  %3388 = vmatpush1.msra.mxu0 0.0
  %3389 = vmatprep.subr.mxu0 0.0
  %3390 = vmatpush1.msra.mxu0 0.0
  %3391 = vmatprep.subr.mxu0 0.0
  %3392 = vmatpush1.msra.mxu0 0.0
  %3393 = vmatprep.subr.mxu0 0.0
  %3394 = vmatpush1.msra.mxu0 0.0
  %3395 = vmatprep.subr.mxu0 0.0
  %3396 = vmatpush1.msra.mxu0 0.0
  %3397 = vmatprep.subr.mxu0 0.0
  %3398 = vmatpush1.msra.mxu0 0.0
  %3399 = vmatprep.subr.mxu0 0.0
  %3400 = vmatpush1.msra.mxu0 0.0
  %3401 = vmatprep.subr.mxu0 0.0
  %3402 = vmatpush1.msra.mxu0 0.0
  %3403 = vmatprep.subr.mxu0 0.0
  %3404 = vmatpush1.msra.mxu0 0.0
  %3405 = vmatprep.subr.mxu0 0.0
  %3406 = vmatpush1.msra.mxu0 0.0
  %3407 = vmatprep.subr.mxu0 0.0
  %3408 = vmatpush1.msra.mxu0 0.0
  %3409 = vmatprep.mubr.f32.mxu0 0.0
  %3410 = vmatmul.mubr.f32.gmra.mrb[0].mxu0 %v3343
  %v3411 = vpop.f32.mrb[0].mxu0
  %v3412 = vadd.f32 0.0, %v3411
  %v3413 = vpop.f32.mrb[0].mxu0
  %3414 = vdwg.mxu0
  %3416 = vrot.lane.b32.xlu0 %v3078, 8
  %v3417 = vpop.permute.xlu0 %3416
  %3420 = vrot.lane.b32.xlu0 %v3245, 16
  %v3421 = vpop.permute.xlu0 %3420
  %3424 = vrot.lane.b32.xlu0 %v3412, 24
  %v3425 = vpop.permute.xlu0 %3424
  %v3427 = vsel %vm209, %v2911, %v3417
  %v3428 = vsel %vm891, %v3427, %v3421
  %v3429 = vsel %vm893, %v3428, %v3425
  %s3430 = scalar_lea.vmem %s6, 32
  %v3431 = vld [vmem:[%s3430] sm:$0xff]
  %v3432 = vld [vmem:[%s3430 + $0x8] sm:$0xff]
  %v3433 = vld [vmem:[%s3430 + $0x10] sm:$0xff]
  %v3434 = vld [vmem:[%s3430 + $0x18] sm:$0xff]
  %s3435 = scalar_lea.vmem %s7, 1
  %v3436 = vld [vmem:[%s3435] sm:$0x1]
  %v3438 = vlaneseq
  %v3439 = vshrl.u32 %v3438, 7
  %v3440 = vsub.s32 0, %v3439
  %v3441 = vrot.slane %v3436, %v3440
  %v3444 = vsel %vm69, %v2747, 0
  %v3447 = vsel %vm69, %v3429, 0
  %3449 = vmatprep.subr.mxu0 0.0
  %3450 = vmatpush1.msra.mxu0 %v3431
  %3451 = vmatprep.subr.mxu0 0.0
  %3452 = vmatpush1.msra.mxu0 %v3432
  %3453 = vmatprep.subr.mxu0 0.0
  %3454 = vmatpush1.msra.mxu0 %v3433
  %3455 = vmatprep.subr.mxu0 0.0
  %3456 = vmatpush1.msra.mxu0 %v3434
  %3457 = vmatprep.subr.mxu0 0.0
  %3458 = vmatpush1.msra.mxu0 0.0
  %3459 = vmatprep.subr.mxu0 0.0
  %3460 = vmatpush1.msra.mxu0 0.0
  %3461 = vmatprep.subr.mxu0 0.0
  %3462 = vmatpush1.msra.mxu0 0.0
  %3463 = vmatprep.subr.mxu0 0.0
  %3464 = vmatpush1.msra.mxu0 0.0
  %3465 = vmatprep.subr.mxu0 0.0
  %3466 = vmatpush1.msra.mxu0 0.0
  %3467 = vmatprep.subr.mxu0 0.0
  %3468 = vmatpush1.msra.mxu0 0.0
  %3469 = vmatprep.subr.mxu0 0.0
  %3470 = vmatpush1.msra.mxu0 0.0
  %3471 = vmatprep.subr.mxu0 0.0
  %3472 = vmatpush1.msra.mxu0 0.0
  %3473 = vmatprep.subr.mxu0 0.0
  %3474 = vmatpush1.msra.mxu0 0.0
  %3475 = vmatprep.subr.mxu0 0.0
  %3476 = vmatpush1.msra.mxu0 0.0
  %3477 = vmatprep.subr.mxu0 0.0
  %3478 = vmatpush1.msra.mxu0 0.0
  %3479 = vmatprep.subr.mxu0 0.0
  %3480 = vmatpush1.msra.mxu0 0.0
  %3481 = vmatprep.subr.mxu0 0.0
  %3482 = vmatpush1.msra.mxu0 0.0
  %3483 = vmatprep.subr.mxu0 0.0
  %3484 = vmatpush1.msra.mxu0 0.0
  %3485 = vmatprep.subr.mxu0 0.0
  %3486 = vmatpush1.msra.mxu0 0.0
  %3487 = vmatprep.subr.mxu0 0.0
  %3488 = vmatpush1.msra.mxu0 0.0
  %3489 = vmatprep.subr.mxu0 0.0
  %3490 = vmatpush1.msra.mxu0 0.0
  %3491 = vmatprep.subr.mxu0 0.0
  %3492 = vmatpush1.msra.mxu0 0.0
  %3493 = vmatprep.subr.mxu0 0.0
  %3494 = vmatpush1.msra.mxu0 0.0
  %3495 = vmatprep.subr.mxu0 0.0
  %3496 = vmatpush1.msra.mxu0 0.0
  %3497 = vmatprep.subr.mxu0 0.0
  %3498 = vmatpush1.msra.mxu0 0.0
  %3499 = vmatprep.subr.mxu0 0.0
  %3500 = vmatpush1.msra.mxu0 0.0
  %3501 = vmatprep.subr.mxu0 0.0
  %3502 = vmatpush1.msra.mxu0 0.0
  %3503 = vmatprep.subr.mxu0 0.0
  %3504 = vmatpush1.msra.mxu0 0.0
  %3505 = vmatprep.subr.mxu0 0.0
  %3506 = vmatpush1.msra.mxu0 0.0
  %3507 = vmatprep.subr.mxu0 0.0
  %3508 = vmatpush1.msra.mxu0 0.0
  %3509 = vmatprep.subr.mxu0 0.0
  %3510 = vmatpush1.msra.mxu0 0.0
  %3511 = vmatprep.subr.mxu0 0.0
  %3512 = vmatpush1.msra.mxu0 0.0
  %3513 = vmatprep.mubr.f32.mxu0 0.0
  %3514 = vmatmul.mubr.f32.gmra.mrb[0].mxu0 %v3444
  %v3515 = vpop.f32.mrb[0].mxu0
  %v3516 = vadd.f32 %v3441, %v3515
  %v3517 = vpop.f32.mrb[0].mxu0
  %3518 = vmatprep.mubr.f32.mxu0 0.0
  %3519 = vmatmul.mubr.f32.gmra.mrb[0].mxu0 %v3447
  %v3520 = vpop.f32.mrb[0].mxu0
  %v3521 = vadd.f32 %v3441, %v3520
  %v3522 = vpop.f32.mrb[0].mxu0
  %3523 = vdwg.mxu0
  %v3524 = vadd.f32 %v1970, %v3516
  %v3525 = vadd.f32 %v1971, %v3521
  %s3526 = scalar_lea.vmem %s8, 1
  %v3527 = vld [vmem:[%s3526] sm:$0x1]
  %s3528 = scalar_lea.vmem %s9, 1
  %v3529 = vld [vmem:[%s3528] sm:$0x1]
  %v3530 = vsel %vm69, %v3524, 0.0
  %3531 = vadd.xlane.f32.xlu0 %v3530
  %v3532 = vpop.xlane.xlu0 %3531
  %v3533 = vsel %vm69, %v3525, 0.0
  %3534 = vadd.xlane.f32.xlu0 %v3533
  %v3535 = vpop.xlane.xlu0 %3534
  %v3536 = vmul.f32 %v3532, %v76
  %v3537 = vmul.f32 %v3535, %v76
  %v3538 = vsub.f32 %v3524, %v3536
  %v3539 = vsub.f32 %v3525, %v3537
  %v3540 = vmul.f32 %v3538, %v3538
  %v3541 = vmul.f32 %v3539, %v3539
  %v3542 = vsel %vm69, %v3540, 0.0
  %3543 = vadd.xlane.f32.xlu0 %v3542
  %v3544 = vpop.xlane.xlu0 %3543
  %v3545 = vsel %vm69, %v3541, 0.0
  %3546 = vadd.xlane.f32.xlu0 %v3545
  %v3547 = vpop.xlane.xlu0 %3546
  %v3548 = vmul.f32 %v3544, %v76
  %v3549 = vmul.f32 %v3547, %v76
  %v3550 = vadd.f32 %v3548, 1e-12
  %v3551 = vadd.f32 %v3549, 1e-12
  %v3552 = vrsqrt.pop %v3550
  %v3553 = vrsqrt.pop %v3551
  %v3554 = vmul.f32 %v3538, %v3552
  %v3555 = vmul.f32 %v3539, %v3553
  %v3557 = vlaneseq
  %v3558 = vshrl.u32 %v3557, 7
  %v3559 = vsub.s32 0, %v3558
  %v3560 = vrot.slane %v3527, %v3559
  %v3562 = vmul.f32 %v3554, %v3560
  %v3563 = vmul.f32 %v3555, %v3560
  %v3565 = vlaneseq
  %v3566 = vshrl.u32 %v3565, 7
  %v3567 = vsub.s32 0, %v3566
  %v3568 = vrot.slane %v3529, %v3567
  %v3570 = vadd.f32 %v3562, %v3568
  %v3571 = vadd.f32 %v3563, %v3568
  %s3572 = scalar_lea.vmem %s10, 32
  %v3573 = vld [vmem:[%s3572] sm:$0xff]
  %v3574 = vld [vmem:[%s3572 + $0x8] sm:$0xff]
  %v3575 = vld [vmem:[%s3572 + $0x10] sm:$0xff]
  %v3576 = vld [vmem:[%s3572 + $0x18] sm:$0xff]
  %s3577 = scalar_lea.vmem %s11, 1
  %v3578 = vld [vmem:[%s3577] sm:$0x1]
  %v3580 = vlaneseq
  %v3581 = vshrl.u32 %v3580, 7
  %v3582 = vsub.s32 0, %v3581
  %v3583 = vrot.slane %v3578, %v3582
  %v3586 = vsel %vm69, %v3570, 0
  %v3589 = vsel %vm69, %v3571, 0
  %3591 = vmatprep.subr.mxu0 0.0
  %3592 = vmatpush1.msra.mxu0 %v3573
  %3593 = vmatprep.subr.mxu0 0.0
  %3594 = vmatpush1.msra.mxu0 %v3574
  %3595 = vmatprep.subr.mxu0 0.0
  %3596 = vmatpush1.msra.mxu0 %v3575
  %3597 = vmatprep.subr.mxu0 0.0
  %3598 = vmatpush1.msra.mxu0 %v3576
  %3599 = vmatprep.subr.mxu0 0.0
  %3600 = vmatpush1.msra.mxu0 0.0
  %3601 = vmatprep.subr.mxu0 0.0
  %3602 = vmatpush1.msra.mxu0 0.0
  %3603 = vmatprep.subr.mxu0 0.0
  %3604 = vmatpush1.msra.mxu0 0.0
  %3605 = vmatprep.subr.mxu0 0.0
  %3606 = vmatpush1.msra.mxu0 0.0
  %3607 = vmatprep.subr.mxu0 0.0
  %3608 = vmatpush1.msra.mxu0 0.0
  %3609 = vmatprep.subr.mxu0 0.0
  %3610 = vmatpush1.msra.mxu0 0.0
  %3611 = vmatprep.subr.mxu0 0.0
  %3612 = vmatpush1.msra.mxu0 0.0
  %3613 = vmatprep.subr.mxu0 0.0
  %3614 = vmatpush1.msra.mxu0 0.0
  %3615 = vmatprep.subr.mxu0 0.0
  %3616 = vmatpush1.msra.mxu0 0.0
  %3617 = vmatprep.subr.mxu0 0.0
  %3618 = vmatpush1.msra.mxu0 0.0
  %3619 = vmatprep.subr.mxu0 0.0
  %3620 = vmatpush1.msra.mxu0 0.0
  %3621 = vmatprep.subr.mxu0 0.0
  %3622 = vmatpush1.msra.mxu0 0.0
  %3623 = vmatprep.subr.mxu0 0.0
  %3624 = vmatpush1.msra.mxu0 0.0
  %3625 = vmatprep.subr.mxu0 0.0
  %3626 = vmatpush1.msra.mxu0 0.0
  %3627 = vmatprep.subr.mxu0 0.0
  %3628 = vmatpush1.msra.mxu0 0.0
  %3629 = vmatprep.subr.mxu0 0.0
  %3630 = vmatpush1.msra.mxu0 0.0
  %3631 = vmatprep.subr.mxu0 0.0
  %3632 = vmatpush1.msra.mxu0 0.0
  %3633 = vmatprep.subr.mxu0 0.0
  %3634 = vmatpush1.msra.mxu0 0.0
  %3635 = vmatprep.subr.mxu0 0.0
  %3636 = vmatpush1.msra.mxu0 0.0
  %3637 = vmatprep.subr.mxu0 0.0
  %3638 = vmatpush1.msra.mxu0 0.0
  %3639 = vmatprep.subr.mxu0 0.0
  %3640 = vmatpush1.msra.mxu0 0.0
  %3641 = vmatprep.subr.mxu0 0.0
  %3642 = vmatpush1.msra.mxu0 0.0
  %3643 = vmatprep.subr.mxu0 0.0
  %3644 = vmatpush1.msra.mxu0 0.0
  %3645 = vmatprep.subr.mxu0 0.0
  %3646 = vmatpush1.msra.mxu0 0.0
  %3647 = vmatprep.subr.mxu0 0.0
  %3648 = vmatpush1.msra.mxu0 0.0
  %3649 = vmatprep.subr.mxu0 0.0
  %3650 = vmatpush1.msra.mxu0 0.0
  %3651 = vmatprep.subr.mxu0 0.0
  %3652 = vmatpush1.msra.mxu0 0.0
  %3653 = vmatprep.subr.mxu0 0.0
  %3654 = vmatpush1.msra.mxu0 0.0
  %3655 = vmatprep.mubr.f32.mxu0 0.0
  %3656 = vmatmul.mubr.f32.gmra.mrb[0].mxu0 %v3586
  %v3657 = vpop.f32.mrb[0].mxu0
  %v3658 = vadd.f32 %v3583, %v3657
  %v3659 = vpop.f32.mrb[0].mxu0
  %3660 = vmatprep.mubr.f32.mxu0 0.0
  %3661 = vmatmul.mubr.f32.gmra.mrb[0].mxu0 %v3589
  %v3662 = vpop.f32.mrb[0].mxu0
  %v3663 = vadd.f32 %v3583, %v3662
  %v3664 = vpop.f32.mrb[0].mxu0
  %3665 = vdwg.mxu0
  %v3666 = vmul.f32 %v3658, %v3658
  %v3667 = vmul.f32 %v3663, %v3663
  %v3668 = vmul.f32 %v3658, %v3666
  %v3669 = vmul.f32 %v3663, %v3667
  %v3670 = vmul.f32 %v3668, 0.044715
  %v3671 = vmul.f32 %v3669, 0.044715
  %v3672 = vadd.f32 %v3658, %v3670
  %v3673 = vadd.f32 %v3663, %v3671
  %v3674 = vmul.f32 %v3672, 0.7978846
  %v3675 = vmul.f32 %v3673, 0.7978846
  %v3676 = vtanh.pop %v3674
  %v3677 = vtanh.pop %v3675
  %v3678 = vadd.f32 %v3676, 1.0
  %v3679 = vadd.f32 %v3677, 1.0
  %v3680 = vmul.f32 %v3678, 0.5
  %v3681 = vmul.f32 %v3679, 0.5
  %v3682 = vmul.f32 %v3658, %v3680
  %v3683 = vmul.f32 %v3663, %v3681
  %s3684 = scalar_lea.vmem %s12, 64
  %v3685 = vld [vmem:[%s3684] sm:$0xff]
  %v3686 = vld [vmem:[%s3684 + $0x8] sm:$0xff]
  %v3687 = vld [vmem:[%s3684 + $0x10] sm:$0xff]
  %v3688 = vld [vmem:[%s3684 + $0x18] sm:$0xff]
  %v3689 = vld [vmem:[%s3684 + $0x20] sm:$0xff]
  %v3690 = vld [vmem:[%s3684 + $0x28] sm:$0xff]
  %v3691 = vld [vmem:[%s3684 + $0x30] sm:$0xff]
  %v3692 = vld [vmem:[%s3684 + $0x38] sm:$0xff]
  %s3693 = scalar_lea.vmem %s13, 1
  %v3694 = vld [vmem:[%s3693] sm:$0x1]
  %v3696 = vlaneseq
  %v3697 = vshrl.u32 %v3696, 7
  %v3698 = vsub.s32 0, %v3697
  %v3699 = vrot.slane %v3694, %v3698
  %v3702 = vsel %vm1844, %v3682, 0
  %v3705 = vsel %vm1844, %v3683, 0
  %3707 = vmatprep.subr.mxu0 0.0
  %3708 = vmatpush1.msra.mxu0 %v3685
  %3709 = vmatprep.subr.mxu0 0.0
  %3710 = vmatpush1.msra.mxu0 %v3686
  %3711 = vmatprep.subr.mxu0 0.0
  %3712 = vmatpush1.msra.mxu0 %v3687
  %3713 = vmatprep.subr.mxu0 0.0
  %3714 = vmatpush1.msra.mxu0 %v3688
  %3715 = vmatprep.subr.mxu0 0.0
  %3716 = vmatpush1.msra.mxu0 %v3689
  %3717 = vmatprep.subr.mxu0 0.0
  %3718 = vmatpush1.msra.mxu0 %v3690
  %3719 = vmatprep.subr.mxu0 0.0
  %3720 = vmatpush1.msra.mxu0 %v3691
  %3721 = vmatprep.subr.mxu0 0.0
  %3722 = vmatpush1.msra.mxu0 %v3692
  %3723 = vmatprep.subr.mxu0 0.0
  %3724 = vmatpush1.msra.mxu0 0.0
  %3725 = vmatprep.subr.mxu0 0.0
  %3726 = vmatpush1.msra.mxu0 0.0
  %3727 = vmatprep.subr.mxu0 0.0
  %3728 = vmatpush1.msra.mxu0 0.0
  %3729 = vmatprep.subr.mxu0 0.0
  %3730 = vmatpush1.msra.mxu0 0.0
  %3731 = vmatprep.subr.mxu0 0.0
  %3732 = vmatpush1.msra.mxu0 0.0
  %3733 = vmatprep.subr.mxu0 0.0
  %3734 = vmatpush1.msra.mxu0 0.0
  %3735 = vmatprep.subr.mxu0 0.0
  %3736 = vmatpush1.msra.mxu0 0.0
  %3737 = vmatprep.subr.mxu0 0.0
  %3738 = vmatpush1.msra.mxu0 0.0
  %3739 = vmatprep.subr.mxu0 0.0
  %3740 = vmatpush1.msra.mxu0 0.0
  %3741 = vmatprep.subr.mxu0 0.0
  %3742 = vmatpush1.msra.mxu0 0.0
  %3743 = vmatprep.subr.mxu0 0.0
  %3744 = vmatpush1.msra.mxu0 0.0
  %3745 = vmatprep.subr.mxu0 0.0
  %3746 = vmatpush1.msra.mxu0 0.0
  %3747 = vmatprep.subr.mxu0 0.0
  %3748 = vmatpush1.msra.mxu0 0.0
  %3749 = vmatprep.subr.mxu0 0.0
  %3750 = vmatpush1.msra.mxu0 0.0
  %3751 = vmatprep.subr.mxu0 0.0
  %3752 = vmatpush1.msra.mxu0 0.0
  %3753 = vmatprep.subr.mxu0 0.0
  %3754 = vmatpush1.msra.mxu0 0.0
  %3755 = vmatprep.subr.mxu0 0.0
  %3756 = vmatpush1.msra.mxu0 0.0
  %3757 = vmatprep.subr.mxu0 0.0
  %3758 = vmatpush1.msra.mxu0 0.0
  %3759 = vmatprep.subr.mxu0 0.0
  %3760 = vmatpush1.msra.mxu0 0.0
  %3761 = vmatprep.subr.mxu0 0.0
  %3762 = vmatpush1.msra.mxu0 0.0
  %3763 = vmatprep.subr.mxu0 0.0
  %3764 = vmatpush1.msra.mxu0 0.0
  %3765 = vmatprep.subr.mxu0 0.0
  %3766 = vmatpush1.msra.mxu0 0.0
  %3767 = vmatprep.subr.mxu0 0.0
  %3768 = vmatpush1.msra.mxu0 0.0
  %3769 = vmatprep.subr.mxu0 0.0
  %3770 = vmatpush1.msra.mxu0 0.0
  %3771 = vmatprep.mubr.f32.mxu0 0.0
  %3772 = vmatmul.mubr.f32.gmra.mrb[0].mxu0 %v3702
  %v3773 = vpop.f32.mrb[0].mxu0
  %v3774 = vadd.f32 %v3699, %v3773
  %v3775 = vpop.f32.mrb[0].mxu0
  %3776 = vmatprep.mubr.f32.mxu0 0.0
  %3777 = vmatmul.mubr.f32.gmra.mrb[0].mxu0 %v3705
  %v3778 = vpop.f32.mrb[0].mxu0
  %v3779 = vadd.f32 %v3699, %v3778
  %v3780 = vpop.f32.mrb[0].mxu0
  %3781 = vdwg.mxu0
  %v3782 = vadd.f32 %v3570, %v3774
  %v3783 = vadd.f32 %v3571, %v3779
  %s3784 = scalar_lea.vmem %s14, 1
  %v3785 = vld [vmem:[%s3784] sm:$0x1]
  %s3786 = scalar_lea.vmem %s15, 1
  %v3787 = vld [vmem:[%s3786] sm:$0x1]
  %v3788 = vsel %vm69, %v3782, 0.0
  %3789 = vadd.xlane.f32.xlu0 %v3788
  %v3790 = vpop.xlane.xlu0 %3789
  %v3791 = vsel %vm69, %v3783, 0.0
  %3792 = vadd.xlane.f32.xlu0 %v3791
  %v3793 = vpop.xlane.xlu0 %3792
  %v3794 = vmul.f32 %v3790, %v76
  %v3795 = vmul.f32 %v3793, %v76
  %v3796 = vsub.f32 %v3782, %v3794
  %v3797 = vsub.f32 %v3783, %v3795
  %v3798 = vmul.f32 %v3796, %v3796
  %v3799 = vmul.f32 %v3797, %v3797
  %v3800 = vsel %vm69, %v3798, 0.0
  %3801 = vadd.xlane.f32.xlu0 %v3800
  %v3802 = vpop.xlane.xlu0 %3801
  %v3803 = vsel %vm69, %v3799, 0.0
  %3804 = vadd.xlane.f32.xlu0 %v3803
  %v3805 = vpop.xlane.xlu0 %3804
  %v3806 = vmul.f32 %v3802, %v76
  %v3807 = vmul.f32 %v3805, %v76
  %v3808 = vadd.f32 %v3806, 1e-12
  %v3809 = vadd.f32 %v3807, 1e-12
  %v3810 = vrsqrt.pop %v3808
  %v3811 = vrsqrt.pop %v3809
  %v3812 = vmul.f32 %v3796, %v3810
  %v3813 = vmul.f32 %v3797, %v3811
  %v3815 = vlaneseq
  %v3816 = vshrl.u32 %v3815, 7
  %v3817 = vsub.s32 0, %v3816
  %v3818 = vrot.slane %v3785, %v3817
  %v3820 = vmul.f32 %v3812, %v3818
  %v3821 = vmul.f32 %v3813, %v3818
  %v3823 = vlaneseq
  %v3824 = vshrl.u32 %v3823, 7
  %v3825 = vsub.s32 0, %v3824
  %v3826 = vrot.slane %v3787, %v3825
  %v3828 = vadd.f32 %v3820, %v3826
  %v3829 = vadd.f32 %v3821, %v3826
  %v3830 = vld [vmem:[%s16] sm:$0xff]
  %v3831 = vld [vmem:[%s16 + $0x8] sm:$0xff]
  %v3832 = vld [vmem:[%s16 + $0x10] sm:$0xff]
  %v3833 = vld [vmem:[%s16 + $0x18] sm:$0xff]
  %v3834 = vld [vmem:[%s17] sm:$0x1]
  %v3836 = vlaneseq
  %v3837 = vshrl.u32 %v3836, 7
  %v3838 = vsub.s32 0, %v3837
  %v3839 = vrot.slane %v3834, %v3838
  %v3842 = vsel %vm69, %v3828, 0
  %v3845 = vsel %vm69, %v3829, 0
  %3847 = vmatprep.subr.mxu0 0.0
  %3848 = vmatpush1.msra.mxu0 %v3830
  %3849 = vmatprep.subr.mxu0 0.0
  %3850 = vmatpush1.msra.mxu0 %v3831
  %3851 = vmatprep.subr.mxu0 0.0
  %3852 = vmatpush1.msra.mxu0 %v3832
  %3853 = vmatprep.subr.mxu0 0.0
  %3854 = vmatpush1.msra.mxu0 %v3833
  %3855 = vmatprep.subr.mxu0 0.0
  %3856 = vmatpush1.msra.mxu0 0.0
  %3857 = vmatprep.subr.mxu0 0.0
  %3858 = vmatpush1.msra.mxu0 0.0
  %3859 = vmatprep.subr.mxu0 0.0
  %3860 = vmatpush1.msra.mxu0 0.0
  %3861 = vmatprep.subr.mxu0 0.0
  %3862 = vmatpush1.msra.mxu0 0.0
  %3863 = vmatprep.subr.mxu0 0.0
  %3864 = vmatpush1.msra.mxu0 0.0
  %3865 = vmatprep.subr.mxu0 0.0
  %3866 = vmatpush1.msra.mxu0 0.0
  %3867 = vmatprep.subr.mxu0 0.0
  %3868 = vmatpush1.msra.mxu0 0.0
  %3869 = vmatprep.subr.mxu0 0.0
  %3870 = vmatpush1.msra.mxu0 0.0
  %3871 = vmatprep.subr.mxu0 0.0
  %3872 = vmatpush1.msra.mxu0 0.0
  %3873 = vmatprep.subr.mxu0 0.0
  %3874 = vmatpush1.msra.mxu0 0.0
  %3875 = vmatprep.subr.mxu0 0.0
  %3876 = vmatpush1.msra.mxu0 0.0
  %3877 = vmatprep.subr.mxu0 0.0
  %3878 = vmatpush1.msra.mxu0 0.0
  %3879 = vmatprep.subr.mxu0 0.0
  %3880 = vmatpush1.msra.mxu0 0.0
  %3881 = vmatprep.subr.mxu0 0.0
  %3882 = vmatpush1.msra.mxu0 0.0
  %3883 = vmatprep.subr.mxu0 0.0
  %3884 = vmatpush1.msra.mxu0 0.0
  %3885 = vmatprep.subr.mxu0 0.0
  %3886 = vmatpush1.msra.mxu0 0.0
  %3887 = vmatprep.subr.mxu0 0.0
  %3888 = vmatpush1.msra.mxu0 0.0
  %3889 = vmatprep.subr.mxu0 0.0
  %3890 = vmatpush1.msra.mxu0 0.0
  %3891 = vmatprep.subr.mxu0 0.0
  %3892 = vmatpush1.msra.mxu0 0.0
  %3893 = vmatprep.subr.mxu0 0.0
  %3894 = vmatpush1.msra.mxu0 0.0
  %3895 = vmatprep.subr.mxu0 0.0
  %3896 = vmatpush1.msra.mxu0 0.0
  %3897 = vmatprep.subr.mxu0 0.0
  %3898 = vmatpush1.msra.mxu0 0.0
  %3899 = vmatprep.subr.mxu0 0.0
  %3900 = vmatpush1.msra.mxu0 0.0
  %3901 = vmatprep.subr.mxu0 0.0
  %3902 = vmatpush1.msra.mxu0 0.0
  %3903 = vmatprep.subr.mxu0 0.0
  %3904 = vmatpush1.msra.mxu0 0.0
  %3905 = vmatprep.subr.mxu0 0.0
  %3906 = vmatpush1.msra.mxu0 0.0
  %3907 = vmatprep.subr.mxu0 0.0
  %3908 = vmatpush1.msra.mxu0 0.0
  %3909 = vmatprep.subr.mxu0 0.0
  %3910 = vmatpush1.msra.mxu0 0.0
  %3911 = vmatprep.mubr.f32.mxu0 0.0
  %3912 = vmatmul.mubr.f32.gmra.mrb[0].mxu0 %v3842
  %v3913 = vpop.f32.mrb[0].mxu0
  %v3914 = vadd.f32 %v3839, %v3913
  %v3915 = vpop.f32.mrb[0].mxu0
  %3916 = vmatprep.mubr.f32.mxu0 0.0
  %3917 = vmatmul.mubr.f32.gmra.mrb[0].mxu0 %v3845
  %v3918 = vpop.f32.mrb[0].mxu0
  %v3919 = vadd.f32 %v3839, %v3918
  %v3920 = vpop.f32.mrb[0].mxu0
  %3921 = vdwg.mxu0
  %v3922 = vtanh.pop %v3914
  %v3923 = vtanh.pop %v3919
  %v3924 = vld [vmem:[%s18] sm:$0xff]
  %v3925 = vld [vmem:[%s18 + $0x8] sm:$0xff]
  %v3926 = vld [vmem:[%s18 + $0x10] sm:$0xff]
  %v3927 = vld [vmem:[%s18 + $0x18] sm:$0xff]
  %v3928 = vld [vmem:[%s19] sm:$0x1]
  %v3930 = vlaneseq
  %v3931 = vshrl.u32 %v3930, 7
  %v3932 = vsub.s32 0, %v3931
  %v3933 = vrot.slane %v3928, %v3932
  %v3936 = vsel %vm69, %v3922, 0
  %v3939 = vsel %vm69, %v3923, 0
  %3941 = vmatprep.subr.mxu0 0.0
  %3942 = vmatpush1.msra.mxu0 %v3924
  %3943 = vmatprep.subr.mxu0 0.0
  %3944 = vmatpush1.msra.mxu0 %v3925
  %3945 = vmatprep.subr.mxu0 0.0
  %3946 = vmatpush1.msra.mxu0 %v3926
  %3947 = vmatprep.subr.mxu0 0.0
  %3948 = vmatpush1.msra.mxu0 %v3927
  %3949 = vmatprep.subr.mxu0 0.0
  %3950 = vmatpush1.msra.mxu0 0.0
  %3951 = vmatprep.subr.mxu0 0.0
  %3952 = vmatpush1.msra.mxu0 0.0
  %3953 = vmatprep.subr.mxu0 0.0
  %3954 = vmatpush1.msra.mxu0 0.0
  %3955 = vmatprep.subr.mxu0 0.0
  %3956 = vmatpush1.msra.mxu0 0.0
  %3957 = vmatprep.subr.mxu0 0.0
  %3958 = vmatpush1.msra.mxu0 0.0
  %3959 = vmatprep.subr.mxu0 0.0
  %3960 = vmatpush1.msra.mxu0 0.0
  %3961 = vmatprep.subr.mxu0 0.0
  %3962 = vmatpush1.msra.mxu0 0.0
  %3963 = vmatprep.subr.mxu0 0.0
  %3964 = vmatpush1.msra.mxu0 0.0
  %3965 = vmatprep.subr.mxu0 0.0
  %3966 = vmatpush1.msra.mxu0 0.0
  %3967 = vmatprep.subr.mxu0 0.0
  %3968 = vmatpush1.msra.mxu0 0.0
  %3969 = vmatprep.subr.mxu0 0.0
  %3970 = vmatpush1.msra.mxu0 0.0
  %3971 = vmatprep.subr.mxu0 0.0
  %3972 = vmatpush1.msra.mxu0 0.0
  %3973 = vmatprep.subr.mxu0 0.0
  %3974 = vmatpush1.msra.mxu0 0.0
  %3975 = vmatprep.subr.mxu0 0.0
  %3976 = vmatpush1.msra.mxu0 0.0
  %3977 = vmatprep.subr.mxu0 0.0
  %3978 = vmatpush1.msra.mxu0 0.0
  %3979 = vmatprep.subr.mxu0 0.0
  %3980 = vmatpush1.msra.mxu0 0.0
  %3981 = vmatprep.subr.mxu0 0.0
  %3982 = vmatpush1.msra.mxu0 0.0
  %3983 = vmatprep.subr.mxu0 0.0
  %3984 = vmatpush1.msra.mxu0 0.0
  %3985 = vmatprep.subr.mxu0 0.0
  %3986 = vmatpush1.msra.mxu0 0.0
  %3987 = vmatprep.subr.mxu0 0.0
  %3988 = vmatpush1.msra.mxu0 0.0
  %3989 = vmatprep.subr.mxu0 0.0
  %3990 = vmatpush1.msra.mxu0 0.0
  %3991 = vmatprep.subr.mxu0 0.0
  %3992 = vmatpush1.msra.mxu0 0.0
  %3993 = vmatprep.subr.mxu0 0.0
  %3994 = vmatpush1.msra.mxu0 0.0
  %3995 = vmatprep.subr.mxu0 0.0
  %3996 = vmatpush1.msra.mxu0 0.0
  %3997 = vmatprep.subr.mxu0 0.0
  %3998 = vmatpush1.msra.mxu0 0.0
  %3999 = vmatprep.subr.mxu0 0.0
  %4000 = vmatpush1.msra.mxu0 0.0
  %4001 = vmatprep.subr.mxu0 0.0
  %4002 = vmatpush1.msra.mxu0 0.0
  %4003 = vmatprep.subr.mxu0 0.0
  %4004 = vmatpush1.msra.mxu0 0.0
  %4005 = vmatprep.mubr.f32.mxu0 0.0
  %4006 = vmatmul.mubr.f32.gmra.mrb[0].mxu0 %v3936
  %v4007 = vpop.f32.mrb[0].mxu0
  %v4008 = vadd.f32 %v3933, %v4007
  %v4009 = vpop.f32.mrb[0].mxu0
  %4010 = vmatprep.mubr.f32.mxu0 0.0
  %4011 = vmatmul.mubr.f32.gmra.mrb[0].mxu0 %v3939
  %v4012 = vpop.f32.mrb[0].mxu0
  %v4013 = vadd.f32 %v3933, %v4012
  %v4014 = vpop.f32.mrb[0].mxu0
  %4015 = vdwg.mxu0
  %4016 = vst [vmem:[%s20] sm:$0xff] %v4008
  %4017 = vst [vmem:[%s20 + $0x8] sm:$0xff] %v4013
  // Predicated region
  $region82: #{bert_classifier_forward.1} parent=0 // pred_check
    _
  $region83: #{bert_classifier_forward.1} parent=0 // pred_check_branch
    %4019 = sbr.rel (0) target = $region85
  $region84: #{bert_classifier_forward.1} parent=0 // pred_region
    _
  $region85: #{bert_classifier_forward.1} parent=0 // pred_fallthru
    _
  // Predicated region
  $region86: #{bert_classifier_forward.1} parent=0 // pred_check
    _
  $region87: #{bert_classifier_forward.1} parent=0 // pred_check_branch
    %4021 = sbr.rel (0) target = $region89
  $region88: #{bert_classifier_forward.1} parent=0 // pred_region
    _
  $region89: #{bert_classifier_forward.1} parent=0 // pred_fallthru
    _

</llo_original>
